<compile_context>
chip_gen: v6e
topology: v6e:2x2x1
jax: 0.10.0
libtpu: 0.0.40
codegen_flags: <defaults>
</compile_context>

<pallas_src>
import functools

import jax
import jax.numpy as jnp
from jax.experimental import pallas as pl
from jax.experimental.pallas import tpu as pltpu


# ------------------------------ tiling helper -------------------------------

def _pick_tile(dim, pref, mult):
    """Largest tile <= pref that divides `dim` and is a multiple of `mult`;
    falls back to the full dim (always a legal block)."""
    if dim <= pref:
        return dim
    t = (pref // mult) * mult
    while t >= mult:
        if dim % t == 0:
            return t
        t -= mult
    return dim


# ----------------------------- Pallas kernels ------------------------------

def _matmul_kernel(a_ref, b_ref, o_ref, *, apply_tanh):
    acc = jnp.dot(a_ref[...], b_ref[...], preferred_element_type=jnp.float32)
    if apply_tanh:
        acc = jnp.tanh(acc)
    o_ref[...] = acc.astype(o_ref.dtype)


def pallas_matmul(a, b, *, apply_tanh=False, out_dtype=jnp.bfloat16,
                  tm_pref=1024):
    """O = (tanh?)(A @ B).  A: (M, K) bf16, B: (K, N) bf16, O: (M, N).

    tn = full N (weights resident, one N block); tm is a divisor of M that is
    a multiple of 8 (>= 2 blocks when M is large, for v7x dual-TC) or the full
    dim.  f32 accumulation on the MXU; output stored in `out_dtype`.
    """
    M, K = a.shape
    Kb, N = b.shape
    assert K == Kb
    tm = _pick_tile(M, tm_pref, 8)
    out_bytes = M * N * jnp.dtype(out_dtype).itemsize
    cost = pl.CostEstimate(
        flops=2 * M * N * K,
        transcendentals=M * N if apply_tanh else 0,
        bytes_accessed=a.size * a.dtype.itemsize
        + b.size * b.dtype.itemsize + out_bytes)
    kernel = functools.partial(_matmul_kernel, apply_tanh=apply_tanh)
    return pl.pallas_call(
        kernel,
        out_shape=jax.ShapeDtypeStruct((M, N), out_dtype),
        grid_spec=pltpu.PrefetchScalarGridSpec(
            num_scalar_prefetch=0,
            grid=(M // tm,),
            in_specs=[pl.BlockSpec((tm, K), lambda i: (i, 0)),
                      pl.BlockSpec((K, N), lambda i: (0, 0))],
            out_specs=pl.BlockSpec((tm, N), lambda i: (i, 0)),
        ),
        compiler_params=pltpu.CompilerParams(
            dimension_semantics=("parallel",)),
        cost_estimate=cost,
    )(a, b)


def _bn_stats_kernel(y_ref, sum_ref, sq_ref):
    @pl.when(pl.program_id(0) == 0)
    def _():
        sum_ref[...] = jnp.zeros_like(sum_ref)
        sq_ref[...] = jnp.zeros_like(sq_ref)
    y = y_ref[...].astype(jnp.float32)
    sum_ref[...] += jnp.sum(y, axis=0, keepdims=True)
    sq_ref[...] += jnp.sum(y * y, axis=0, keepdims=True)


def pallas_bn_stats(y2d, tm_pref=1024):
    """Single-pass per-column sum and sum-of-squares of y2d (rows, cols).
    tm_pref capped at 1024 so double-buffered blocks stay inside v5e's 16 MiB
    default scoped VMEM even at scaled configs."""
    M, C = y2d.shape
    tm = _pick_tile(M, tm_pref, 8)
    cost = pl.CostEstimate(
        flops=3 * M * C, transcendentals=0,
        bytes_accessed=y2d.size * y2d.dtype.itemsize + 2 * C * 4)
    return pl.pallas_call(
        _bn_stats_kernel,
        out_shape=(jax.ShapeDtypeStruct((1, C), jnp.float32),
                   jax.ShapeDtypeStruct((1, C), jnp.float32)),
        grid_spec=pltpu.PrefetchScalarGridSpec(
            num_scalar_prefetch=0,
            grid=(M // tm,),
            in_specs=[pl.BlockSpec((tm, C), lambda i: (i, 0))],
            out_specs=(pl.BlockSpec((1, C), lambda i: (0, 0)),
                       pl.BlockSpec((1, C), lambda i: (0, 0))),
        ),
        compiler_params=pltpu.CompilerParams(
            dimension_semantics=("arbitrary",)),   # output blocks revisited
        cost_estimate=cost,
    )(y2d)


# ------------------ sub-pixel ConvTranspose2d (XLA glue) --------------------
# stride 2, kernel 4, pad 1:  y[n, 2m+rh, 2w+rw, co]
#   = sum_{du,dv,ci} xp[n, (m+rh)+du, (w+rw)+dv, ci] * W[ci, co, 3-2du-rh, 3-2dv-rw]
# where xp is the input zero-padded by 1 on each spatial side.

def _subpixel_weight(w, cout_pad):
    """w: (Cin, Cout, 4, 4) -> B: (4*Cin, 4*Cout_pad), K ordered (du, dv, ci),
    N ordered (rh, rw, co)."""
    Cin, Cout, k, _ = w.shape
    assert k == 4
    if cout_pad > Cout:
        w = jnp.pad(w, ((0, 0), (0, cout_pad - Cout), (0, 0), (0, 0)))
        Cout = cout_pad
    wr = jnp.flip(w, axis=(2, 3))                  # wr[ci,co,j,l] = w[ci,co,3-j,3-l]
    wr = wr.reshape(Cin, Cout, 2, 2, 2, 2)         # (ci, co, du, rh, dv, rw)
    wr = wr.transpose(2, 4, 0, 3, 5, 1)            # (du, dv, ci, rh, rw, co)
    return wr.reshape(4 * Cin, 4 * Cout)


def _im2col_2x2(x):
    """x: (N, H, W, C) -> A: (N*(H+1)*(W+1), 4*C), K ordered (du, dv, ci),
    2x2 windows over x zero-padded by 1 on each spatial side."""
    N, H, W, C = x.shape
    xp = jnp.pad(x, ((0, 0), (1, 1), (1, 1), (0, 0)))
    cols = []
    for du in range(2):
        for dv in range(2):
            cols.append(xp[:, du:du + H + 1, dv:dv + W + 1, :])
    a = jnp.concatenate(cols, axis=-1)             # (N, H+1, W+1, 4*C)
    return a.reshape(N * (H + 1) * (W + 1), 4 * C)


def _phase_interleave(q, N, H, W, C):
    """q: (N*(H+1)*(W+1), 4*C), N-axis ordered (rh, rw, co) -> (N, 2H, 2W, C)."""
    q6 = q.reshape(N, H + 1, W + 1, 2, 2, C)
    t = jnp.stack([
        jnp.stack([q6[:, 0:H,     0:W,     0, 0, :],
                   q6[:, 0:H,     1:W + 1, 0, 1, :]], axis=3),
        jnp.stack([q6[:, 1:H + 1, 0:W,     1, 0, :],
                   q6[:, 1:H + 1, 1:W + 1, 1, 1, :]], axis=3),
    ], axis=2)                                     # (N, H, 2, W, 2, C)
    return t.reshape(N, 2 * H, 2 * W, C)


# ------------------------------ BatchNorm helper -----------------------------

def _bn_affine(y, gamma, beta, eps=1e-5):
    """Training-mode BatchNorm2d batch stats on NHWC `y` -> per-channel
    (scale, shift) such that BN(y) = y*scale + shift."""
    N, H, W, C = y.shape
    ssum, ssq = pallas_bn_stats(y.reshape(N * H, W * C))
    ssum = ssum.reshape(W, C).sum(axis=0)
    ssq = ssq.reshape(W, C).sum(axis=0)
    cnt = float(N * H * W)
    mean = ssum / cnt
    var = jnp.maximum(ssq / cnt - mean * mean, 0.0)    # biased variance
    scale = gamma * jax.lax.rsqrt(var + eps)
    shift = beta - mean * scale
    return scale, shift


# ------------------------------ Generator model -----------------------------

def init_generator_params(key, nz, ngf, nc):
    chans = [nz, ngf * 8, ngf * 4, ngf * 2, ngf, nc]
    params = []
    for i in range(5):
        key, kw, kg, kb = jax.random.split(key, 4)
        w = 0.05 * jax.random.normal(kw, (chans[i], chans[i + 1], 4, 4),
                                     jnp.float32)
        if i < 4:   # BatchNorm affine params
            gamma = 1.0 + 0.1 * jax.random.normal(kg, (chans[i + 1],),
                                                  jnp.float32)
            beta = 0.1 * jax.random.normal(kb, (chans[i + 1],), jnp.float32)
        else:
            gamma, beta = None, None
        params.append(dict(w=w, gamma=gamma, beta=beta))
    return params


@jax.jit
def generator_forward(z, params):
    """Full forward (n_cuts=0, end=None). z: (N, nz, 1, 1) -> (N, nc, 64, 64)."""
    N, nz = z.shape[0], z.shape[1]

    # ---- layer 1: ConvTranspose2d(nz, ngf*8, 4, 1, 0) -> BN stats ----------
    w1 = params[0]["w"]
    Cin, C1, k, _ = w1.shape
    B1 = jnp.transpose(w1, (0, 2, 3, 1)).reshape(Cin, k * k * C1)
    B1 = B1.astype(jnp.bfloat16)
    x = z.reshape(N, nz).astype(jnp.bfloat16)
    q1 = pallas_matmul(x, B1)                          # (N, 16*C1) bf16
    y = q1.reshape(N, 4, 4, C1)                        # NHWC pre-BN activation
    H = W = 4
    scale, shift = _bn_affine(y, params[0]["gamma"], params[0]["beta"])

    # ---- stride-2 layers 2..5 ----------------------------------------------
    for i in range(1, 5):
        p = params[i]
        w = p["w"]
        Cin, Cout, _, _ = w.shape
        last = p["gamma"] is None
        # Pad the final layer's Cout so the matmul output width 4*Cout is a
        # multiple of 128 (unmasked lane-dense stores on the biggest-M layer).
        cout_p = (-(-Cout // 32) * 32) if last else Cout
        Bsp = _subpixel_weight(w, cout_p).astype(jnp.bfloat16)

        # Previous layer's BN affine + ReLU, fused by XLA into the im2col
        # pad/slice/concat that builds A (padding entries stay exactly 0).
        xact = jnp.maximum(y.astype(jnp.float32) * scale + shift, 0.0)
        a = _im2col_2x2(xact.astype(jnp.bfloat16))     # (N*(H+1)*(W+1), 4*Cin)

        q = pallas_matmul(a, Bsp, apply_tanh=last,
                          out_dtype=jnp.float32 if last else jnp.bfloat16)
        y = _phase_interleave(q, N, H, W, cout_p)      # (N, 2H, 2W, cout_p)
        H, W = 2 * H, 2 * W

        if last:
            y = y[..., :Cout]                          # drop padded channels
            return jnp.transpose(y, (0, 3, 1, 2))      # NCHW at the boundary
        scale, shift = _bn_affine(y, p["gamma"], p["beta"])


# ------------------------------ pure-JAX reference ---------------------------

_STRIDES = (1, 2, 2, 2, 2)
_PADS = (0, 1, 1, 1, 1)


def _ref_conv_transpose(x, w, stride, padding):
    k = w.shape[-1]
    wc = jnp.flip(w, axis=(2, 3)).transpose(1, 0, 2, 3)        # (Cout, Cin, k, k)
    return jax.lax.conv_general_dilated(
        x, wc, window_strides=(1, 1),
        padding=[(k - 1 - padding, k - 1 - padding)] * 2,
        lhs_dilation=(stride, stride),
        dimension_numbers=("NCHW", "OIHW", "NCHW"),
        precision=jax.lax.Precision.HIGHEST)


@jax.jit
def generator_forward_ref(z, params):
    x = z.astype(jnp.float32)
    for p, stride, pad in zip(params, _STRIDES, _PADS):
        x = _ref_conv_transpose(x, p["w"], stride, pad)
        if p["gamma"] is not None:
            mean = jnp.mean(x, axis=(0, 2, 3), keepdims=True)
            var = jnp.mean((x - mean) ** 2, axis=(0, 2, 3), keepdims=True)
            x = (x - mean) / jnp.sqrt(var + 1e-5)
            x = x * p["gamma"][None, :, None, None] + p["beta"][None, :, None, None]
            x = jnp.maximum(x, 0.0)
        else:
            x = jnp.tanh(x)
    return x


# ----------------------------------- main ------------------------------------

if __name__ == "__main__":
    # Small-but-consistent config: nz=32, ngf=8, nc=3, batch=2.
    nz, ngf, nc, batch = 32, 8, 3, 2

    key = jax.random.PRNGKey(0)
    kz, kp = jax.random.split(key)
    z = jax.random.normal(kz, (batch, nz, 1, 1), jnp.float32)
    params = init_generator_params(kp, nz, ngf, nc)

    out = jax.block_until_ready(generator_forward(z, params))
    assert out.shape == (batch, nc, 64, 64), out.shape
    assert bool(jnp.all(jnp.isfinite(out)))

    ref = jax.block_until_ready(generator_forward_ref(z, params))
    err = float(jnp.max(jnp.abs(out - ref)))
    assert jnp.allclose(out, ref, atol=5e-2, rtol=5e-2), err

    print("KERNEL_OK")
</pallas_src>

<mosaic_0001>
module attributes {stable_mosaic.version = 11 : i64} {
  func.func @_matmul_kernel(%arg0: i32, %arg1: memref<2x32xbf16, #tpu.memory_space<vmem>>, %arg2: memref<32x1024xbf16, #tpu.memory_space<vmem>>, %arg3: memref<2x1024xbf16, #tpu.memory_space<vmem>>) attributes {dimension_semantics = [#tpu.dimension_semantics<parallel>], iteration_bounds = array<i64: 1>, scalar_prefetch = 0 : i64, scratch_operands = 0 : i64, tpu.core_type = #tpu.core_type<tc>, window_params = [{transform_indices = @transform_0, window_bounds = array<i64: 2, 32>}, {pipeline_mode = #tpu.pipeline_mode<synchronous>, transform_indices = @transform_1, window_bounds = array<i64: 32, 1024>}, {transform_indices = @transform_2, window_bounds = array<i64: 2, 1024>}]} {
    %c0 = arith.constant 0 : index
    %c0_0 = arith.constant 0 : index
    %0 = vector.load %arg1[%c0, %c0_0] : memref<2x32xbf16, #tpu.memory_space<vmem>>, vector<2x32xbf16>
    %c0_1 = arith.constant 0 : index
    %c0_2 = arith.constant 0 : index
    %1 = vector.load %arg2[%c0_1, %c0_2] : memref<32x1024xbf16, #tpu.memory_space<vmem>>, vector<32x1024xbf16>
    %cst = arith.constant dense<0.000000e+00> : vector<2x1024xf32>
    %2 = tpu.matmul %0, %1, %cst {dimension_numbers = #tpu.dot_dimension_numbers<[1], [0], [0], [1], [0, 0, 1, 1], [], []>} : vector<2x32xbf16>, vector<32x1024xbf16>, vector<2x1024xf32> -> vector<2x1024xf32>
    %3 = arith.truncf %2 : vector<2x1024xf32> to vector<2x1024xbf16>
    %c0_3 = arith.constant 0 : index
    %c0_4 = arith.constant 0 : index
    %4 = vector.load %arg3[%c0_3, %c0_4] : memref<2x1024xbf16, #tpu.memory_space<vmem>>, vector<2x1024xbf16>
    tpu.vector_store %arg3[%c0_3, %c0_4], %3 {strides = array<i32>} : memref<2x1024xbf16, #tpu.memory_space<vmem>>, vector<2x1024xbf16>,
    return
  }
  func.func @transform_0(%arg0: i32) -> (i32, i32) {
    %c0_i32 = arith.constant 0 : i32
    %c0_i32_0 = arith.constant 0 : i32
    return %arg0, %c0_i32 : i32, i32
  }
  func.func @transform_1(%arg0: i32) -> (i32, i32) {
    %c0_i32 = arith.constant 0 : i32
    %c0_i32_0 = arith.constant 0 : i32
    %c0_i32_1 = arith.constant 0 : i32
    return %c0_i32, %c0_i32_0 : i32, i32
  }
  func.func @transform_2(%arg0: i32) -> (i32, i32) {
    %c0_i32 = arith.constant 0 : i32
    %c0_i32_0 = arith.constant 0 : i32
    return %arg0, %c0_i32 : i32, i32
  }
}

module attributes {stable_mosaic.version = 11 : i64} {
  func.func @_bn_stats_kernel(%arg0: i32, %arg1: memref<8x256xbf16, #tpu.memory_space<vmem>>, %arg2: memref<1x256xf32, #tpu.memory_space<vmem>>, %arg3: memref<1x256xf32, #tpu.memory_space<vmem>>) attributes {dimension_semantics = [#tpu.dimension_semantics<arbitrary>], iteration_bounds = array<i64: 1>, scalar_prefetch = 0 : i64, scratch_operands = 0 : i64, tpu.core_type = #tpu.core_type<tc>, window_params = [{transform_indices = @transform_0, window_bounds = array<i64: 8, 256>}, {pipeline_mode = #tpu.pipeline_mode<synchronous>, transform_indices = @transform_1, window_bounds = array<i64: 1, 256>}, {pipeline_mode = #tpu.pipeline_mode<synchronous>, transform_indices = @transform_2, window_bounds = array<i64: 1, 256>}]} {
    %c0_i32 = arith.constant 0 : i32
    %0 = arith.cmpi eq, %arg0, %c0_i32 : i32
    %1 = arith.extui %0 : i1 to i32
    %c0_i32_0 = arith.constant 0 : i32
    %2 = arith.cmpi ne, %1, %c0_i32_0 : i32
    scf.if %2 {
      %cst_11 = arith.constant 0.000000e+00 : f32
      %16 = vector.broadcast %cst_11 : f32 to vector<1x256xf32>
      %c0_12 = arith.constant 0 : index
      %c0_13 = arith.constant 0 : index
      %17 = vector.load %arg2[%c0_12, %c0_13] : memref<1x256xf32, #tpu.memory_space<vmem>>, vector<1x256xf32>
      tpu.vector_store %arg2[%c0_12, %c0_13], %16 {strides = array<i32>} : memref<1x256xf32, #tpu.memory_space<vmem>>, vector<1x256xf32>,
      %cst_14 = arith.constant 0.000000e+00 : f32
      %18 = vector.broadcast %cst_14 : f32 to vector<1x256xf32>
      %c0_15 = arith.constant 0 : index
      %c0_16 = arith.constant 0 : index
      %19 = vector.load %arg3[%c0_15, %c0_16] : memref<1x256xf32, #tpu.memory_space<vmem>>, vector<1x256xf32>
      tpu.vector_store %arg3[%c0_15, %c0_16], %18 {strides = array<i32>} : memref<1x256xf32, #tpu.memory_space<vmem>>, vector<1x256xf32>,
    } else {
    }
    %c0 = arith.constant 0 : index
    %c0_1 = arith.constant 0 : index
    %3 = vector.load %arg1[%c0, %c0_1] : memref<8x256xbf16, #tpu.memory_space<vmem>>, vector<8x256xbf16>
    %4 = arith.extf %3 : vector<8x256xbf16> to vector<8x256xf32>
    %c0_2 = arith.constant 0 : index
    %c0_3 = arith.constant 0 : index
    %5 = vector.load %arg2[%c0_2, %c0_3] : memref<1x256xf32, #tpu.memory_space<vmem>>, vector<1x256xf32>
    %cst = arith.constant dense<0.000000e+00> : vector<256xf32>
    %6 = vector.multi_reduction <add>, %4, %cst [0] : vector<8x256xf32> to vector<256xf32>
    %7 = vector.shape_cast %6 : vector<256xf32> to vector<1x256xf32>
    %8 = arith.addf %5, %7 : vector<1x256xf32>
    %c0_4 = arith.constant 0 : index
    %c0_5 = arith.constant 0 : index
    %9 = vector.load %arg2[%c0_4, %c0_5] : memref<1x256xf32, #tpu.memory_space<vmem>>, vector<1x256xf32>
    tpu.vector_store %arg2[%c0_4, %c0_5], %8 {strides = array<i32>} : memref<1x256xf32, #tpu.memory_space<vmem>>, vector<1x256xf32>,
    %c0_6 = arith.constant 0 : index
    %c0_7 = arith.constant 0 : index
    %10 = vector.load %arg3[%c0_6, %c0_7] : memref<1x256xf32, #tpu.memory_space<vmem>>, vector<1x256xf32>
    %11 = arith.mulf %4, %4 : vector<8x256xf32>
    %cst_8 = arith.constant dense<0.000000e+00> : vector<256xf32>
    %12 = vector.multi_reduction <add>, %11, %cst_8 [0] : vector<8x256xf32> to vector<256xf32>
    %13 = vector.shape_cast %12 : vector<256xf32> to vector<1x256xf32>
    %14 = arith.addf %10, %13 : vector<1x256xf32>
    %c0_9 = arith.constant 0 : index
    %c0_10 = arith.constant 0 : index
    %15 = vector.load %arg3[%c0_9, %c0_10] : memref<1x256xf32, #tpu.memory_space<vmem>>, vector<1x256xf32>
    tpu.vector_store %arg3[%c0_9, %c0_10], %14 {strides = array<i32>} : memref<1x256xf32, #tpu.memory_space<vmem>>, vector<1x256xf32>,
    return
  }
  func.func @transform_0(%arg0: i32) -> (i32, i32) {
    %c0_i32 = arith.constant 0 : i32
    %c0_i32_0 = arith.constant 0 : i32
    return %arg0, %c0_i32 : i32, i32
  }
  func.func @transform_1(%arg0: i32) -> (i32, i32) {
    %c0_i32 = arith.constant 0 : i32
    %c0_i32_0 = arith.constant 0 : i32
    %c0_i32_1 = arith.constant 0 : i32
    return %c0_i32, %c0_i32_0 : i32, i32
  }
  func.func @transform_2(%arg0: i32) -> (i32, i32) {
    %c0_i32 = arith.constant 0 : i32
    %c0_i32_0 = arith.constant 0 : i32
    %c0_i32_1 = arith.constant 0 : i32
    return %c0_i32, %c0_i32_0 : i32, i32
  }
}

module attributes {stable_mosaic.version = 11 : i64} {
  func.func @_matmul_kernel(%arg0: i32, %arg1: memref<50x256xbf16, #tpu.memory_space<vmem>>, %arg2: memref<256x128xbf16, #tpu.memory_space<vmem>>, %arg3: memref<50x128xbf16, #tpu.memory_space<vmem>>) attributes {dimension_semantics = [#tpu.dimension_semantics<parallel>], iteration_bounds = array<i64: 1>, scalar_prefetch = 0 : i64, scratch_operands = 0 : i64, tpu.core_type = #tpu.core_type<tc>, window_params = [{transform_indices = @transform_0, window_bounds = array<i64: 50, 256>}, {pipeline_mode = #tpu.pipeline_mode<synchronous>, transform_indices = @transform_1, window_bounds = array<i64: 256, 128>}, {transform_indices = @transform_2, window_bounds = array<i64: 50, 128>}]} {
    %c0 = arith.constant 0 : index
    %c0_0 = arith.constant 0 : index
    %0 = vector.load %arg1[%c0, %c0_0] : memref<50x256xbf16, #tpu.memory_space<vmem>>, vector<50x256xbf16>
    %c0_1 = arith.constant 0 : index
    %c0_2 = arith.constant 0 : index
    %1 = vector.load %arg2[%c0_1, %c0_2] : memref<256x128xbf16, #tpu.memory_space<vmem>>, vector<256x128xbf16>
    %cst = arith.constant dense<0.000000e+00> : vector<50x128xf32>
    %2 = tpu.matmul %0, %1, %cst {dimension_numbers = #tpu.dot_dimension_numbers<[1], [0], [0], [1], [0, 0, 1, 1], [], []>} : vector<50x256xbf16>, vector<256x128xbf16>, vector<50x128xf32> -> vector<50x128xf32>
    %3 = arith.truncf %2 : vector<50x128xf32> to vector<50x128xbf16>
    %c0_3 = arith.constant 0 : index
    %c0_4 = arith.constant 0 : index
    %4 = vector.load %arg3[%c0_3, %c0_4] : memref<50x128xbf16, #tpu.memory_space<vmem>>, vector<50x128xbf16>
    tpu.vector_store %arg3[%c0_3, %c0_4], %3 {strides = array<i32>} : memref<50x128xbf16, #tpu.memory_space<vmem>>, vector<50x128xbf16>,
    return
  }
  func.func @transform_0(%arg0: i32) -> (i32, i32) {
    %c0_i32 = arith.constant 0 : i32
    %c0_i32_0 = arith.constant 0 : i32
    return %arg0, %c0_i32 : i32, i32
  }
  func.func @transform_1(%arg0: i32) -> (i32, i32) {
    %c0_i32 = arith.constant 0 : i32
    %c0_i32_0 = arith.constant 0 : i32
    %c0_i32_1 = arith.constant 0 : i32
    return %c0_i32, %c0_i32_0 : i32, i32
  }
  func.func @transform_2(%arg0: i32) -> (i32, i32) {
    %c0_i32 = arith.constant 0 : i32
    %c0_i32_0 = arith.constant 0 : i32
    return %arg0, %c0_i32 : i32, i32
  }
}

module attributes {stable_mosaic.version = 11 : i64} {
  func.func @_bn_stats_kernel(%arg0: i32, %arg1: memref<16x256xbf16, #tpu.memory_space<vmem>>, %arg2: memref<1x256xf32, #tpu.memory_space<vmem>>, %arg3: memref<1x256xf32, #tpu.memory_space<vmem>>) attributes {dimension_semantics = [#tpu.dimension_semantics<arbitrary>], iteration_bounds = array<i64: 1>, scalar_prefetch = 0 : i64, scratch_operands = 0 : i64, tpu.core_type = #tpu.core_type<tc>, window_params = [{transform_indices = @transform_0, window_bounds = array<i64: 16, 256>}, {pipeline_mode = #tpu.pipeline_mode<synchronous>, transform_indices = @transform_1, window_bounds = array<i64: 1, 256>}, {pipeline_mode = #tpu.pipeline_mode<synchronous>, transform_indices = @transform_2, window_bounds = array<i64: 1, 256>}]} {
    %c0_i32 = arith.constant 0 : i32
    %0 = arith.cmpi eq, %arg0, %c0_i32 : i32
    %1 = arith.extui %0 : i1 to i32
    %c0_i32_0 = arith.constant 0 : i32
    %2 = arith.cmpi ne, %1, %c0_i32_0 : i32
    scf.if %2 {
      %cst_11 = arith.constant 0.000000e+00 : f32
      %16 = vector.broadcast %cst_11 : f32 to vector<1x256xf32>
      %c0_12 = arith.constant 0 : index
      %c0_13 = arith.constant 0 : index
      %17 = vector.load %arg2[%c0_12, %c0_13] : memref<1x256xf32, #tpu.memory_space<vmem>>, vector<1x256xf32>
      tpu.vector_store %arg2[%c0_12, %c0_13], %16 {strides = array<i32>} : memref<1x256xf32, #tpu.memory_space<vmem>>, vector<1x256xf32>,
      %cst_14 = arith.constant 0.000000e+00 : f32
      %18 = vector.broadcast %cst_14 : f32 to vector<1x256xf32>
      %c0_15 = arith.constant 0 : index
      %c0_16 = arith.constant 0 : index
      %19 = vector.load %arg3[%c0_15, %c0_16] : memref<1x256xf32, #tpu.memory_space<vmem>>, vector<1x256xf32>
      tpu.vector_store %arg3[%c0_15, %c0_16], %18 {strides = array<i32>} : memref<1x256xf32, #tpu.memory_space<vmem>>, vector<1x256xf32>,
    } else {
    }
    %c0 = arith.constant 0 : index
    %c0_1 = arith.constant 0 : index
    %3 = vector.load %arg1[%c0, %c0_1] : memref<16x256xbf16, #tpu.memory_space<vmem>>, vector<16x256xbf16>
    %4 = arith.extf %3 : vector<16x256xbf16> to vector<16x256xf32>
    %c0_2 = arith.constant 0 : index
    %c0_3 = arith.constant 0 : index
    %5 = vector.load %arg2[%c0_2, %c0_3] : memref<1x256xf32, #tpu.memory_space<vmem>>, vector<1x256xf32>
    %cst = arith.constant dense<0.000000e+00> : vector<256xf32>
    %6 = vector.multi_reduction <add>, %4, %cst [0] : vector<16x256xf32> to vector<256xf32>
    %7 = vector.shape_cast %6 : vector<256xf32> to vector<1x256xf32>
    %8 = arith.addf %5, %7 : vector<1x256xf32>
    %c0_4 = arith.constant 0 : index
    %c0_5 = arith.constant 0 : index
    %9 = vector.load %arg2[%c0_4, %c0_5] : memref<1x256xf32, #tpu.memory_space<vmem>>, vector<1x256xf32>
    tpu.vector_store %arg2[%c0_4, %c0_5], %8 {strides = array<i32>} : memref<1x256xf32, #tpu.memory_space<vmem>>, vector<1x256xf32>,
    %c0_6 = arith.constant 0 : index
    %c0_7 = arith.constant 0 : index
    %10 = vector.load %arg3[%c0_6, %c0_7] : memref<1x256xf32, #tpu.memory_space<vmem>>, vector<1x256xf32>
    %11 = arith.mulf %4, %4 : vector<16x256xf32>
    %cst_8 = arith.constant dense<0.000000e+00> : vector<256xf32>
    %12 = vector.multi_reduction <add>, %11, %cst_8 [0] : vector<16x256xf32> to vector<256xf32>
    %13 = vector.shape_cast %12 : vector<256xf32> to vector<1x256xf32>
    %14 = arith.addf %10, %13 : vector<1x256xf32>
    %c0_9 = arith.constant 0 : index
    %c0_10 = arith.constant 0 : index
    %15 = vector.load %arg3[%c0_9, %c0_10] : memref<1x256xf32, #tpu.memory_space<vmem>>, vector<1x256xf32>
    tpu.vector_store %arg3[%c0_9, %c0_10], %14 {strides = array<i32>} : memref<1x256xf32, #tpu.memory_space<vmem>>, vector<1x256xf32>,
    return
  }
  func.func @transform_0(%arg0: i32) -> (i32, i32) {
    %c0_i32 = arith.constant 0 : i32
    %c0_i32_0 = arith.constant 0 : i32
    return %arg0, %c0_i32 : i32, i32
  }
  func.func @transform_1(%arg0: i32) -> (i32, i32) {
    %c0_i32 = arith.constant 0 : i32
    %c0_i32_0 = arith.constant 0 : i32
    %c0_i32_1 = arith.constant 0 : i32
    return %c0_i32, %c0_i32_0 : i32, i32
  }
  func.func @transform_2(%arg0: i32) -> (i32, i32) {
    %c0_i32 = arith.constant 0 : i32
    %c0_i32_0 = arith.constant 0 : i32
    %c0_i32_1 = arith.constant 0 : i32
    return %c0_i32, %c0_i32_0 : i32, i32
  }
}

module attributes {stable_mosaic.version = 11 : i64} {
  func.func @_matmul_kernel(%arg0: i32, %arg1: memref<162x128xbf16, #tpu.memory_space<vmem>>, %arg2: memref<128x64xbf16, #tpu.memory_space<vmem>>, %arg3: memref<162x64xbf16, #tpu.memory_space<vmem>>) attributes {dimension_semantics = [#tpu.dimension_semantics<parallel>], iteration_bounds = array<i64: 1>, scalar_prefetch = 0 : i64, scratch_operands = 0 : i64, tpu.core_type = #tpu.core_type<tc>, window_params = [{transform_indices = @transform_0, window_bounds = array<i64: 162, 128>}, {pipeline_mode = #tpu.pipeline_mode<synchronous>, transform_indices = @transform_1, window_bounds = array<i64: 128, 64>}, {transform_indices = @transform_2, window_bounds = array<i64: 162, 64>}]} {
    %c0 = arith.constant 0 : index
    %c0_0 = arith.constant 0 : index
    %0 = vector.load %arg1[%c0, %c0_0] : memref<162x128xbf16, #tpu.memory_space<vmem>>, vector<162x128xbf16>
    %c0_1 = arith.constant 0 : index
    %c0_2 = arith.constant 0 : index
    %1 = vector.load %arg2[%c0_1, %c0_2] : memref<128x64xbf16, #tpu.memory_space<vmem>>, vector<128x64xbf16>
    %cst = arith.constant dense<0.000000e+00> : vector<162x64xf32>
    %2 = tpu.matmul %0, %1, %cst {dimension_numbers = #tpu.dot_dimension_numbers<[1], [0], [0], [1], [0, 0, 1, 1], [], []>} : vector<162x128xbf16>, vector<128x64xbf16>, vector<162x64xf32> -> vector<162x64xf32>
    %3 = arith.truncf %2 : vector<162x64xf32> to vector<162x64xbf16>
    %c0_3 = arith.constant 0 : index
    %c0_4 = arith.constant 0 : index
    %4 = vector.load %arg3[%c0_3, %c0_4] : memref<162x64xbf16, #tpu.memory_space<vmem>>, vector<162x64xbf16>
    tpu.vector_store %arg3[%c0_3, %c0_4], %3 {strides = array<i32>} : memref<162x64xbf16, #tpu.memory_space<vmem>>, vector<162x64xbf16>,
    return
  }
  func.func @transform_0(%arg0: i32) -> (i32, i32) {
    %c0_i32 = arith.constant 0 : i32
    %c0_i32_0 = arith.constant 0 : i32
    return %arg0, %c0_i32 : i32, i32
  }
  func.func @transform_1(%arg0: i32) -> (i32, i32) {
    %c0_i32 = arith.constant 0 : i32
    %c0_i32_0 = arith.constant 0 : i32
    %c0_i32_1 = arith.constant 0 : i32
    return %c0_i32, %c0_i32_0 : i32, i32
  }
  func.func @transform_2(%arg0: i32) -> (i32, i32) {
    %c0_i32 = arith.constant 0 : i32
    %c0_i32_0 = arith.constant 0 : i32
    return %arg0, %c0_i32 : i32, i32
  }
}

module attributes {stable_mosaic.version = 11 : i64} {
  func.func @_bn_stats_kernel(%arg0: i32, %arg1: memref<32x256xbf16, #tpu.memory_space<vmem>>, %arg2: memref<1x256xf32, #tpu.memory_space<vmem>>, %arg3: memref<1x256xf32, #tpu.memory_space<vmem>>) attributes {dimension_semantics = [#tpu.dimension_semantics<arbitrary>], iteration_bounds = array<i64: 1>, scalar_prefetch = 0 : i64, scratch_operands = 0 : i64, tpu.core_type = #tpu.core_type<tc>, window_params = [{transform_indices = @transform_0, window_bounds = array<i64: 32, 256>}, {pipeline_mode = #tpu.pipeline_mode<synchronous>, transform_indices = @transform_1, window_bounds = array<i64: 1, 256>}, {pipeline_mode = #tpu.pipeline_mode<synchronous>, transform_indices = @transform_2, window_bounds = array<i64: 1, 256>}]} {
    %c0_i32 = arith.constant 0 : i32
    %0 = arith.cmpi eq, %arg0, %c0_i32 : i32
    %1 = arith.extui %0 : i1 to i32
    %c0_i32_0 = arith.constant 0 : i32
    %2 = arith.cmpi ne, %1, %c0_i32_0 : i32
    scf.if %2 {
      %cst_11 = arith.constant 0.000000e+00 : f32
      %16 = vector.broadcast %cst_11 : f32 to vector<1x256xf32>
      %c0_12 = arith.constant 0 : index
      %c0_13 = arith.constant 0 : index
      %17 = vector.load %arg2[%c0_12, %c0_13] : memref<1x256xf32, #tpu.memory_space<vmem>>, vector<1x256xf32>
      tpu.vector_store %arg2[%c0_12, %c0_13], %16 {strides = array<i32>} : memref<1x256xf32, #tpu.memory_space<vmem>>, vector<1x256xf32>,
      %cst_14 = arith.constant 0.000000e+00 : f32
      %18 = vector.broadcast %cst_14 : f32 to vector<1x256xf32>
      %c0_15 = arith.constant 0 : index
      %c0_16 = arith.constant 0 : index
      %19 = vector.load %arg3[%c0_15, %c0_16] : memref<1x256xf32, #tpu.memory_space<vmem>>, vector<1x256xf32>
      tpu.vector_store %arg3[%c0_15, %c0_16], %18 {strides = array<i32>} : memref<1x256xf32, #tpu.memory_space<vmem>>, vector<1x256xf32>,
    } else {
    }
    %c0 = arith.constant 0 : index
    %c0_1 = arith.constant 0 : index
    %3 = vector.load %arg1[%c0, %c0_1] : memref<32x256xbf16, #tpu.memory_space<vmem>>, vector<32x256xbf16>
    %4 = arith.extf %3 : vector<32x256xbf16> to vector<32x256xf32>
    %c0_2 = arith.constant 0 : index
    %c0_3 = arith.constant 0 : index
    %5 = vector.load %arg2[%c0_2, %c0_3] : memref<1x256xf32, #tpu.memory_space<vmem>>, vector<1x256xf32>
    %cst = arith.constant dense<0.000000e+00> : vector<256xf32>
    %6 = vector.multi_reduction <add>, %4, %cst [0] : vector<32x256xf32> to vector<256xf32>
    %7 = vector.shape_cast %6 : vector<256xf32> to vector<1x256xf32>
    %8 = arith.addf %5, %7 : vector<1x256xf32>
    %c0_4 = arith.constant 0 : index
    %c0_5 = arith.constant 0 : index
    %9 = vector.load %arg2[%c0_4, %c0_5] : memref<1x256xf32, #tpu.memory_space<vmem>>, vector<1x256xf32>
    tpu.vector_store %arg2[%c0_4, %c0_5], %8 {strides = array<i32>} : memref<1x256xf32, #tpu.memory_space<vmem>>, vector<1x256xf32>,
    %c0_6 = arith.constant 0 : index
    %c0_7 = arith.constant 0 : index
    %10 = vector.load %arg3[%c0_6, %c0_7] : memref<1x256xf32, #tpu.memory_space<vmem>>, vector<1x256xf32>
    %11 = arith.mulf %4, %4 : vector<32x256xf32>
    %cst_8 = arith.constant dense<0.000000e+00> : vector<256xf32>
    %12 = vector.multi_reduction <add>, %11, %cst_8 [0] : vector<32x256xf32> to vector<256xf32>
    %13 = vector.shape_cast %12 : vector<256xf32> to vector<1x256xf32>
    %14 = arith.addf %10, %13 : vector<1x256xf32>
    %c0_9 = arith.constant 0 : index
    %c0_10 = arith.constant 0 : index
    %15 = vector.load %arg3[%c0_9, %c0_10] : memref<1x256xf32, #tpu.memory_space<vmem>>, vector<1x256xf32>
    tpu.vector_store %arg3[%c0_9, %c0_10], %14 {strides = array<i32>} : memref<1x256xf32, #tpu.memory_space<vmem>>, vector<1x256xf32>,
    return
  }
  func.func @transform_0(%arg0: i32) -> (i32, i32) {
    %c0_i32 = arith.constant 0 : i32
    %c0_i32_0 = arith.constant 0 : i32
    return %arg0, %c0_i32 : i32, i32
  }
  func.func @transform_1(%arg0: i32) -> (i32, i32) {
    %c0_i32 = arith.constant 0 : i32
    %c0_i32_0 = arith.constant 0 : i32
    %c0_i32_1 = arith.constant 0 : i32
    return %c0_i32, %c0_i32_0 : i32, i32
  }
  func.func @transform_2(%arg0: i32) -> (i32, i32) {
    %c0_i32 = arith.constant 0 : i32
    %c0_i32_0 = arith.constant 0 : i32
    %c0_i32_1 = arith.constant 0 : i32
    return %c0_i32, %c0_i32_0 : i32, i32
  }
}

module attributes {stable_mosaic.version = 11 : i64} {
  func.func @_matmul_kernel(%arg0: i32, %arg1: memref<578x64xbf16, #tpu.memory_space<vmem>>, %arg2: memref<64x32xbf16, #tpu.memory_space<vmem>>, %arg3: memref<578x32xbf16, #tpu.memory_space<vmem>>) attributes {dimension_semantics = [#tpu.dimension_semantics<parallel>], iteration_bounds = array<i64: 1>, scalar_prefetch = 0 : i64, scratch_operands = 0 : i64, tpu.core_type = #tpu.core_type<tc>, window_params = [{transform_indices = @transform_0, window_bounds = array<i64: 578, 64>}, {pipeline_mode = #tpu.pipeline_mode<synchronous>, transform_indices = @transform_1, window_bounds = array<i64: 64, 32>}, {transform_indices = @transform_2, window_bounds = array<i64: 578, 32>}]} {
    %c0 = arith.constant 0 : index
    %c0_0 = arith.constant 0 : index
    %0 = vector.load %arg1[%c0, %c0_0] : memref<578x64xbf16, #tpu.memory_space<vmem>>, vector<578x64xbf16>
    %c0_1 = arith.constant 0 : index
    %c0_2 = arith.constant 0 : index
    %1 = vector.load %arg2[%c0_1, %c0_2] : memref<64x32xbf16, #tpu.memory_space<vmem>>, vector<64x32xbf16>
    %cst = arith.constant dense<0.000000e+00> : vector<578x32xf32>
    %2 = tpu.matmul %0, %1, %cst {dimension_numbers = #tpu.dot_dimension_numbers<[1], [0], [0], [1], [0, 0, 1, 1], [], []>} : vector<578x64xbf16>, vector<64x32xbf16>, vector<578x32xf32> -> vector<578x32xf32>
    %3 = arith.truncf %2 : vector<578x32xf32> to vector<578x32xbf16>
    %c0_3 = arith.constant 0 : index
    %c0_4 = arith.constant 0 : index
    %4 = vector.load %arg3[%c0_3, %c0_4] : memref<578x32xbf16, #tpu.memory_space<vmem>>, vector<578x32xbf16>
    tpu.vector_store %arg3[%c0_3, %c0_4], %3 {strides = array<i32>} : memref<578x32xbf16, #tpu.memory_space<vmem>>, vector<578x32xbf16>,
    return
  }
  func.func @transform_0(%arg0: i32) -> (i32, i32) {
    %c0_i32 = arith.constant 0 : i32
    %c0_i32_0 = arith.constant 0 : i32
    return %arg0, %c0_i32 : i32, i32
  }
  func.func @transform_1(%arg0: i32) -> (i32, i32) {
    %c0_i32 = arith.constant 0 : i32
    %c0_i32_0 = arith.constant 0 : i32
    %c0_i32_1 = arith.constant 0 : i32
    return %c0_i32, %c0_i32_0 : i32, i32
  }
  func.func @transform_2(%arg0: i32) -> (i32, i32) {
    %c0_i32 = arith.constant 0 : i32
    %c0_i32_0 = arith.constant 0 : i32
    return %arg0, %c0_i32 : i32, i32
  }
}

module attributes {stable_mosaic.version = 11 : i64} {
  func.func @_bn_stats_kernel(%arg0: i32, %arg1: memref<64x256xbf16, #tpu.memory_space<vmem>>, %arg2: memref<1x256xf32, #tpu.memory_space<vmem>>, %arg3: memref<1x256xf32, #tpu.memory_space<vmem>>) attributes {dimension_semantics = [#tpu.dimension_semantics<arbitrary>], iteration_bounds = array<i64: 1>, scalar_prefetch = 0 : i64, scratch_operands = 0 : i64, tpu.core_type = #tpu.core_type<tc>, window_params = [{transform_indices = @transform_0, window_bounds = array<i64: 64, 256>}, {pipeline_mode = #tpu.pipeline_mode<synchronous>, transform_indices = @transform_1, window_bounds = array<i64: 1, 256>}, {pipeline_mode = #tpu.pipeline_mode<synchronous>, transform_indices = @transform_2, window_bounds = array<i64: 1, 256>}]} {
    %c0_i32 = arith.constant 0 : i32
    %0 = arith.cmpi eq, %arg0, %c0_i32 : i32
    %1 = arith.extui %0 : i1 to i32
    %c0_i32_0 = arith.constant 0 : i32
    %2 = arith.cmpi ne, %1, %c0_i32_0 : i32
    scf.if %2 {
      %cst_11 = arith.constant 0.000000e+00 : f32
      %16 = vector.broadcast %cst_11 : f32 to vector<1x256xf32>
      %c0_12 = arith.constant 0 : index
      %c0_13 = arith.constant 0 : index
      %17 = vector.load %arg2[%c0_12, %c0_13] : memref<1x256xf32, #tpu.memory_space<vmem>>, vector<1x256xf32>
      tpu.vector_store %arg2[%c0_12, %c0_13], %16 {strides = array<i32>} : memref<1x256xf32, #tpu.memory_space<vmem>>, vector<1x256xf32>,
      %cst_14 = arith.constant 0.000000e+00 : f32
      %18 = vector.broadcast %cst_14 : f32 to vector<1x256xf32>
      %c0_15 = arith.constant 0 : index
      %c0_16 = arith.constant 0 : index
      %19 = vector.load %arg3[%c0_15, %c0_16] : memref<1x256xf32, #tpu.memory_space<vmem>>, vector<1x256xf32>
      tpu.vector_store %arg3[%c0_15, %c0_16], %18 {strides = array<i32>} : memref<1x256xf32, #tpu.memory_space<vmem>>, vector<1x256xf32>,
    } else {
    }
    %c0 = arith.constant 0 : index
    %c0_1 = arith.constant 0 : index
    %3 = vector.load %arg1[%c0, %c0_1] : memref<64x256xbf16, #tpu.memory_space<vmem>>, vector<64x256xbf16>
    %4 = arith.extf %3 : vector<64x256xbf16> to vector<64x256xf32>
    %c0_2 = arith.constant 0 : index
    %c0_3 = arith.constant 0 : index
    %5 = vector.load %arg2[%c0_2, %c0_3] : memref<1x256xf32, #tpu.memory_space<vmem>>, vector<1x256xf32>
    %cst = arith.constant dense<0.000000e+00> : vector<256xf32>
    %6 = vector.multi_reduction <add>, %4, %cst [0] : vector<64x256xf32> to vector<256xf32>
    %7 = vector.shape_cast %6 : vector<256xf32> to vector<1x256xf32>
    %8 = arith.addf %5, %7 : vector<1x256xf32>
    %c0_4 = arith.constant 0 : index
    %c0_5 = arith.constant 0 : index
    %9 = vector.load %arg2[%c0_4, %c0_5] : memref<1x256xf32, #tpu.memory_space<vmem>>, vector<1x256xf32>
    tpu.vector_store %arg2[%c0_4, %c0_5], %8 {strides = array<i32>} : memref<1x256xf32, #tpu.memory_space<vmem>>, vector<1x256xf32>,
    %c0_6 = arith.constant 0 : index
    %c0_7 = arith.constant 0 : index
    %10 = vector.load %arg3[%c0_6, %c0_7] : memref<1x256xf32, #tpu.memory_space<vmem>>, vector<1x256xf32>
    %11 = arith.mulf %4, %4 : vector<64x256xf32>
    %cst_8 = arith.constant dense<0.000000e+00> : vector<256xf32>
    %12 = vector.multi_reduction <add>, %11, %cst_8 [0] : vector<64x256xf32> to vector<256xf32>
    %13 = vector.shape_cast %12 : vector<256xf32> to vector<1x256xf32>
    %14 = arith.addf %10, %13 : vector<1x256xf32>
    %c0_9 = arith.constant 0 : index
    %c0_10 = arith.constant 0 : index
    %15 = vector.load %arg3[%c0_9, %c0_10] : memref<1x256xf32, #tpu.memory_space<vmem>>, vector<1x256xf32>
    tpu.vector_store %arg3[%c0_9, %c0_10], %14 {strides = array<i32>} : memref<1x256xf32, #tpu.memory_space<vmem>>, vector<1x256xf32>,
    return
  }
  func.func @transform_0(%arg0: i32) -> (i32, i32) {
    %c0_i32 = arith.constant 0 : i32
    %c0_i32_0 = arith.constant 0 : i32
    return %arg0, %c0_i32 : i32, i32
  }
  func.func @transform_1(%arg0: i32) -> (i32, i32) {
    %c0_i32 = arith.constant 0 : i32
    %c0_i32_0 = arith.constant 0 : i32
    %c0_i32_1 = arith.constant 0 : i32
    return %c0_i32, %c0_i32_0 : i32, i32
  }
  func.func @transform_2(%arg0: i32) -> (i32, i32) {
    %c0_i32 = arith.constant 0 : i32
    %c0_i32_0 = arith.constant 0 : i32
    %c0_i32_1 = arith.constant 0 : i32
    return %c0_i32, %c0_i32_0 : i32, i32
  }
}

module attributes {stable_mosaic.version = 11 : i64} {
  func.func @_matmul_kernel(%arg0: i32, %arg1: memref<2178x32xbf16, #tpu.memory_space<vmem>>, %arg2: memref<32x128xbf16, #tpu.memory_space<vmem>>, %arg3: memref<2178x128xf32, #tpu.memory_space<vmem>>) attributes {dimension_semantics = [#tpu.dimension_semantics<parallel>], iteration_bounds = array<i64: 1>, scalar_prefetch = 0 : i64, scratch_operands = 0 : i64, tpu.core_type = #tpu.core_type<tc>, window_params = [{transform_indices = @transform_0, window_bounds = array<i64: 2178, 32>}, {pipeline_mode = #tpu.pipeline_mode<synchronous>, transform_indices = @transform_1, window_bounds = array<i64: 32, 128>}, {transform_indices = @transform_2, window_bounds = array<i64: 2178, 128>}]} {
    %c0 = arith.constant 0 : index
    %c0_0 = arith.constant 0 : index
    %0 = vector.load %arg1[%c0, %c0_0] : memref<2178x32xbf16, #tpu.memory_space<vmem>>, vector<2178x32xbf16>
    %c0_1 = arith.constant 0 : index
    %c0_2 = arith.constant 0 : index
    %1 = vector.load %arg2[%c0_1, %c0_2] : memref<32x128xbf16, #tpu.memory_space<vmem>>, vector<32x128xbf16>
    %cst = arith.constant dense<0.000000e+00> : vector<2178x128xf32>
    %2 = tpu.matmul %0, %1, %cst {dimension_numbers = #tpu.dot_dimension_numbers<[1], [0], [0], [1], [0, 0, 1, 1], [], []>} : vector<2178x32xbf16>, vector<32x128xbf16>, vector<2178x128xf32> -> vector<2178x128xf32>
    %3 = math.tanh %2 : vector<2178x128xf32>
    %c0_3 = arith.constant 0 : index
    %c0_4 = arith.constant 0 : index
    %4 = vector.load %arg3[%c0_3, %c0_4] : memref<2178x128xf32, #tpu.memory_space<vmem>>, vector<2178x128xf32>
    tpu.vector_store %arg3[%c0_3, %c0_4], %3 {strides = array<i32>} : memref<2178x128xf32, #tpu.memory_space<vmem>>, vector<2178x128xf32>,
    return
  }
  func.func @transform_0(%arg0: i32) -> (i32, i32) {
    %c0_i32 = arith.constant 0 : i32
    %c0_i32_0 = arith.constant 0 : i32
    return %arg0, %c0_i32 : i32, i32
  }
  func.func @transform_1(%arg0: i32) -> (i32, i32) {
    %c0_i32 = arith.constant 0 : i32
    %c0_i32_0 = arith.constant 0 : i32
    %c0_i32_1 = arith.constant 0 : i32
    return %c0_i32, %c0_i32_0 : i32, i32
  }
  func.func @transform_2(%arg0: i32) -> (i32, i32) {
    %c0_i32 = arith.constant 0 : i32
    %c0_i32_0 = arith.constant 0 : i32
    return %arg0, %c0_i32 : i32, i32
  }
}

</mosaic_0001>

<llo_original>
// kernel: generator_forward.10
$region0: #{generator_forward.10}
  #allocation0 [shape = 'u32[]', space=smem, size = 0x4, offset = 0x4, fixed_abs, tag = 'smem constant byte address 0x4 - core index']
  #allocation1 [shape = 'u32[144,128]{1,0:T(1,128)}', space=vmem, size = 0x12000, scoped, tag = 'internal scratch']
  %s0 = inlined_call_operand.vmem [shape: bf16[8,256], index: 0, kind: input, shape index: {}]
  %s1 = inlined_call_operand.vmem [shape: f32[1,256], index: 1, kind: output, shape index: {0}]
  %s2 = inlined_call_operand.vmem [shape: f32[1,256], index: 2, kind: output, shape index: {1}]
  %3 = xla_tuple %s1, %s2
  %s4 = sld [smem:[#allocation0]]
  $region26: #{generator_forward.10} parent=0
    _
  %s6 = ssub.s32 1, %s4
  %s7 = scalar_select 0, %s6, %s4
  // Predicated region
  $region2: #{generator_forward.10} parent=0 // pred_check
    _
  $region3: #{generator_forward.10} parent=0 // pred_check_branch
    %9 = sbr.rel (0) target = $region5
  $region4: #{generator_forward.10} parent=0 // pred_region
    _
  $region5: #{generator_forward.10} parent=0 // pred_fallthru
    _
  %p10 = scmp.eq.s32.totalorder 0, 0
  // Predicated region
  $region6: #{generator_forward.10} parent=0 // pred_check
    %p11 = pneg %p10
  $region7: #{generator_forward.10} parent=0 // pred_check_branch
    %13 = sbr.rel (%p11) target = $region9
  $region8: #{generator_forward.10} parent=0 // pred_region
    %v14 = vlaneseq
    %vm15 = vcmp.ge.s32.totalorder %v14, 0
    %vm16 = vcmp.lt.s32.totalorder %v14, 256
    %vm17 = vmand %vm15, %vm16
    %18 = vst.msk [vmem:[%s1] sm:$0x3] %vm17, 0.0
    %19 = vst.msk [vmem:[%s2] sm:$0x3] %vm17, 0.0
  $region9: #{generator_forward.10} parent=0 // pred_fallthru
    _
  %v20 = vld [vmem:[%s0] sm:$0xff]
  %v21 = vunpack.c.l.bf16 %v20
  %v22 = vunpack.c.h.bf16 %v20
  %v23 = vld [vmem:[%s1] sm:$0x3]
  %v24 = vrot.slane %v21, 4
  %v25 = vadd.f32 %v21, %v24
  %v26 = vrot.slane %v25, 2
  %v27 = vadd.f32 %v25, %v26
  %v28 = vrot.slane %v27, 1
  %v29 = vadd.f32 %v27, %v28
  %v30 = vrot.slane %v22, 4
  %v31 = vadd.f32 %v22, %v30
  %v32 = vrot.slane %v31, 2
  %v33 = vadd.f32 %v31, %v32
  %v34 = vrot.slane %v33, 1
  %v35 = vadd.f32 %v33, %v34
  %v38 = vcombine.low %v29, %v35
  %v40 = vunpack.c.l.s4 1966171168
  %v41 = vunpack.c.0.s8 %v40
  %v42 = vlaneseq
  %v43 = vshrl.u32 %v42, 7
  %v44 = vsub.s32 %v41, %v43
  %v45 = vrot.slane %v38, %v44
  %v47 = vunpack.c.l.s4 1966171168
  %v48 = vunpack.c.0.s8 %v47
  %v49 = vlaneseq
  %v50 = vshrl.u32 %v49, 7
  %v51 = vsub.s32 %v48, %v50
  %v52 = vrot.slane %v45, %v51
  %v54 = vadd.f32 %v23, %v52
  %v55 = vlaneseq
  %vm56 = vcmp.ge.s32.totalorder %v55, 0
  %vm57 = vcmp.lt.s32.totalorder %v55, 256
  %vm58 = vmand %vm56, %vm57
  %59 = vst.msk [vmem:[%s1] sm:$0x3] %vm58, %v54
  %v60 = vld [vmem:[%s2] sm:$0x3]
  %v61 = vmul.f32 %v21, %v21
  %v62 = vmul.f32 %v22, %v22
  %v63 = vrot.slane %v61, 4
  %v64 = vadd.f32 %v61, %v63
  %v65 = vrot.slane %v64, 2
  %v66 = vadd.f32 %v64, %v65
  %v67 = vrot.slane %v66, 1
  %v68 = vadd.f32 %v66, %v67
  %v69 = vrot.slane %v62, 4
  %v70 = vadd.f32 %v62, %v69
  %v71 = vrot.slane %v70, 2
  %v72 = vadd.f32 %v70, %v71
  %v73 = vrot.slane %v72, 1
  %v74 = vadd.f32 %v72, %v73
  %v77 = vcombine.low %v68, %v74
  %v79 = vunpack.c.l.s4 1966171168
  %v80 = vunpack.c.0.s8 %v79
  %v81 = vlaneseq
  %v82 = vshrl.u32 %v81, 7
  %v83 = vsub.s32 %v80, %v82
  %v84 = vrot.slane %v77, %v83
  %v86 = vunpack.c.l.s4 1966171168
  %v87 = vunpack.c.0.s8 %v86
  %v88 = vlaneseq
  %v89 = vshrl.u32 %v88, 7
  %v90 = vsub.s32 %v87, %v89
  %v91 = vrot.slane %v84, %v90
  %v93 = vadd.f32 %v60, %v91
  %94 = vst.msk [vmem:[%s2] sm:$0x3] %vm58, %v93
  // Predicated region
  $region10: #{generator_forward.10} parent=0 // pred_check
    _
  $region11: #{generator_forward.10} parent=0 // pred_check_branch
    %96 = sbr.rel (0) target = $region13
  $region12: #{generator_forward.10} parent=0 // pred_region
    _
  $region13: #{generator_forward.10} parent=0 // pred_fallthru
    _
  // Predicated region
  $region14: #{generator_forward.10} parent=0 // pred_check
    _
  $region15: #{generator_forward.10} parent=0 // pred_check_branch
    %98 = sbr.rel (0) target = $region17
  $region16: #{generator_forward.10} parent=0 // pred_region
    _
  $region17: #{generator_forward.10} parent=0 // pred_fallthru
    _
  // Predicated region
  $region18: #{generator_forward.10} parent=0 // pred_check
    _
  $region19: #{generator_forward.10} parent=0 // pred_check_branch
    %100 = sbr.rel (0) target = $region21
  $region20: #{generator_forward.10} parent=0 // pred_region
    _
  $region21: #{generator_forward.10} parent=0 // pred_fallthru
    _
  // Predicated region
  $region22: #{generator_forward.10} parent=0 // pred_check
    _
  $region23: #{generator_forward.10} parent=0 // pred_check_branch
    %102 = sbr.rel (0) target = $region25
  $region24: #{generator_forward.10} parent=0 // pred_region
    _
  $region25: #{generator_forward.10} parent=0 // pred_fallthru
    _

// kernel: generator_forward.9
$region0: #{generator_forward.9}
  #allocation0 [shape = 'u32[]', space=smem, size = 0x4, offset = 0x4, fixed_abs, tag = 'smem constant byte address 0x4 - core index']
  #allocation1 [shape = 'u32[144,128]{1,0:T(1,128)}', space=vmem, size = 0x12000, scoped, tag = 'internal scratch']
  %s0 = inlined_call_operand.vmem [shape: bf16[2,32], index: 0, kind: input, shape index: {}]
  %s1 = inlined_call_operand.vmem [shape: bf16[32,1024], index: 1, kind: input, shape index: {}]
  %s2 = inlined_call_operand.vmem [shape: bf16[2,1024], index: 2, kind: output, shape index: {}]
  %s3 = sld [smem:[#allocation0]]
  $region18: #{generator_forward.9} parent=0
    _
  %s5 = ssub.s32 1, %s3
  %s6 = scalar_select 0, %s5, %s3
  // Predicated region
  $region2: #{generator_forward.9} parent=0 // pred_check
    _
  $region3: #{generator_forward.9} parent=0 // pred_check_branch
    %8 = sbr.rel (0) target = $region5
  $region4: #{generator_forward.9} parent=0 // pred_region
    _
  $region5: #{generator_forward.9} parent=0 // pred_fallthru
    _
  // Predicated region
  $region6: #{generator_forward.9} parent=0 // pred_check
    _
  $region7: #{generator_forward.9} parent=0 // pred_check_branch
    %10 = sbr.rel (0) target = $region9
  $region8: #{generator_forward.9} parent=0 // pred_region
    _
  $region9: #{generator_forward.9} parent=0 // pred_fallthru
    _
  %v12 = vld [vmem:[%s0] sm:$0x1]
  %v13 = vld [vmem:[%s1] sm:$0xff]
  %v14 = vld [vmem:[%s1 + $0x8] sm:$0xff]
  %v15 = vld [vmem:[%s1 + $0x10] sm:$0xff]
  %v16 = vld [vmem:[%s1 + $0x18] sm:$0xff]
  %v17 = vld [vmem:[%s1 + $0x20] sm:$0xff]
  %v18 = vld [vmem:[%s1 + $0x28] sm:$0xff]
  %v19 = vld [vmem:[%s1 + $0x30] sm:$0xff]
  %v20 = vld [vmem:[%s1 + $0x38] sm:$0xff]
  %v21 = vld [vmem:[%s1 + $0x40] sm:$0xff]
  %v22 = vld [vmem:[%s1 + $0x48] sm:$0xff]
  %v23 = vld [vmem:[%s1 + $0x50] sm:$0xff]
  %v24 = vld [vmem:[%s1 + $0x58] sm:$0xff]
  %v25 = vld [vmem:[%s1 + $0x60] sm:$0xff]
  %v26 = vld [vmem:[%s1 + $0x68] sm:$0xff]
  %v27 = vld [vmem:[%s1 + $0x70] sm:$0xff]
  %v28 = vld [vmem:[%s1 + $0x78] sm:$0xff]
  %v45 = vunpack.c.l.b16 %v13
  %v46 = vunpack.c.h.b16 %v13
  %v47 = vunpack.c.l.b16 %v14
  %v48 = vunpack.c.h.b16 %v14
  %v49 = vunpack.c.l.b16 %v15
  %v50 = vunpack.c.h.b16 %v15
  %v51 = vunpack.c.l.b16 %v16
  %v52 = vunpack.c.h.b16 %v16
  %v53 = vunpack.c.l.b16 %v17
  %v54 = vunpack.c.h.b16 %v17
  %v55 = vunpack.c.l.b16 %v18
  %v56 = vunpack.c.h.b16 %v18
  %v57 = vunpack.c.l.b16 %v19
  %v58 = vunpack.c.h.b16 %v19
  %v59 = vunpack.c.l.b16 %v20
  %v60 = vunpack.c.h.b16 %v20
  %v61 = vunpack.c.l.b16 %v21
  %v62 = vunpack.c.h.b16 %v21
  %v63 = vunpack.c.l.b16 %v22
  %v64 = vunpack.c.h.b16 %v22
  %v65 = vunpack.c.l.b16 %v23
  %v66 = vunpack.c.h.b16 %v23
  %v67 = vunpack.c.l.b16 %v24
  %v68 = vunpack.c.h.b16 %v24
  %v69 = vunpack.c.l.b16 %v25
  %v70 = vunpack.c.h.b16 %v25
  %v71 = vunpack.c.l.b16 %v26
  %v72 = vunpack.c.h.b16 %v26
  %v73 = vunpack.c.l.b16 %v27
  %v74 = vunpack.c.h.b16 %v27
  %v75 = vunpack.c.l.b16 %v28
  %v76 = vunpack.c.h.b16 %v28
  %v77 = vpack.c.b16 %v53, %v45
  %v78 = vpack.c.b16 %v54, %v46
  %v79 = vpack.c.b16 %v55, %v47
  %v80 = vpack.c.b16 %v56, %v48
  %v81 = vpack.c.b16 %v57, %v49
  %v82 = vpack.c.b16 %v58, %v50
  %v83 = vpack.c.b16 %v59, %v51
  %v84 = vpack.c.b16 %v60, %v52
  %v85 = vpack.c.b16 %v69, %v61
  %v86 = vpack.c.b16 %v70, %v62
  %v87 = vpack.c.b16 %v71, %v63
  %v88 = vpack.c.b16 %v72, %v64
  %v89 = vpack.c.b16 %v73, %v65
  %v90 = vpack.c.b16 %v74, %v66
  %v91 = vpack.c.b16 %v75, %v67
  %v92 = vpack.c.b16 %v76, %v68
  %vm109 = vcmask 261120
  %v111 = vsel %vm109, %v12, 0
  %113 = vmatprep.subr.bf16.mxu0 0
  %114 = vmatpush1.bf16.msra.mxu0 0
  %115 = vmatprep.subr.bf16.mxu0 0
  %116 = vmatpush1.bf16.msra.mxu0 0
  %117 = vmatprep.subr.bf16.mxu0 0
  %118 = vmatpush1.bf16.msra.mxu0 0
  %119 = vmatprep.subr.bf16.mxu0 0
  %120 = vmatpush1.bf16.msra.mxu0 0
  %121 = vmatprep.subr.bf16.mxu0 0
  %122 = vmatpush1.bf16.msra.mxu0 0
  %123 = vmatprep.subr.bf16.mxu0 0
  %124 = vmatpush1.bf16.msra.mxu0 0
  %125 = vmatprep.subr.bf16.mxu0 %v86
  %126 = vmatpush1.bf16.msra.mxu0 %v85
  %127 = vmatprep.subr.bf16.mxu0 %v78
  %128 = vmatpush1.bf16.msra.mxu0 %v77
  %129 = vmatprep.subr.bf16.mxu0 0
  %130 = vmatpush2.bf16.msra.mxu0 0
  %131 = vmatprep.subr.bf16.mxu0 0
  %132 = vmatpush2.bf16.msra.mxu0 0
  %133 = vmatprep.subr.bf16.mxu0 0
  %134 = vmatpush2.bf16.msra.mxu0 0
  %135 = vmatprep.subr.bf16.mxu0 0
  %136 = vmatpush2.bf16.msra.mxu0 0
  %137 = vmatprep.subr.bf16.mxu0 0
  %138 = vmatpush2.bf16.msra.mxu0 0
  %139 = vmatprep.subr.bf16.mxu0 0
  %140 = vmatpush2.bf16.msra.mxu0 0
  %141 = vmatprep.subr.bf16.mxu0 0
  %142 = vmatpush2.bf16.msra.mxu0 0
  %143 = vmatprep.subr.bf16.mxu0 0
  %144 = vmatpush2.bf16.msra.mxu0 0
  %145 = vmatprep.mubr.bf16.mxu0 0
  %146 = vmatmul.mubr.bf16.gmra.mxu0 %v111
  %v147 = vpop.f32.mrf.mxu0
  %v148 = vadd.f32 0.0, %v147
  %v149 = vpop.f32.mrf.mxu0
  %v150 = vadd.f32 0.0, %v149
  %v151 = vpop.f32.mrf.mxu0
  %v152 = vpop.f32.mrf.mxu0
  %153 = vdwg.mxu0
  %154 = vmatprep.subr.bf16.mxu0 0
  %155 = vmatpush1.bf16.msra.mxu0 0
  %156 = vmatprep.subr.bf16.mxu0 0
  %157 = vmatpush1.bf16.msra.mxu0 0
  %158 = vmatprep.subr.bf16.mxu0 0
  %159 = vmatpush1.bf16.msra.mxu0 0
  %160 = vmatprep.subr.bf16.mxu0 0
  %161 = vmatpush1.bf16.msra.mxu0 0
  %162 = vmatprep.subr.bf16.mxu0 0
  %163 = vmatpush1.bf16.msra.mxu0 0
  %164 = vmatprep.subr.bf16.mxu0 0
  %165 = vmatpush1.bf16.msra.mxu0 0
  %166 = vmatprep.subr.bf16.mxu0 %v88
  %167 = vmatpush1.bf16.msra.mxu0 %v87
  %168 = vmatprep.subr.bf16.mxu0 %v80
  %169 = vmatpush1.bf16.msra.mxu0 %v79
  %170 = vmatprep.subr.bf16.mxu0 0
  %171 = vmatpush2.bf16.msra.mxu0 0
  %172 = vmatprep.subr.bf16.mxu0 0
  %173 = vmatpush2.bf16.msra.mxu0 0
  %174 = vmatprep.subr.bf16.mxu0 0
  %175 = vmatpush2.bf16.msra.mxu0 0
  %176 = vmatprep.subr.bf16.mxu0 0
  %177 = vmatpush2.bf16.msra.mxu0 0
  %178 = vmatprep.subr.bf16.mxu0 0
  %179 = vmatpush2.bf16.msra.mxu0 0
  %180 = vmatprep.subr.bf16.mxu0 0
  %181 = vmatpush2.bf16.msra.mxu0 0
  %182 = vmatprep.subr.bf16.mxu0 0
  %183 = vmatpush2.bf16.msra.mxu0 0
  %184 = vmatprep.subr.bf16.mxu0 0
  %185 = vmatpush2.bf16.msra.mxu0 0
  %186 = vmatprep.mubr.bf16.mxu0 0
  %187 = vmatmul.mubr.bf16.gmra.mxu0 %v111
  %v188 = vpop.f32.mrf.mxu0
  %v189 = vadd.f32 0.0, %v188
  %v190 = vpop.f32.mrf.mxu0
  %v191 = vadd.f32 0.0, %v190
  %v192 = vpop.f32.mrf.mxu0
  %v193 = vpop.f32.mrf.mxu0
  %194 = vdwg.mxu0
  %195 = vmatprep.subr.bf16.mxu0 0
  %196 = vmatpush1.bf16.msra.mxu0 0
  %197 = vmatprep.subr.bf16.mxu0 0
  %198 = vmatpush1.bf16.msra.mxu0 0
  %199 = vmatprep.subr.bf16.mxu0 0
  %200 = vmatpush1.bf16.msra.mxu0 0
  %201 = vmatprep.subr.bf16.mxu0 0
  %202 = vmatpush1.bf16.msra.mxu0 0
  %203 = vmatprep.subr.bf16.mxu0 0
  %204 = vmatpush1.bf16.msra.mxu0 0
  %205 = vmatprep.subr.bf16.mxu0 0
  %206 = vmatpush1.bf16.msra.mxu0 0
  %207 = vmatprep.subr.bf16.mxu0 %v90
  %208 = vmatpush1.bf16.msra.mxu0 %v89
  %209 = vmatprep.subr.bf16.mxu0 %v82
  %210 = vmatpush1.bf16.msra.mxu0 %v81
  %211 = vmatprep.subr.bf16.mxu0 0
  %212 = vmatpush2.bf16.msra.mxu0 0
  %213 = vmatprep.subr.bf16.mxu0 0
  %214 = vmatpush2.bf16.msra.mxu0 0
  %215 = vmatprep.subr.bf16.mxu0 0
  %216 = vmatpush2.bf16.msra.mxu0 0
  %217 = vmatprep.subr.bf16.mxu0 0
  %218 = vmatpush2.bf16.msra.mxu0 0
  %219 = vmatprep.subr.bf16.mxu0 0
  %220 = vmatpush2.bf16.msra.mxu0 0
  %221 = vmatprep.subr.bf16.mxu0 0
  %222 = vmatpush2.bf16.msra.mxu0 0
  %223 = vmatprep.subr.bf16.mxu0 0
  %224 = vmatpush2.bf16.msra.mxu0 0
  %225 = vmatprep.subr.bf16.mxu0 0
  %226 = vmatpush2.bf16.msra.mxu0 0
  %227 = vmatprep.mubr.bf16.mxu0 0
  %228 = vmatmul.mubr.bf16.gmra.mxu0 %v111
  %v229 = vpop.f32.mrf.mxu0
  %v230 = vadd.f32 0.0, %v229
  %v231 = vpop.f32.mrf.mxu0
  %v232 = vadd.f32 0.0, %v231
  %v233 = vpop.f32.mrf.mxu0
  %v234 = vpop.f32.mrf.mxu0
  %235 = vdwg.mxu0
  %236 = vmatprep.subr.bf16.mxu0 0
  %237 = vmatpush1.bf16.msra.mxu0 0
  %238 = vmatprep.subr.bf16.mxu0 0
  %239 = vmatpush1.bf16.msra.mxu0 0
  %240 = vmatprep.subr.bf16.mxu0 0
  %241 = vmatpush1.bf16.msra.mxu0 0
  %242 = vmatprep.subr.bf16.mxu0 0
  %243 = vmatpush1.bf16.msra.mxu0 0
  %244 = vmatprep.subr.bf16.mxu0 0
  %245 = vmatpush1.bf16.msra.mxu0 0
  %246 = vmatprep.subr.bf16.mxu0 0
  %247 = vmatpush1.bf16.msra.mxu0 0
  %248 = vmatprep.subr.bf16.mxu0 %v92
  %249 = vmatpush1.bf16.msra.mxu0 %v91
  %250 = vmatprep.subr.bf16.mxu0 %v84
  %251 = vmatpush1.bf16.msra.mxu0 %v83
  %252 = vmatprep.subr.bf16.mxu0 0
  %253 = vmatpush2.bf16.msra.mxu0 0
  %254 = vmatprep.subr.bf16.mxu0 0
  %255 = vmatpush2.bf16.msra.mxu0 0
  %256 = vmatprep.subr.bf16.mxu0 0
  %257 = vmatpush2.bf16.msra.mxu0 0
  %258 = vmatprep.subr.bf16.mxu0 0
  %259 = vmatpush2.bf16.msra.mxu0 0
  %260 = vmatprep.subr.bf16.mxu0 0
  %261 = vmatpush2.bf16.msra.mxu0 0
  %262 = vmatprep.subr.bf16.mxu0 0
  %263 = vmatpush2.bf16.msra.mxu0 0
  %264 = vmatprep.subr.bf16.mxu0 0
  %265 = vmatpush2.bf16.msra.mxu0 0
  %266 = vmatprep.subr.bf16.mxu0 0
  %267 = vmatpush2.bf16.msra.mxu0 0
  %268 = vmatprep.mubr.bf16.mxu0 0
  %269 = vmatmul.mubr.bf16.gmra.mxu0 %v111
  %v270 = vpop.f32.mrf.mxu0
  %v271 = vadd.f32 0.0, %v270
  %v272 = vpop.f32.mrf.mxu0
  %v273 = vadd.f32 0.0, %v272
  %v274 = vpop.f32.mrf.mxu0
  %v275 = vpop.f32.mrf.mxu0
  %276 = vdwg.mxu0
  %v277 = vpack.c.bf16 %v148, %v148
  %v278 = vpack.c.bf16 %v150, %v150
  %v279 = vpack.c.bf16 %v189, %v189
  %v280 = vpack.c.bf16 %v191, %v191
  %v281 = vpack.c.bf16 %v230, %v230
  %v282 = vpack.c.bf16 %v232, %v232
  %v283 = vpack.c.bf16 %v271, %v271
  %v284 = vpack.c.bf16 %v273, %v273
  %v293 = vcombine.low %v277, %v278
  %v294 = vcombine.low %v279, %v280
  %v295 = vcombine.low %v281, %v282
  %v296 = vcombine.low %v283, %v284
  %v298 = vunpack.c.l.s4 1966171168
  %v299 = vunpack.c.0.s8 %v298
  %v300 = vlaneseq
  %v301 = vshrl.u32 %v300, 7
  %v302 = vsub.s32 %v299, %v301
  %v303 = vrot.slane %v293, %v302
  %v305 = vunpack.c.l.s4 1966171168
  %v306 = vunpack.c.0.s8 %v305
  %v307 = vlaneseq
  %v308 = vshrl.u32 %v307, 7
  %v309 = vsub.s32 %v306, %v308
  %v310 = vrot.slane %v294, %v309
  %v312 = vunpack.c.l.s4 1966171168
  %v313 = vunpack.c.0.s8 %v312
  %v314 = vlaneseq
  %v315 = vshrl.u32 %v314, 7
  %v316 = vsub.s32 %v313, %v315
  %v317 = vrot.slane %v295, %v316
  %v319 = vunpack.c.l.s4 1966171168
  %v320 = vunpack.c.0.s8 %v319
  %v321 = vlaneseq
  %v322 = vshrl.u32 %v321, 7
  %v323 = vsub.s32 %v320, %v322
  %v324 = vrot.slane %v296, %v323
  %v325 = vcombine.low %v303, %v310
  %v326 = vcombine.low %v317, %v324
  %v328 = vunpack.c.l.s4 1966171168
  %v329 = vunpack.c.0.s8 %v328
  %v330 = vlaneseq
  %v331 = vshrl.u32 %v330, 7
  %v332 = vsub.s32 %v329, %v331
  %v333 = vrot.slane %v325, %v332
  %v335 = vunpack.c.l.s4 1966171168
  %v336 = vunpack.c.0.s8 %v335
  %v337 = vlaneseq
  %v338 = vshrl.u32 %v337, 7
  %v339 = vsub.s32 %v336, %v338
  %v340 = vrot.slane %v326, %v339
  %v341 = vcombine.low %v333, %v340
  %343 = vst [vmem:[%s2] sm:$0xff] %v341
  // Predicated region
  $region10: #{generator_forward.9} parent=0 // pred_check
    _
  $region11: #{generator_forward.9} parent=0 // pred_check_branch
    %345 = sbr.rel (0) target = $region13
  $region12: #{generator_forward.9} parent=0 // pred_region
    _
  $region13: #{generator_forward.9} parent=0 // pred_fallthru
    _
  // Predicated region
  $region14: #{generator_forward.9} parent=0 // pred_check
    _
  $region15: #{generator_forward.9} parent=0 // pred_check_branch
    %347 = sbr.rel (0) target = $region17
  $region16: #{generator_forward.9} parent=0 // pred_region
    _
  $region17: #{generator_forward.9} parent=0 // pred_fallthru
    _

// kernel: generator_forward.11
$region0: #{generator_forward.11}
  #allocation0 [shape = 'u32[]', space=smem, size = 0x4, offset = 0x4, fixed_abs, tag = 'smem constant byte address 0x4 - core index']
  #allocation1 [shape = 'u32[144,128]{1,0:T(1,128)}', space=vmem, size = 0x12000, scoped, tag = 'internal scratch']
  %s0 = inlined_call_operand.vmem [shape: bf16[50,256], index: 0, kind: input, shape index: {}]
  %s1 = inlined_call_operand.vmem [shape: bf16[256,128], index: 1, kind: input, shape index: {}]
  %s2 = inlined_call_operand.vmem [shape: bf16[50,128], index: 2, kind: output, shape index: {}]
  %s3 = sld [smem:[#allocation0]]
  $region18: #{generator_forward.11} parent=0
    _
  %s5 = ssub.s32 1, %s3
  %s6 = scalar_select 0, %s5, %s3
  // Predicated region
  $region2: #{generator_forward.11} parent=0 // pred_check
    _
  $region3: #{generator_forward.11} parent=0 // pred_check_branch
    %8 = sbr.rel (0) target = $region5
  $region4: #{generator_forward.11} parent=0 // pred_region
    _
  $region5: #{generator_forward.11} parent=0 // pred_fallthru
    _
  // Predicated region
  $region6: #{generator_forward.11} parent=0 // pred_check
    _
  $region7: #{generator_forward.11} parent=0 // pred_check_branch
    %10 = sbr.rel (0) target = $region9
  $region8: #{generator_forward.11} parent=0 // pred_region
    _
  $region9: #{generator_forward.11} parent=0 // pred_fallthru
    _
  %v12 = vld [vmem:[%s0] sm:$0xff]
  %v13 = vld [vmem:[%s0 + $0x8] sm:$0xff]
  %v14 = vld [vmem:[%s0 + $0x10] sm:$0xff]
  %v15 = vld [vmem:[%s0 + $0x18] sm:$0xff]
  %v16 = vld [vmem:[%s0 + $0x20] sm:$0xff]
  %v17 = vld [vmem:[%s0 + $0x28] sm:$0xff]
  %v18 = vld [vmem:[%s0 + $0x30] sm:$0x11]
  %v19 = vld [vmem:[%s1] sm:$0xf]
  %v20 = vld [vmem:[%s1 + $0x4] sm:$0xf]
  %v21 = vld [vmem:[%s1 + $0x8] sm:$0xf]
  %v22 = vld [vmem:[%s1 + $0xc] sm:$0xf]
  %v23 = vld [vmem:[%s1 + $0x10] sm:$0xf]
  %v24 = vld [vmem:[%s1 + $0x14] sm:$0xf]
  %v25 = vld [vmem:[%s1 + $0x18] sm:$0xf]
  %v26 = vld [vmem:[%s1 + $0x1c] sm:$0xf]
  %v27 = vld [vmem:[%s1 + $0x20] sm:$0xf]
  %v28 = vld [vmem:[%s1 + $0x24] sm:$0xf]
  %v29 = vld [vmem:[%s1 + $0x28] sm:$0xf]
  %v30 = vld [vmem:[%s1 + $0x2c] sm:$0xf]
  %v31 = vld [vmem:[%s1 + $0x30] sm:$0xf]
  %v32 = vld [vmem:[%s1 + $0x34] sm:$0xf]
  %v33 = vld [vmem:[%s1 + $0x38] sm:$0xf]
  %v34 = vld [vmem:[%s1 + $0x3c] sm:$0xf]
  %v35 = vld [vmem:[%s1 + $0x40] sm:$0xf]
  %v36 = vld [vmem:[%s1 + $0x44] sm:$0xf]
  %v37 = vld [vmem:[%s1 + $0x48] sm:$0xf]
  %v38 = vld [vmem:[%s1 + $0x4c] sm:$0xf]
  %v39 = vld [vmem:[%s1 + $0x50] sm:$0xf]
  %v40 = vld [vmem:[%s1 + $0x54] sm:$0xf]
  %v41 = vld [vmem:[%s1 + $0x58] sm:$0xf]
  %v42 = vld [vmem:[%s1 + $0x5c] sm:$0xf]
  %v43 = vld [vmem:[%s1 + $0x60] sm:$0xf]
  %v44 = vld [vmem:[%s1 + $0x64] sm:$0xf]
  %v45 = vld [vmem:[%s1 + $0x68] sm:$0xf]
  %v46 = vld [vmem:[%s1 + $0x6c] sm:$0xf]
  %v47 = vld [vmem:[%s1 + $0x70] sm:$0xf]
  %v48 = vld [vmem:[%s1 + $0x74] sm:$0xf]
  %v49 = vld [vmem:[%s1 + $0x78] sm:$0xf]
  %v50 = vld [vmem:[%s1 + $0x7c] sm:$0xf]
  %v58 = vunpack.c.l.b16 %v12
  %v59 = vunpack.c.h.b16 %v12
  %v60 = vunpack.c.l.b16 %v13
  %v61 = vunpack.c.h.b16 %v13
  %v62 = vunpack.c.l.b16 %v14
  %v63 = vunpack.c.h.b16 %v14
  %v64 = vunpack.c.l.b16 %v15
  %v65 = vunpack.c.h.b16 %v15
  %v66 = vunpack.c.l.b16 %v16
  %v67 = vunpack.c.h.b16 %v16
  %v68 = vunpack.c.l.b16 %v17
  %v69 = vunpack.c.h.b16 %v17
  %v70 = vunpack.c.l.b16 %v18
  %v71 = vunpack.c.h.b16 %v18
  %v72 = vpack.c.b16 %v60, %v58
  %v73 = vpack.c.b16 %v61, %v59
  %v74 = vpack.c.b16 %v64, %v62
  %v75 = vpack.c.b16 %v65, %v63
  %v76 = vpack.c.b16 %v68, %v66
  %v77 = vpack.c.b16 %v69, %v67
  %v78 = vpack.c.b16 %v70, %v70
  %v79 = vpack.c.b16 %v71, %v71
  %v120 = vunpack.c.l.b16 %v19
  %v121 = vunpack.c.l.b16 %v20
  %v122 = vunpack.c.l.b16 %v21
  %v123 = vunpack.c.l.b16 %v22
  %v124 = vunpack.c.l.b16 %v23
  %v125 = vunpack.c.l.b16 %v24
  %v126 = vunpack.c.l.b16 %v25
  %v127 = vunpack.c.l.b16 %v26
  %v128 = vunpack.c.l.b16 %v27
  %v129 = vunpack.c.l.b16 %v28
  %v130 = vunpack.c.l.b16 %v29
  %v131 = vunpack.c.l.b16 %v30
  %v132 = vunpack.c.l.b16 %v31
  %v133 = vunpack.c.l.b16 %v32
  %v134 = vunpack.c.l.b16 %v33
  %v135 = vunpack.c.l.b16 %v34
  %v136 = vunpack.c.l.b16 %v35
  %v137 = vunpack.c.l.b16 %v36
  %v138 = vunpack.c.l.b16 %v37
  %v139 = vunpack.c.l.b16 %v38
  %v140 = vunpack.c.l.b16 %v39
  %v141 = vunpack.c.l.b16 %v40
  %v142 = vunpack.c.l.b16 %v41
  %v143 = vunpack.c.l.b16 %v42
  %v144 = vunpack.c.l.b16 %v43
  %v145 = vunpack.c.l.b16 %v44
  %v146 = vunpack.c.l.b16 %v45
  %v147 = vunpack.c.l.b16 %v46
  %v148 = vunpack.c.l.b16 %v47
  %v149 = vunpack.c.l.b16 %v48
  %v150 = vunpack.c.l.b16 %v49
  %v151 = vunpack.c.l.b16 %v50
  %v152 = vpack.c.b16 %v121, %v120
  %v153 = vpack.c.b16 %v123, %v122
  %v154 = vpack.c.b16 %v125, %v124
  %v155 = vpack.c.b16 %v127, %v126
  %v156 = vpack.c.b16 %v129, %v128
  %v157 = vpack.c.b16 %v131, %v130
  %v158 = vpack.c.b16 %v133, %v132
  %v159 = vpack.c.b16 %v135, %v134
  %v160 = vpack.c.b16 %v137, %v136
  %v161 = vpack.c.b16 %v139, %v138
  %v162 = vpack.c.b16 %v141, %v140
  %v163 = vpack.c.b16 %v143, %v142
  %v164 = vpack.c.b16 %v145, %v144
  %v165 = vpack.c.b16 %v147, %v146
  %v166 = vpack.c.b16 %v149, %v148
  %v167 = vpack.c.b16 %v151, %v150
  %184 = vmatprep.subr.bf16.mxu0 0
  %185 = vmatpush1.bf16.msra.mxu0 %v159
  %186 = vmatprep.subr.bf16.mxu0 0
  %187 = vmatpush1.bf16.msra.mxu0 %v158
  %188 = vmatprep.subr.bf16.mxu0 0
  %189 = vmatpush1.bf16.msra.mxu0 %v157
  %190 = vmatprep.subr.bf16.mxu0 0
  %191 = vmatpush1.bf16.msra.mxu0 %v156
  %192 = vmatprep.subr.bf16.mxu0 0
  %193 = vmatpush1.bf16.msra.mxu0 %v155
  %194 = vmatprep.subr.bf16.mxu0 0
  %195 = vmatpush1.bf16.msra.mxu0 %v154
  %196 = vmatprep.subr.bf16.mxu0 0
  %197 = vmatpush1.bf16.msra.mxu0 %v153
  %198 = vmatprep.subr.bf16.mxu0 0
  %199 = vmatpush1.bf16.msra.mxu0 %v152
  %200 = vmatprep.subr.bf16.mxu0 0
  %201 = vmatpush2.bf16.msra.mxu0 %v167
  %202 = vmatprep.subr.bf16.mxu0 0
  %203 = vmatpush2.bf16.msra.mxu0 %v166
  %204 = vmatprep.subr.bf16.mxu0 0
  %205 = vmatpush2.bf16.msra.mxu0 %v165
  %206 = vmatprep.subr.bf16.mxu0 0
  %207 = vmatpush2.bf16.msra.mxu0 %v164
  %208 = vmatprep.subr.bf16.mxu0 0
  %209 = vmatpush2.bf16.msra.mxu0 %v163
  %210 = vmatprep.subr.bf16.mxu0 0
  %211 = vmatpush2.bf16.msra.mxu0 %v162
  %212 = vmatprep.subr.bf16.mxu0 0
  %213 = vmatpush2.bf16.msra.mxu0 %v161
  %214 = vmatprep.subr.bf16.mxu0 0
  %215 = vmatpush2.bf16.msra.mxu0 %v160
  %216 = vmatprep.mubr.bf16.mxu0 %v73
  %217 = vmatmul.mubr.bf16.gmra.mxu0 %v72
  %v218 = vpop.f32.mrf.mxu0
  %v219 = vadd.f32 0.0, %v218
  %v220 = vpop.f32.mrf.mxu0
  %v221 = vpop.f32.mrf.mxu0
  %v222 = vadd.f32 0.0, %v221
  %v223 = vpop.f32.mrf.mxu0
  %224 = vmatprep.mubr.bf16.mxu0 %v75
  %225 = vmatmul.mubr.bf16.gmra.mxu0 %v74
  %v226 = vpop.f32.mrf.mxu0
  %v227 = vadd.f32 0.0, %v226
  %v228 = vpop.f32.mrf.mxu0
  %v229 = vpop.f32.mrf.mxu0
  %v230 = vadd.f32 0.0, %v229
  %v231 = vpop.f32.mrf.mxu0
  %232 = vmatprep.mubr.bf16.mxu0 %v77
  %233 = vmatmul.mubr.bf16.gmra.mxu0 %v76
  %v234 = vpop.f32.mrf.mxu0
  %v235 = vadd.f32 0.0, %v234
  %v236 = vpop.f32.mrf.mxu0
  %v237 = vpop.f32.mrf.mxu0
  %v238 = vadd.f32 0.0, %v237
  %v239 = vpop.f32.mrf.mxu0
  %240 = vmatprep.mubr.bf16.mxu0 %v79
  %241 = vmatmul.mubr.bf16.gmra.mxu0 %v78
  %v242 = vpop.f32.mrf.mxu0
  %v243 = vadd.f32 0.0, %v242
  %v244 = vpop.f32.mrf.mxu0
  %v245 = vpop.f32.mrf.mxu0
  %v246 = vpop.f32.mrf.mxu0
  %247 = vdwg.mxu0
  %v248 = vpack.c.bf16 %v222, %v219
  %v249 = vpack.c.bf16 %v230, %v227
  %v250 = vpack.c.bf16 %v238, %v235
  %v251 = vpack.c.bf16 %v243, %v243
  %v256 = vunpack.c.l.b16 %v248
  %v257 = vunpack.c.h.b16 %v248
  %v258 = vunpack.c.l.b16 %v249
  %v259 = vunpack.c.h.b16 %v249
  %v260 = vunpack.c.l.b16 %v250
  %v261 = vunpack.c.h.b16 %v250
  %v262 = vunpack.c.l.b16 %v251
  %v263 = vpack.c.b16 %v256, %v256
  %v264 = vpack.c.b16 %v257, %v257
  %v265 = vpack.c.b16 %v258, %v258
  %v266 = vpack.c.b16 %v259, %v259
  %v267 = vpack.c.b16 %v260, %v260
  %v268 = vpack.c.b16 %v261, %v261
  %v269 = vpack.c.b16 %v262, %v262
  %277 = vst [vmem:[%s2] sm:$0xf] %v263
  %278 = vst [vmem:[%s2 + $0x4] sm:$0xf] %v264
  %279 = vst [vmem:[%s2 + $0x8] sm:$0xf] %v265
  %280 = vst [vmem:[%s2 + $0xc] sm:$0xf] %v266
  %281 = vst [vmem:[%s2 + $0x10] sm:$0xf] %v267
  %282 = vst [vmem:[%s2 + $0x14] sm:$0xf] %v268
  %283 = vst [vmem:[%s2 + $0x18] sm:$0x1] %v269
  // Predicated region
  $region10: #{generator_forward.11} parent=0 // pred_check
    _
  $region11: #{generator_forward.11} parent=0 // pred_check_branch
    %285 = sbr.rel (0) target = $region13
  $region12: #{generator_forward.11} parent=0 // pred_region
    _
  $region13: #{generator_forward.11} parent=0 // pred_fallthru
    _
  // Predicated region
  $region14: #{generator_forward.11} parent=0 // pred_check
    _
  $region15: #{generator_forward.11} parent=0 // pred_check_branch
    %287 = sbr.rel (0) target = $region17
  $region16: #{generator_forward.11} parent=0 // pred_region
    _
  $region17: #{generator_forward.11} parent=0 // pred_fallthru
    _

// kernel: generator_forward.12
$region0: #{generator_forward.12}
  #allocation0 [shape = 'u32[]', space=smem, size = 0x4, offset = 0x4, fixed_abs, tag = 'smem constant byte address 0x4 - core index']
  #allocation1 [shape = 'u32[144,128]{1,0:T(1,128)}', space=vmem, size = 0x12000, scoped, tag = 'internal scratch']
  %s0 = inlined_call_operand.vmem [shape: bf16[16,256], index: 0, kind: input, shape index: {}]
  %s1 = inlined_call_operand.vmem [shape: f32[1,256], index: 1, kind: output, shape index: {0}]
  %s2 = inlined_call_operand.vmem [shape: f32[1,256], index: 2, kind: output, shape index: {1}]
  %3 = xla_tuple %s1, %s2
  %s4 = sld [smem:[#allocation0]]
  $region26: #{generator_forward.12} parent=0
    _
  %s6 = ssub.s32 1, %s4
  %s7 = scalar_select 0, %s6, %s4
  // Predicated region
  $region2: #{generator_forward.12} parent=0 // pred_check
    _
  $region3: #{generator_forward.12} parent=0 // pred_check_branch
    %9 = sbr.rel (0) target = $region5
  $region4: #{generator_forward.12} parent=0 // pred_region
    _
  $region5: #{generator_forward.12} parent=0 // pred_fallthru
    _
  %p10 = scmp.eq.s32.totalorder 0, 0
  // Predicated region
  $region6: #{generator_forward.12} parent=0 // pred_check
    %p11 = pneg %p10
  $region7: #{generator_forward.12} parent=0 // pred_check_branch
    %13 = sbr.rel (%p11) target = $region9
  $region8: #{generator_forward.12} parent=0 // pred_region
    %v14 = vlaneseq
    %vm15 = vcmp.ge.s32.totalorder %v14, 0
    %vm16 = vcmp.lt.s32.totalorder %v14, 256
    %vm17 = vmand %vm15, %vm16
    %18 = vst.msk [vmem:[%s1] sm:$0x3] %vm17, 0.0
    %19 = vst.msk [vmem:[%s2] sm:$0x3] %vm17, 0.0
  $region9: #{generator_forward.12} parent=0 // pred_fallthru
    _
  %v20 = vld [vmem:[%s0] sm:$0xff]
  %v21 = vld [vmem:[%s0 + $0x8] sm:$0xff]
  %v22 = vunpack.c.l.bf16 %v20
  %v23 = vunpack.c.h.bf16 %v20
  %v24 = vunpack.c.l.bf16 %v21
  %v25 = vunpack.c.h.bf16 %v21
  %v26 = vld [vmem:[%s1] sm:$0x3]
  %v27 = vadd.f32 %v22, %v24
  %v28 = vrot.slane %v27, 4
  %v29 = vadd.f32 %v27, %v28
  %v30 = vrot.slane %v29, 2
  %v31 = vadd.f32 %v29, %v30
  %v32 = vrot.slane %v31, 1
  %v33 = vadd.f32 %v31, %v32
  %v34 = vadd.f32 %v23, %v25
  %v35 = vrot.slane %v34, 4
  %v36 = vadd.f32 %v34, %v35
  %v37 = vrot.slane %v36, 2
  %v38 = vadd.f32 %v36, %v37
  %v39 = vrot.slane %v38, 1
  %v40 = vadd.f32 %v38, %v39
  %v43 = vcombine.low %v33, %v40
  %v45 = vunpack.c.l.s4 1966171168
  %v46 = vunpack.c.0.s8 %v45
  %v47 = vlaneseq
  %v48 = vshrl.u32 %v47, 7
  %v49 = vsub.s32 %v46, %v48
  %v50 = vrot.slane %v43, %v49
  %v52 = vunpack.c.l.s4 1966171168
  %v53 = vunpack.c.0.s8 %v52
  %v54 = vlaneseq
  %v55 = vshrl.u32 %v54, 7
  %v56 = vsub.s32 %v53, %v55
  %v57 = vrot.slane %v50, %v56
  %v59 = vadd.f32 %v26, %v57
  %v60 = vlaneseq
  %vm61 = vcmp.ge.s32.totalorder %v60, 0
  %vm62 = vcmp.lt.s32.totalorder %v60, 256
  %vm63 = vmand %vm61, %vm62
  %64 = vst.msk [vmem:[%s1] sm:$0x3] %vm63, %v59
  %v65 = vld [vmem:[%s2] sm:$0x3]
  %v66 = vmul.f32 %v22, %v22
  %v67 = vmul.f32 %v23, %v23
  %v68 = vmul.f32 %v24, %v24
  %v69 = vmul.f32 %v25, %v25
  %v70 = vadd.f32 %v66, %v68
  %v71 = vrot.slane %v70, 4
  %v72 = vadd.f32 %v70, %v71
  %v73 = vrot.slane %v72, 2
  %v74 = vadd.f32 %v72, %v73
  %v75 = vrot.slane %v74, 1
  %v76 = vadd.f32 %v74, %v75
  %v77 = vadd.f32 %v67, %v69
  %v78 = vrot.slane %v77, 4
  %v79 = vadd.f32 %v77, %v78
  %v80 = vrot.slane %v79, 2
  %v81 = vadd.f32 %v79, %v80
  %v82 = vrot.slane %v81, 1
  %v83 = vadd.f32 %v81, %v82
  %v86 = vcombine.low %v76, %v83
  %v88 = vunpack.c.l.s4 1966171168
  %v89 = vunpack.c.0.s8 %v88
  %v90 = vlaneseq
  %v91 = vshrl.u32 %v90, 7
  %v92 = vsub.s32 %v89, %v91
  %v93 = vrot.slane %v86, %v92
  %v95 = vunpack.c.l.s4 1966171168
  %v96 = vunpack.c.0.s8 %v95
  %v97 = vlaneseq
  %v98 = vshrl.u32 %v97, 7
  %v99 = vsub.s32 %v96, %v98
  %v100 = vrot.slane %v93, %v99
  %v102 = vadd.f32 %v65, %v100
  %103 = vst.msk [vmem:[%s2] sm:$0x3] %vm63, %v102
  // Predicated region
  $region10: #{generator_forward.12} parent=0 // pred_check
    _
  $region11: #{generator_forward.12} parent=0 // pred_check_branch
    %105 = sbr.rel (0) target = $region13
  $region12: #{generator_forward.12} parent=0 // pred_region
    _
  $region13: #{generator_forward.12} parent=0 // pred_fallthru
    _
  // Predicated region
  $region14: #{generator_forward.12} parent=0 // pred_check
    _
  $region15: #{generator_forward.12} parent=0 // pred_check_branch
    %107 = sbr.rel (0) target = $region17
  $region16: #{generator_forward.12} parent=0 // pred_region
    _
  $region17: #{generator_forward.12} parent=0 // pred_fallthru
    _
  // Predicated region
  $region18: #{generator_forward.12} parent=0 // pred_check
    _
  $region19: #{generator_forward.12} parent=0 // pred_check_branch
    %109 = sbr.rel (0) target = $region21
  $region20: #{generator_forward.12} parent=0 // pred_region
    _
  $region21: #{generator_forward.12} parent=0 // pred_fallthru
    _
  // Predicated region
  $region22: #{generator_forward.12} parent=0 // pred_check
    _
  $region23: #{generator_forward.12} parent=0 // pred_check_branch
    %111 = sbr.rel (0) target = $region25
  $region24: #{generator_forward.12} parent=0 // pred_region
    _
  $region25: #{generator_forward.12} parent=0 // pred_fallthru
    _

// kernel: generator_forward.13
$region0: #{generator_forward.13}
  #allocation0 [shape = 'u32[]', space=smem, size = 0x4, offset = 0x4, fixed_abs, tag = 'smem constant byte address 0x4 - core index']
  #allocation1 [shape = 'u32[144,128]{1,0:T(1,128)}', space=vmem, size = 0x12000, scoped, tag = 'internal scratch']
  %s0 = inlined_call_operand.vmem [shape: bf16[162,128], index: 0, kind: input, shape index: {}]
  %s1 = inlined_call_operand.vmem [shape: bf16[128,64], index: 1, kind: input, shape index: {}]
  %s2 = inlined_call_operand.vmem [shape: bf16[162,64], index: 2, kind: output, shape index: {}]
  %s3 = sld [smem:[#allocation0]]
  $region18: #{generator_forward.13} parent=0
    _
  %s5 = ssub.s32 1, %s3
  %s6 = scalar_select 0, %s5, %s3
  // Predicated region
  $region2: #{generator_forward.13} parent=0 // pred_check
    _
  $region3: #{generator_forward.13} parent=0 // pred_check_branch
    %8 = sbr.rel (0) target = $region5
  $region4: #{generator_forward.13} parent=0 // pred_region
    _
  $region5: #{generator_forward.13} parent=0 // pred_fallthru
    _
  // Predicated region
  $region6: #{generator_forward.13} parent=0 // pred_check
    _
  $region7: #{generator_forward.13} parent=0 // pred_check_branch
    %10 = sbr.rel (0) target = $region9
  $region8: #{generator_forward.13} parent=0 // pred_region
    _
  $region9: #{generator_forward.13} parent=0 // pred_fallthru
    _
  %v12 = vld [vmem:[%s0] sm:$0xf]
  %v13 = vld [vmem:[%s0 + $0x4] sm:$0xf]
  %v14 = vld [vmem:[%s0 + $0x8] sm:$0xf]
  %v15 = vld [vmem:[%s0 + $0xc] sm:$0xf]
  %v16 = vld [vmem:[%s0 + $0x10] sm:$0xf]
  %v17 = vld [vmem:[%s0 + $0x14] sm:$0xf]
  %v18 = vld [vmem:[%s0 + $0x18] sm:$0xf]
  %v19 = vld [vmem:[%s0 + $0x1c] sm:$0xf]
  %v20 = vld [vmem:[%s0 + $0x20] sm:$0xf]
  %v21 = vld [vmem:[%s0 + $0x24] sm:$0xf]
  %v22 = vld [vmem:[%s0 + $0x28] sm:$0xf]
  %v23 = vld [vmem:[%s0 + $0x2c] sm:$0xf]
  %v24 = vld [vmem:[%s0 + $0x30] sm:$0xf]
  %v25 = vld [vmem:[%s0 + $0x34] sm:$0xf]
  %v26 = vld [vmem:[%s0 + $0x38] sm:$0xf]
  %v27 = vld [vmem:[%s0 + $0x3c] sm:$0xf]
  %v28 = vld [vmem:[%s0 + $0x40] sm:$0xf]
  %v29 = vld [vmem:[%s0 + $0x44] sm:$0xf]
  %v30 = vld [vmem:[%s0 + $0x48] sm:$0xf]
  %v31 = vld [vmem:[%s0 + $0x4c] sm:$0xf]
  %v32 = vld [vmem:[%s0 + $0x50] sm:$0x1]
  %v33 = vld [vmem:[%s1] sm:$0xf]
  %v34 = vld [vmem:[%s1 + $0x4] sm:$0xf]
  %v35 = vld [vmem:[%s1 + $0x8] sm:$0xf]
  %v36 = vld [vmem:[%s1 + $0xc] sm:$0xf]
  %v37 = vld [vmem:[%s1 + $0x10] sm:$0xf]
  %v38 = vld [vmem:[%s1 + $0x14] sm:$0xf]
  %v39 = vld [vmem:[%s1 + $0x18] sm:$0xf]
  %v40 = vld [vmem:[%s1 + $0x1c] sm:$0xf]
  %v41 = vld [vmem:[%s1 + $0x20] sm:$0xf]
  %v42 = vld [vmem:[%s1 + $0x24] sm:$0xf]
  %v43 = vld [vmem:[%s1 + $0x28] sm:$0xf]
  %v44 = vld [vmem:[%s1 + $0x2c] sm:$0xf]
  %v45 = vld [vmem:[%s1 + $0x30] sm:$0xf]
  %v46 = vld [vmem:[%s1 + $0x34] sm:$0xf]
  %v47 = vld [vmem:[%s1 + $0x38] sm:$0xf]
  %v48 = vld [vmem:[%s1 + $0x3c] sm:$0xf]
  %v70 = vunpack.c.l.b16 %v12
  %v71 = vunpack.c.l.b16 %v13
  %v72 = vunpack.c.l.b16 %v14
  %v73 = vunpack.c.l.b16 %v15
  %v74 = vunpack.c.l.b16 %v16
  %v75 = vunpack.c.l.b16 %v17
  %v76 = vunpack.c.l.b16 %v18
  %v77 = vunpack.c.l.b16 %v19
  %v78 = vunpack.c.l.b16 %v20
  %v79 = vunpack.c.l.b16 %v21
  %v80 = vunpack.c.l.b16 %v22
  %v81 = vunpack.c.l.b16 %v23
  %v82 = vunpack.c.l.b16 %v24
  %v83 = vunpack.c.l.b16 %v25
  %v84 = vunpack.c.l.b16 %v26
  %v85 = vunpack.c.l.b16 %v27
  %v86 = vunpack.c.l.b16 %v28
  %v87 = vunpack.c.l.b16 %v29
  %v88 = vunpack.c.l.b16 %v30
  %v89 = vunpack.c.l.b16 %v31
  %v90 = vunpack.c.l.b16 %v32
  %v91 = vpack.c.b16 %v71, %v70
  %v92 = vpack.c.b16 %v73, %v72
  %v93 = vpack.c.b16 %v75, %v74
  %v94 = vpack.c.b16 %v77, %v76
  %v95 = vpack.c.b16 %v79, %v78
  %v96 = vpack.c.b16 %v81, %v80
  %v97 = vpack.c.b16 %v83, %v82
  %v98 = vpack.c.b16 %v85, %v84
  %v99 = vpack.c.b16 %v87, %v86
  %v100 = vpack.c.b16 %v89, %v88
  %v101 = vpack.c.b16 %v90, %v90
  %v129 = vunpack.c.l.b16 %v33
  %v130 = vunpack.c.l.b16 %v34
  %v131 = vunpack.c.l.b16 %v35
  %v132 = vunpack.c.l.b16 %v36
  %v133 = vunpack.c.l.b16 %v37
  %v134 = vunpack.c.l.b16 %v38
  %v135 = vunpack.c.l.b16 %v39
  %v136 = vunpack.c.l.b16 %v40
  %v137 = vunpack.c.l.b16 %v41
  %v138 = vunpack.c.l.b16 %v42
  %v139 = vunpack.c.l.b16 %v43
  %v140 = vunpack.c.l.b16 %v44
  %v141 = vunpack.c.l.b16 %v45
  %v142 = vunpack.c.l.b16 %v46
  %v143 = vunpack.c.l.b16 %v47
  %v144 = vunpack.c.l.b16 %v48
  %v145 = vpack.c.b16 %v130, %v129
  %v146 = vpack.c.b16 %v132, %v131
  %v147 = vpack.c.b16 %v134, %v133
  %v148 = vpack.c.b16 %v136, %v135
  %v149 = vpack.c.b16 %v138, %v137
  %v150 = vpack.c.b16 %v140, %v139
  %v151 = vpack.c.b16 %v142, %v141
  %v152 = vpack.c.b16 %v144, %v143
  %161 = vmatprep.subr.bf16.mxu0 0
  %162 = vmatpush1.bf16.msra.mxu0 %v152
  %163 = vmatprep.subr.bf16.mxu0 0
  %164 = vmatpush1.bf16.msra.mxu0 %v151
  %165 = vmatprep.subr.bf16.mxu0 0
  %166 = vmatpush1.bf16.msra.mxu0 %v150
  %167 = vmatprep.subr.bf16.mxu0 0
  %168 = vmatpush1.bf16.msra.mxu0 %v149
  %169 = vmatprep.subr.bf16.mxu0 0
  %170 = vmatpush1.bf16.msra.mxu0 %v148
  %171 = vmatprep.subr.bf16.mxu0 0
  %172 = vmatpush1.bf16.msra.mxu0 %v147
  %173 = vmatprep.subr.bf16.mxu0 0
  %174 = vmatpush1.bf16.msra.mxu0 %v146
  %175 = vmatprep.subr.bf16.mxu0 0
  %176 = vmatpush1.bf16.msra.mxu0 %v145
  %177 = vmatprep.subr.bf16.mxu0 0
  %178 = vmatpush2.bf16.msra.mxu0 0
  %179 = vmatprep.subr.bf16.mxu0 0
  %180 = vmatpush2.bf16.msra.mxu0 0
  %181 = vmatprep.subr.bf16.mxu0 0
  %182 = vmatpush2.bf16.msra.mxu0 0
  %183 = vmatprep.subr.bf16.mxu0 0
  %184 = vmatpush2.bf16.msra.mxu0 0
  %185 = vmatprep.subr.bf16.mxu0 0
  %186 = vmatpush2.bf16.msra.mxu0 0
  %187 = vmatprep.subr.bf16.mxu0 0
  %188 = vmatpush2.bf16.msra.mxu0 0
  %189 = vmatprep.subr.bf16.mxu0 0
  %190 = vmatpush2.bf16.msra.mxu0 0
  %191 = vmatprep.subr.bf16.mxu0 0
  %192 = vmatpush2.bf16.msra.mxu0 0
  %193 = vmatprep.mubr.bf16.mxu0 0
  %194 = vmatmul.mubr.bf16.gmra.mxu0 %v91
  %v195 = vpop.f32.mrf.mxu0
  %v196 = vadd.f32 0.0, %v195
  %v197 = vpop.f32.mrf.mxu0
  %v198 = vpop.f32.mrf.mxu0
  %v199 = vadd.f32 0.0, %v198
  %v200 = vpop.f32.mrf.mxu0
  %201 = vmatprep.mubr.bf16.mxu0 0
  %202 = vmatmul.mubr.bf16.gmra.mxu0 %v92
  %v203 = vpop.f32.mrf.mxu0
  %v204 = vadd.f32 0.0, %v203
  %v205 = vpop.f32.mrf.mxu0
  %v206 = vpop.f32.mrf.mxu0
  %v207 = vadd.f32 0.0, %v206
  %v208 = vpop.f32.mrf.mxu0
  %209 = vmatprep.mubr.bf16.mxu0 0
  %210 = vmatmul.mubr.bf16.gmra.mxu0 %v93
  %v211 = vpop.f32.mrf.mxu0
  %v212 = vadd.f32 0.0, %v211
  %v213 = vpop.f32.mrf.mxu0
  %v214 = vpop.f32.mrf.mxu0
  %v215 = vadd.f32 0.0, %v214
  %v216 = vpop.f32.mrf.mxu0
  %217 = vmatprep.mubr.bf16.mxu0 0
  %218 = vmatmul.mubr.bf16.gmra.mxu0 %v94
  %v219 = vpop.f32.mrf.mxu0
  %v220 = vadd.f32 0.0, %v219
  %v221 = vpop.f32.mrf.mxu0
  %v222 = vpop.f32.mrf.mxu0
  %v223 = vadd.f32 0.0, %v222
  %v224 = vpop.f32.mrf.mxu0
  %225 = vmatprep.mubr.bf16.mxu0 0
  %226 = vmatmul.mubr.bf16.gmra.mxu0 %v95
  %v227 = vpop.f32.mrf.mxu0
  %v228 = vadd.f32 0.0, %v227
  %v229 = vpop.f32.mrf.mxu0
  %v230 = vpop.f32.mrf.mxu0
  %v231 = vadd.f32 0.0, %v230
  %v232 = vpop.f32.mrf.mxu0
  %233 = vmatprep.mubr.bf16.mxu0 0
  %234 = vmatmul.mubr.bf16.gmra.mxu0 %v96
  %v235 = vpop.f32.mrf.mxu0
  %v236 = vadd.f32 0.0, %v235
  %v237 = vpop.f32.mrf.mxu0
  %v238 = vpop.f32.mrf.mxu0
  %v239 = vadd.f32 0.0, %v238
  %v240 = vpop.f32.mrf.mxu0
  %241 = vmatprep.mubr.bf16.mxu0 0
  %242 = vmatmul.mubr.bf16.gmra.mxu0 %v97
  %v243 = vpop.f32.mrf.mxu0
  %v244 = vadd.f32 0.0, %v243
  %v245 = vpop.f32.mrf.mxu0
  %v246 = vpop.f32.mrf.mxu0
  %v247 = vadd.f32 0.0, %v246
  %v248 = vpop.f32.mrf.mxu0
  %249 = vmatprep.mubr.bf16.mxu0 0
  %250 = vmatmul.mubr.bf16.gmra.mxu0 %v98
  %v251 = vpop.f32.mrf.mxu0
  %v252 = vadd.f32 0.0, %v251
  %v253 = vpop.f32.mrf.mxu0
  %v254 = vpop.f32.mrf.mxu0
  %v255 = vadd.f32 0.0, %v254
  %v256 = vpop.f32.mrf.mxu0
  %257 = vmatprep.mubr.bf16.mxu0 0
  %258 = vmatmul.mubr.bf16.gmra.mxu0 %v99
  %v259 = vpop.f32.mrf.mxu0
  %v260 = vadd.f32 0.0, %v259
  %v261 = vpop.f32.mrf.mxu0
  %v262 = vpop.f32.mrf.mxu0
  %v263 = vadd.f32 0.0, %v262
  %v264 = vpop.f32.mrf.mxu0
  %265 = vmatprep.mubr.bf16.mxu0 0
  %266 = vmatmul.mubr.bf16.gmra.mxu0 %v100
  %v267 = vpop.f32.mrf.mxu0
  %v268 = vadd.f32 0.0, %v267
  %v269 = vpop.f32.mrf.mxu0
  %v270 = vpop.f32.mrf.mxu0
  %v271 = vadd.f32 0.0, %v270
  %v272 = vpop.f32.mrf.mxu0
  %273 = vmatprep.mubr.bf16.mxu0 0
  %274 = vmatmul.mubr.bf16.gmra.mxu0 %v101
  %v275 = vpop.f32.mrf.mxu0
  %v276 = vadd.f32 0.0, %v275
  %v277 = vpop.f32.mrf.mxu0
  %v278 = vpop.f32.mrf.mxu0
  %v279 = vpop.f32.mrf.mxu0
  %280 = vdwg.mxu0
  %v281 = vpack.c.bf16 %v199, %v196
  %v282 = vpack.c.bf16 %v207, %v204
  %v283 = vpack.c.bf16 %v215, %v212
  %v284 = vpack.c.bf16 %v223, %v220
  %v285 = vpack.c.bf16 %v231, %v228
  %v286 = vpack.c.bf16 %v239, %v236
  %v287 = vpack.c.bf16 %v247, %v244
  %v288 = vpack.c.bf16 %v255, %v252
  %v289 = vpack.c.bf16 %v263, %v260
  %v290 = vpack.c.bf16 %v271, %v268
  %v291 = vpack.c.bf16 %v276, %v276
  %v303 = vunpack.c.l.b16 %v281
  %v304 = vunpack.c.h.b16 %v281
  %v305 = vunpack.c.l.b16 %v282
  %v306 = vunpack.c.h.b16 %v282
  %v307 = vunpack.c.l.b16 %v283
  %v308 = vunpack.c.h.b16 %v283
  %v309 = vunpack.c.l.b16 %v284
  %v310 = vunpack.c.h.b16 %v284
  %v311 = vunpack.c.l.b16 %v285
  %v312 = vunpack.c.h.b16 %v285
  %v313 = vunpack.c.l.b16 %v286
  %v314 = vunpack.c.h.b16 %v286
  %v315 = vunpack.c.l.b16 %v287
  %v316 = vunpack.c.h.b16 %v287
  %v317 = vunpack.c.l.b16 %v288
  %v318 = vunpack.c.h.b16 %v288
  %v319 = vunpack.c.l.b16 %v289
  %v320 = vunpack.c.h.b16 %v289
  %v321 = vunpack.c.l.b16 %v290
  %v322 = vunpack.c.h.b16 %v290
  %v323 = vunpack.c.l.b16 %v291
  %v324 = vpack.c.b16 %v303, %v303
  %v325 = vpack.c.b16 %v304, %v304
  %v326 = vpack.c.b16 %v305, %v305
  %v327 = vpack.c.b16 %v306, %v306
  %v328 = vpack.c.b16 %v307, %v307
  %v329 = vpack.c.b16 %v308, %v308
  %v330 = vpack.c.b16 %v309, %v309
  %v331 = vpack.c.b16 %v310, %v310
  %v332 = vpack.c.b16 %v311, %v311
  %v333 = vpack.c.b16 %v312, %v312
  %v334 = vpack.c.b16 %v313, %v313
  %v335 = vpack.c.b16 %v314, %v314
  %v336 = vpack.c.b16 %v315, %v315
  %v337 = vpack.c.b16 %v316, %v316
  %v338 = vpack.c.b16 %v317, %v317
  %v339 = vpack.c.b16 %v318, %v318
  %v340 = vpack.c.b16 %v319, %v319
  %v341 = vpack.c.b16 %v320, %v320
  %v342 = vpack.c.b16 %v321, %v321
  %v343 = vpack.c.b16 %v322, %v322
  %v344 = vpack.c.b16 %v323, %v323
  %vm366 = vcmask 519168
  %367 = vst.msk [vmem:[%s2] sm:$0xf] %vm366, %v324
  %368 = vst.msk [vmem:[%s2 + $0x4] sm:$0xf] %vm366, %v325
  %369 = vst.msk [vmem:[%s2 + $0x8] sm:$0xf] %vm366, %v326
  %370 = vst.msk [vmem:[%s2 + $0xc] sm:$0xf] %vm366, %v327
  %371 = vst.msk [vmem:[%s2 + $0x10] sm:$0xf] %vm366, %v328
  %372 = vst.msk [vmem:[%s2 + $0x14] sm:$0xf] %vm366, %v329
  %373 = vst.msk [vmem:[%s2 + $0x18] sm:$0xf] %vm366, %v330
  %374 = vst.msk [vmem:[%s2 + $0x1c] sm:$0xf] %vm366, %v331
  %375 = vst.msk [vmem:[%s2 + $0x20] sm:$0xf] %vm366, %v332
  %376 = vst.msk [vmem:[%s2 + $0x24] sm:$0xf] %vm366, %v333
  %377 = vst.msk [vmem:[%s2 + $0x28] sm:$0xf] %vm366, %v334
  %378 = vst.msk [vmem:[%s2 + $0x2c] sm:$0xf] %vm366, %v335
  %379 = vst.msk [vmem:[%s2 + $0x30] sm:$0xf] %vm366, %v336
  %380 = vst.msk [vmem:[%s2 + $0x34] sm:$0xf] %vm366, %v337
  %381 = vst.msk [vmem:[%s2 + $0x38] sm:$0xf] %vm366, %v338
  %382 = vst.msk [vmem:[%s2 + $0x3c] sm:$0xf] %vm366, %v339
  %383 = vst.msk [vmem:[%s2 + $0x40] sm:$0xf] %vm366, %v340
  %384 = vst.msk [vmem:[%s2 + $0x44] sm:$0xf] %vm366, %v341
  %385 = vst.msk [vmem:[%s2 + $0x48] sm:$0xf] %vm366, %v342
  %386 = vst.msk [vmem:[%s2 + $0x4c] sm:$0xf] %vm366, %v343
  %vm387 = vcmask 516096
  %388 = vst.msk [vmem:[%s2 + $0x50] sm:$0x1] %vm387, %v344
  // Predicated region
  $region10: #{generator_forward.13} parent=0 // pred_check
    _
  $region11: #{generator_forward.13} parent=0 // pred_check_branch
    %390 = sbr.rel (0) target = $region13
  $region12: #{generator_forward.13} parent=0 // pred_region
    _
  $region13: #{generator_forward.13} parent=0 // pred_fallthru
    _
  // Predicated region
  $region14: #{generator_forward.13} parent=0 // pred_check
    _
  $region15: #{generator_forward.13} parent=0 // pred_check_branch
    %392 = sbr.rel (0) target = $region17
  $region16: #{generator_forward.13} parent=0 // pred_region
    _
  $region17: #{generator_forward.13} parent=0 // pred_fallthru
    _

// kernel: generator_forward.14
$region0: #{generator_forward.14}
  #allocation0 [shape = 'u32[]', space=smem, size = 0x4, offset = 0x4, fixed_abs, tag = 'smem constant byte address 0x4 - core index']
  #allocation1 [shape = 'u32[144,128]{1,0:T(1,128)}', space=vmem, size = 0x12000, scoped, tag = 'internal scratch']
  %s0 = inlined_call_operand.vmem [shape: bf16[32,256], index: 0, kind: input, shape index: {}]
  %s1 = inlined_call_operand.vmem [shape: f32[1,256], index: 1, kind: output, shape index: {0}]
  %s2 = inlined_call_operand.vmem [shape: f32[1,256], index: 2, kind: output, shape index: {1}]
  %3 = xla_tuple %s1, %s2
  %s4 = sld [smem:[#allocation0]]
  $region26: #{generator_forward.14} parent=0
    _
  %s6 = ssub.s32 1, %s4
  %s7 = scalar_select 0, %s6, %s4
  // Predicated region
  $region2: #{generator_forward.14} parent=0 // pred_check
    _
  $region3: #{generator_forward.14} parent=0 // pred_check_branch
    %9 = sbr.rel (0) target = $region5
  $region4: #{generator_forward.14} parent=0 // pred_region
    _
  $region5: #{generator_forward.14} parent=0 // pred_fallthru
    _
  %p10 = scmp.eq.s32.totalorder 0, 0
  // Predicated region
  $region6: #{generator_forward.14} parent=0 // pred_check
    %p11 = pneg %p10
  $region7: #{generator_forward.14} parent=0 // pred_check_branch
    %13 = sbr.rel (%p11) target = $region9
  $region8: #{generator_forward.14} parent=0 // pred_region
    %v14 = vlaneseq
    %vm15 = vcmp.ge.s32.totalorder %v14, 0
    %vm16 = vcmp.lt.s32.totalorder %v14, 256
    %vm17 = vmand %vm15, %vm16
    %18 = vst.msk [vmem:[%s1] sm:$0x3] %vm17, 0.0
    %19 = vst.msk [vmem:[%s2] sm:$0x3] %vm17, 0.0
  $region9: #{generator_forward.14} parent=0 // pred_fallthru
    _
  %v20 = vld [vmem:[%s0] sm:$0xff]
  %v21 = vld [vmem:[%s0 + $0x8] sm:$0xff]
  %v22 = vld [vmem:[%s0 + $0x10] sm:$0xff]
  %v23 = vld [vmem:[%s0 + $0x18] sm:$0xff]
  %v24 = vunpack.c.l.bf16 %v20
  %v25 = vunpack.c.h.bf16 %v20
  %v26 = vunpack.c.l.bf16 %v21
  %v27 = vunpack.c.h.bf16 %v21
  %v28 = vunpack.c.l.bf16 %v22
  %v29 = vunpack.c.h.bf16 %v22
  %v30 = vunpack.c.l.bf16 %v23
  %v31 = vunpack.c.h.bf16 %v23
  %v32 = vld [vmem:[%s1] sm:$0x3]
  %v33 = vadd.f32 %v24, %v26
  %v34 = vadd.f32 %v33, %v28
  %v35 = vadd.f32 %v34, %v30
  %v36 = vrot.slane %v35, 4
  %v37 = vadd.f32 %v35, %v36
  %v38 = vrot.slane %v37, 2
  %v39 = vadd.f32 %v37, %v38
  %v40 = vrot.slane %v39, 1
  %v41 = vadd.f32 %v39, %v40
  %v42 = vadd.f32 %v25, %v27
  %v43 = vadd.f32 %v42, %v29
  %v44 = vadd.f32 %v43, %v31
  %v45 = vrot.slane %v44, 4
  %v46 = vadd.f32 %v44, %v45
  %v47 = vrot.slane %v46, 2
  %v48 = vadd.f32 %v46, %v47
  %v49 = vrot.slane %v48, 1
  %v50 = vadd.f32 %v48, %v49
  %v53 = vcombine.low %v41, %v50
  %v55 = vunpack.c.l.s4 1966171168
  %v56 = vunpack.c.0.s8 %v55
  %v57 = vlaneseq
  %v58 = vshrl.u32 %v57, 7
  %v59 = vsub.s32 %v56, %v58
  %v60 = vrot.slane %v53, %v59
  %v62 = vunpack.c.l.s4 1966171168
  %v63 = vunpack.c.0.s8 %v62
  %v64 = vlaneseq
  %v65 = vshrl.u32 %v64, 7
  %v66 = vsub.s32 %v63, %v65
  %v67 = vrot.slane %v60, %v66
  %v69 = vadd.f32 %v32, %v67
  %v70 = vlaneseq
  %vm71 = vcmp.ge.s32.totalorder %v70, 0
  %vm72 = vcmp.lt.s32.totalorder %v70, 256
  %vm73 = vmand %vm71, %vm72
  %74 = vst.msk [vmem:[%s1] sm:$0x3] %vm73, %v69
  %v75 = vld [vmem:[%s2] sm:$0x3]
  %v76 = vmul.f32 %v24, %v24
  %v77 = vmul.f32 %v25, %v25
  %v78 = vmul.f32 %v26, %v26
  %v79 = vmul.f32 %v27, %v27
  %v80 = vmul.f32 %v28, %v28
  %v81 = vmul.f32 %v29, %v29
  %v82 = vmul.f32 %v30, %v30
  %v83 = vmul.f32 %v31, %v31
  %v84 = vadd.f32 %v76, %v78
  %v85 = vadd.f32 %v84, %v80
  %v86 = vadd.f32 %v85, %v82
  %v87 = vrot.slane %v86, 4
  %v88 = vadd.f32 %v86, %v87
  %v89 = vrot.slane %v88, 2
  %v90 = vadd.f32 %v88, %v89
  %v91 = vrot.slane %v90, 1
  %v92 = vadd.f32 %v90, %v91
  %v93 = vadd.f32 %v77, %v79
  %v94 = vadd.f32 %v93, %v81
  %v95 = vadd.f32 %v94, %v83
  %v96 = vrot.slane %v95, 4
  %v97 = vadd.f32 %v95, %v96
  %v98 = vrot.slane %v97, 2
  %v99 = vadd.f32 %v97, %v98
  %v100 = vrot.slane %v99, 1
  %v101 = vadd.f32 %v99, %v100
  %v104 = vcombine.low %v92, %v101
  %v106 = vunpack.c.l.s4 1966171168
  %v107 = vunpack.c.0.s8 %v106
  %v108 = vlaneseq
  %v109 = vshrl.u32 %v108, 7
  %v110 = vsub.s32 %v107, %v109
  %v111 = vrot.slane %v104, %v110
  %v113 = vunpack.c.l.s4 1966171168
  %v114 = vunpack.c.0.s8 %v113
  %v115 = vlaneseq
  %v116 = vshrl.u32 %v115, 7
  %v117 = vsub.s32 %v114, %v116
  %v118 = vrot.slane %v111, %v117
  %v120 = vadd.f32 %v75, %v118
  %121 = vst.msk [vmem:[%s2] sm:$0x3] %vm73, %v120
  // Predicated region
  $region10: #{generator_forward.14} parent=0 // pred_check
    _
  $region11: #{generator_forward.14} parent=0 // pred_check_branch
    %123 = sbr.rel (0) target = $region13
  $region12: #{generator_forward.14} parent=0 // pred_region
    _
  $region13: #{generator_forward.14} parent=0 // pred_fallthru
    _
  // Predicated region
  $region14: #{generator_forward.14} parent=0 // pred_check
    _
  $region15: #{generator_forward.14} parent=0 // pred_check_branch
    %125 = sbr.rel (0) target = $region17
  $region16: #{generator_forward.14} parent=0 // pred_region
    _
  $region17: #{generator_forward.14} parent=0 // pred_fallthru
    _
  // Predicated region
  $region18: #{generator_forward.14} parent=0 // pred_check
    _
  $region19: #{generator_forward.14} parent=0 // pred_check_branch
    %127 = sbr.rel (0) target = $region21
  $region20: #{generator_forward.14} parent=0 // pred_region
    _
  $region21: #{generator_forward.14} parent=0 // pred_fallthru
    _
  // Predicated region
  $region22: #{generator_forward.14} parent=0 // pred_check
    _
  $region23: #{generator_forward.14} parent=0 // pred_check_branch
    %129 = sbr.rel (0) target = $region25
  $region24: #{generator_forward.14} parent=0 // pred_region
    _
  $region25: #{generator_forward.14} parent=0 // pred_fallthru
    _

// kernel: generator_forward.15
$region0: #{generator_forward.15}
  #allocation0 [shape = 'u32[]', space=smem, size = 0x4, offset = 0x4, fixed_abs, tag = 'smem constant byte address 0x4 - core index']
  #allocation1 [shape = 'u32[144,128]{1,0:T(1,128)}', space=vmem, size = 0x12000, scoped, tag = 'internal scratch']
  %s0 = inlined_call_operand.vmem [shape: bf16[578,64], index: 0, kind: input, shape index: {}]
  %s1 = inlined_call_operand.vmem [shape: bf16[64,32], index: 1, kind: input, shape index: {}]
  %s2 = inlined_call_operand.vmem [shape: bf16[578,32], index: 2, kind: output, shape index: {}]
  %s3 = sld [smem:[#allocation0]]
  $region18: #{generator_forward.15} parent=0
    _
  %s5 = ssub.s32 1, %s3
  %s6 = scalar_select 0, %s5, %s3
  // Predicated region
  $region2: #{generator_forward.15} parent=0 // pred_check
    _
  $region3: #{generator_forward.15} parent=0 // pred_check_branch
    %8 = sbr.rel (0) target = $region5
  $region4: #{generator_forward.15} parent=0 // pred_region
    _
  $region5: #{generator_forward.15} parent=0 // pred_fallthru
    _
  // Predicated region
  $region6: #{generator_forward.15} parent=0 // pred_check
    _
  $region7: #{generator_forward.15} parent=0 // pred_check_branch
    %10 = sbr.rel (0) target = $region9
  $region8: #{generator_forward.15} parent=0 // pred_region
    _
  $region9: #{generator_forward.15} parent=0 // pred_fallthru
    _
  %v12 = vld [vmem:[%s0] sm:$0xf]
  %v13 = vld [vmem:[%s0 + $0x4] sm:$0xf]
  %v14 = vld [vmem:[%s0 + $0x8] sm:$0xf]
  %v15 = vld [vmem:[%s0 + $0xc] sm:$0xf]
  %v16 = vld [vmem:[%s0 + $0x10] sm:$0xf]
  %v17 = vld [vmem:[%s0 + $0x14] sm:$0xf]
  %v18 = vld [vmem:[%s0 + $0x18] sm:$0xf]
  %v19 = vld [vmem:[%s0 + $0x1c] sm:$0xf]
  %v20 = vld [vmem:[%s0 + $0x20] sm:$0xf]
  %v21 = vld [vmem:[%s0 + $0x24] sm:$0xf]
  %v22 = vld [vmem:[%s0 + $0x28] sm:$0xf]
  %v23 = vld [vmem:[%s0 + $0x2c] sm:$0xf]
  %v24 = vld [vmem:[%s0 + $0x30] sm:$0xf]
  %v25 = vld [vmem:[%s0 + $0x34] sm:$0xf]
  %v26 = vld [vmem:[%s0 + $0x38] sm:$0xf]
  %v27 = vld [vmem:[%s0 + $0x3c] sm:$0xf]
  %v28 = vld [vmem:[%s0 + $0x40] sm:$0xf]
  %v29 = vld [vmem:[%s0 + $0x44] sm:$0xf]
  %v30 = vld [vmem:[%s0 + $0x48] sm:$0xf]
  %v31 = vld [vmem:[%s0 + $0x4c] sm:$0xf]
  %v32 = vld [vmem:[%s0 + $0x50] sm:$0xf]
  %v33 = vld [vmem:[%s0 + $0x54] sm:$0xf]
  %v34 = vld [vmem:[%s0 + $0x58] sm:$0xf]
  %v35 = vld [vmem:[%s0 + $0x5c] sm:$0xf]
  %v36 = vld [vmem:[%s0 + $0x60] sm:$0xf]
  %v37 = vld [vmem:[%s0 + $0x64] sm:$0xf]
  %v38 = vld [vmem:[%s0 + $0x68] sm:$0xf]
  %v39 = vld [vmem:[%s0 + $0x6c] sm:$0xf]
  %v40 = vld [vmem:[%s0 + $0x70] sm:$0xf]
  %v41 = vld [vmem:[%s0 + $0x74] sm:$0xf]
  %v42 = vld [vmem:[%s0 + $0x78] sm:$0xf]
  %v43 = vld [vmem:[%s0 + $0x7c] sm:$0xf]
  %v44 = vld [vmem:[%s0 + $0x80] sm:$0xf]
  %v45 = vld [vmem:[%s0 + $0x84] sm:$0xf]
  %v46 = vld [vmem:[%s0 + $0x88] sm:$0xf]
  %v47 = vld [vmem:[%s0 + $0x8c] sm:$0xf]
  %v48 = vld [vmem:[%s0 + $0x90] sm:$0xf]
  %v49 = vld [vmem:[%s0 + $0x94] sm:$0xf]
  %v50 = vld [vmem:[%s0 + $0x98] sm:$0xf]
  %v51 = vld [vmem:[%s0 + $0x9c] sm:$0xf]
  %v52 = vld [vmem:[%s0 + $0xa0] sm:$0xf]
  %v53 = vld [vmem:[%s0 + $0xa4] sm:$0xf]
  %v54 = vld [vmem:[%s0 + $0xa8] sm:$0xf]
  %v55 = vld [vmem:[%s0 + $0xac] sm:$0xf]
  %v56 = vld [vmem:[%s0 + $0xb0] sm:$0xf]
  %v57 = vld [vmem:[%s0 + $0xb4] sm:$0xf]
  %v58 = vld [vmem:[%s0 + $0xb8] sm:$0xf]
  %v59 = vld [vmem:[%s0 + $0xbc] sm:$0xf]
  %v60 = vld [vmem:[%s0 + $0xc0] sm:$0xf]
  %v61 = vld [vmem:[%s0 + $0xc4] sm:$0xf]
  %v62 = vld [vmem:[%s0 + $0xc8] sm:$0xf]
  %v63 = vld [vmem:[%s0 + $0xcc] sm:$0xf]
  %v64 = vld [vmem:[%s0 + $0xd0] sm:$0xf]
  %v65 = vld [vmem:[%s0 + $0xd4] sm:$0xf]
  %v66 = vld [vmem:[%s0 + $0xd8] sm:$0xf]
  %v67 = vld [vmem:[%s0 + $0xdc] sm:$0xf]
  %v68 = vld [vmem:[%s0 + $0xe0] sm:$0xf]
  %v69 = vld [vmem:[%s0 + $0xe4] sm:$0xf]
  %v70 = vld [vmem:[%s0 + $0xe8] sm:$0xf]
  %v71 = vld [vmem:[%s0 + $0xec] sm:$0xf]
  %v72 = vld [vmem:[%s0 + $0xf0] sm:$0xf]
  %v73 = vld [vmem:[%s0 + $0xf4] sm:$0xf]
  %v74 = vld [vmem:[%s0 + $0xf8] sm:$0xf]
  %v75 = vld [vmem:[%s0 + $0xfc] sm:$0xf]
  %v76 = vld [vmem:[%s0 + $0x100] sm:$0xf]
  %v77 = vld [vmem:[%s0 + $0x104] sm:$0xf]
  %v78 = vld [vmem:[%s0 + $0x108] sm:$0xf]
  %v79 = vld [vmem:[%s0 + $0x10c] sm:$0xf]
  %v80 = vld [vmem:[%s0 + $0x110] sm:$0xf]
  %v81 = vld [vmem:[%s0 + $0x114] sm:$0xf]
  %v82 = vld [vmem:[%s0 + $0x118] sm:$0xf]
  %v83 = vld [vmem:[%s0 + $0x11c] sm:$0xf]
  %v84 = vld [vmem:[%s0 + $0x120] sm:$0x1]
  %v85 = vld [vmem:[%s1] sm:$0xf]
  %v86 = vld [vmem:[%s1 + $0x4] sm:$0xf]
  %v87 = vld [vmem:[%s1 + $0x8] sm:$0xf]
  %v88 = vld [vmem:[%s1 + $0xc] sm:$0xf]
  %v89 = vld [vmem:[%s1 + $0x10] sm:$0xf]
  %v90 = vld [vmem:[%s1 + $0x14] sm:$0xf]
  %v91 = vld [vmem:[%s1 + $0x18] sm:$0xf]
  %v92 = vld [vmem:[%s1 + $0x1c] sm:$0xf]
  %v166 = vunpack.c.l.b16 %v12
  %v167 = vunpack.c.l.b16 %v13
  %v168 = vunpack.c.l.b16 %v14
  %v169 = vunpack.c.l.b16 %v15
  %v170 = vunpack.c.l.b16 %v16
  %v171 = vunpack.c.l.b16 %v17
  %v172 = vunpack.c.l.b16 %v18
  %v173 = vunpack.c.l.b16 %v19
  %v174 = vunpack.c.l.b16 %v20
  %v175 = vunpack.c.l.b16 %v21
  %v176 = vunpack.c.l.b16 %v22
  %v177 = vunpack.c.l.b16 %v23
  %v178 = vunpack.c.l.b16 %v24
  %v179 = vunpack.c.l.b16 %v25
  %v180 = vunpack.c.l.b16 %v26
  %v181 = vunpack.c.l.b16 %v27
  %v182 = vunpack.c.l.b16 %v28
  %v183 = vunpack.c.l.b16 %v29
  %v184 = vunpack.c.l.b16 %v30
  %v185 = vunpack.c.l.b16 %v31
  %v186 = vunpack.c.l.b16 %v32
  %v187 = vunpack.c.l.b16 %v33
  %v188 = vunpack.c.l.b16 %v34
  %v189 = vunpack.c.l.b16 %v35
  %v190 = vunpack.c.l.b16 %v36
  %v191 = vunpack.c.l.b16 %v37
  %v192 = vunpack.c.l.b16 %v38
  %v193 = vunpack.c.l.b16 %v39
  %v194 = vunpack.c.l.b16 %v40
  %v195 = vunpack.c.l.b16 %v41
  %v196 = vunpack.c.l.b16 %v42
  %v197 = vunpack.c.l.b16 %v43
  %v198 = vunpack.c.l.b16 %v44
  %v199 = vunpack.c.l.b16 %v45
  %v200 = vunpack.c.l.b16 %v46
  %v201 = vunpack.c.l.b16 %v47
  %v202 = vunpack.c.l.b16 %v48
  %v203 = vunpack.c.l.b16 %v49
  %v204 = vunpack.c.l.b16 %v50
  %v205 = vunpack.c.l.b16 %v51
  %v206 = vunpack.c.l.b16 %v52
  %v207 = vunpack.c.l.b16 %v53
  %v208 = vunpack.c.l.b16 %v54
  %v209 = vunpack.c.l.b16 %v55
  %v210 = vunpack.c.l.b16 %v56
  %v211 = vunpack.c.l.b16 %v57
  %v212 = vunpack.c.l.b16 %v58
  %v213 = vunpack.c.l.b16 %v59
  %v214 = vunpack.c.l.b16 %v60
  %v215 = vunpack.c.l.b16 %v61
  %v216 = vunpack.c.l.b16 %v62
  %v217 = vunpack.c.l.b16 %v63
  %v218 = vunpack.c.l.b16 %v64
  %v219 = vunpack.c.l.b16 %v65
  %v220 = vunpack.c.l.b16 %v66
  %v221 = vunpack.c.l.b16 %v67
  %v222 = vunpack.c.l.b16 %v68
  %v223 = vunpack.c.l.b16 %v69
  %v224 = vunpack.c.l.b16 %v70
  %v225 = vunpack.c.l.b16 %v71
  %v226 = vunpack.c.l.b16 %v72
  %v227 = vunpack.c.l.b16 %v73
  %v228 = vunpack.c.l.b16 %v74
  %v229 = vunpack.c.l.b16 %v75
  %v230 = vunpack.c.l.b16 %v76
  %v231 = vunpack.c.l.b16 %v77
  %v232 = vunpack.c.l.b16 %v78
  %v233 = vunpack.c.l.b16 %v79
  %v234 = vunpack.c.l.b16 %v80
  %v235 = vunpack.c.l.b16 %v81
  %v236 = vunpack.c.l.b16 %v82
  %v237 = vunpack.c.l.b16 %v83
  %v238 = vunpack.c.l.b16 %v84
  %v239 = vpack.c.b16 %v167, %v166
  %v240 = vpack.c.b16 %v169, %v168
  %v241 = vpack.c.b16 %v171, %v170
  %v242 = vpack.c.b16 %v173, %v172
  %v243 = vpack.c.b16 %v175, %v174
  %v244 = vpack.c.b16 %v177, %v176
  %v245 = vpack.c.b16 %v179, %v178
  %v246 = vpack.c.b16 %v181, %v180
  %v247 = vpack.c.b16 %v183, %v182
  %v248 = vpack.c.b16 %v185, %v184
  %v249 = vpack.c.b16 %v187, %v186
  %v250 = vpack.c.b16 %v189, %v188
  %v251 = vpack.c.b16 %v191, %v190
  %v252 = vpack.c.b16 %v193, %v192
  %v253 = vpack.c.b16 %v195, %v194
  %v254 = vpack.c.b16 %v197, %v196
  %v255 = vpack.c.b16 %v199, %v198
  %v256 = vpack.c.b16 %v201, %v200
  %v257 = vpack.c.b16 %v203, %v202
  %v258 = vpack.c.b16 %v205, %v204
  %v259 = vpack.c.b16 %v207, %v206
  %v260 = vpack.c.b16 %v209, %v208
  %v261 = vpack.c.b16 %v211, %v210
  %v262 = vpack.c.b16 %v213, %v212
  %v263 = vpack.c.b16 %v215, %v214
  %v264 = vpack.c.b16 %v217, %v216
  %v265 = vpack.c.b16 %v219, %v218
  %v266 = vpack.c.b16 %v221, %v220
  %v267 = vpack.c.b16 %v223, %v222
  %v268 = vpack.c.b16 %v225, %v224
  %v269 = vpack.c.b16 %v227, %v226
  %v270 = vpack.c.b16 %v229, %v228
  %v271 = vpack.c.b16 %v231, %v230
  %v272 = vpack.c.b16 %v233, %v232
  %v273 = vpack.c.b16 %v235, %v234
  %v274 = vpack.c.b16 %v237, %v236
  %v275 = vpack.c.b16 %v238, %v238
  %v284 = vunpack.c.l.b16 %v85
  %v285 = vunpack.c.l.b16 %v86
  %v286 = vunpack.c.l.b16 %v87
  %v287 = vunpack.c.l.b16 %v88
  %v288 = vunpack.c.l.b16 %v89
  %v289 = vunpack.c.l.b16 %v90
  %v290 = vunpack.c.l.b16 %v91
  %v291 = vunpack.c.l.b16 %v92
  %v292 = vpack.c.b16 %v285, %v284
  %v293 = vpack.c.b16 %v287, %v286
  %v294 = vpack.c.b16 %v289, %v288
  %v295 = vpack.c.b16 %v291, %v290
  %vm300 = vcmask 523264
  %v302 = vsel %vm300, %v239, 0
  %v305 = vsel %vm300, %v240, 0
  %v308 = vsel %vm300, %v241, 0
  %v311 = vsel %vm300, %v242, 0
  %v314 = vsel %vm300, %v243, 0
  %v317 = vsel %vm300, %v244, 0
  %v320 = vsel %vm300, %v245, 0
  %v323 = vsel %vm300, %v246, 0
  %v326 = vsel %vm300, %v247, 0
  %v329 = vsel %vm300, %v248, 0
  %v332 = vsel %vm300, %v249, 0
  %v335 = vsel %vm300, %v250, 0
  %v338 = vsel %vm300, %v251, 0
  %v341 = vsel %vm300, %v252, 0
  %v344 = vsel %vm300, %v253, 0
  %v347 = vsel %vm300, %v254, 0
  %v350 = vsel %vm300, %v255, 0
  %v353 = vsel %vm300, %v256, 0
  %v356 = vsel %vm300, %v257, 0
  %v359 = vsel %vm300, %v258, 0
  %v362 = vsel %vm300, %v259, 0
  %v365 = vsel %vm300, %v260, 0
  %v368 = vsel %vm300, %v261, 0
  %v371 = vsel %vm300, %v262, 0
  %v374 = vsel %vm300, %v263, 0
  %v377 = vsel %vm300, %v264, 0
  %v380 = vsel %vm300, %v265, 0
  %v383 = vsel %vm300, %v266, 0
  %v386 = vsel %vm300, %v267, 0
  %v389 = vsel %vm300, %v268, 0
  %v392 = vsel %vm300, %v269, 0
  %v395 = vsel %vm300, %v270, 0
  %v398 = vsel %vm300, %v271, 0
  %v401 = vsel %vm300, %v272, 0
  %v404 = vsel %vm300, %v273, 0
  %v407 = vsel %vm300, %v274, 0
  %v410 = vsel %vm300, %v275, 0
  %412 = vmatprep.subr.bf16.mxu0 0
  %413 = vmatpush1.bf16.msra.mxu0 0
  %414 = vmatprep.subr.bf16.mxu0 0
  %415 = vmatpush1.bf16.msra.mxu0 0
  %416 = vmatprep.subr.bf16.mxu0 0
  %417 = vmatpush1.bf16.msra.mxu0 0
  %418 = vmatprep.subr.bf16.mxu0 0
  %419 = vmatpush1.bf16.msra.mxu0 0
  %420 = vmatprep.subr.bf16.mxu0 0
  %421 = vmatpush1.bf16.msra.mxu0 %v295
  %422 = vmatprep.subr.bf16.mxu0 0
  %423 = vmatpush1.bf16.msra.mxu0 %v294
  %424 = vmatprep.subr.bf16.mxu0 0
  %425 = vmatpush1.bf16.msra.mxu0 %v293
  %426 = vmatprep.subr.bf16.mxu0 0
  %427 = vmatpush1.bf16.msra.mxu0 %v292
  %428 = vmatprep.subr.bf16.mxu0 0
  %429 = vmatpush2.bf16.msra.mxu0 0
  %430 = vmatprep.subr.bf16.mxu0 0
  %431 = vmatpush2.bf16.msra.mxu0 0
  %432 = vmatprep.subr.bf16.mxu0 0
  %433 = vmatpush2.bf16.msra.mxu0 0
  %434 = vmatprep.subr.bf16.mxu0 0
  %435 = vmatpush2.bf16.msra.mxu0 0
  %436 = vmatprep.subr.bf16.mxu0 0
  %437 = vmatpush2.bf16.msra.mxu0 0
  %438 = vmatprep.subr.bf16.mxu0 0
  %439 = vmatpush2.bf16.msra.mxu0 0
  %440 = vmatprep.subr.bf16.mxu0 0
  %441 = vmatpush2.bf16.msra.mxu0 0
  %442 = vmatprep.subr.bf16.mxu0 0
  %443 = vmatpush2.bf16.msra.mxu0 0
  %444 = vmatprep.mubr.bf16.mxu0 0
  %445 = vmatmul.mubr.bf16.gmra.mxu0 %v302
  %v446 = vpop.f32.mrf.mxu0
  %v447 = vadd.f32 0.0, %v446
  %v448 = vpop.f32.mrf.mxu0
  %v449 = vpop.f32.mrf.mxu0
  %v450 = vadd.f32 0.0, %v449
  %v451 = vpop.f32.mrf.mxu0
  %452 = vmatprep.mubr.bf16.mxu0 0
  %453 = vmatmul.mubr.bf16.gmra.mxu0 %v305
  %v454 = vpop.f32.mrf.mxu0
  %v455 = vadd.f32 0.0, %v454
  %v456 = vpop.f32.mrf.mxu0
  %v457 = vpop.f32.mrf.mxu0
  %v458 = vadd.f32 0.0, %v457
  %v459 = vpop.f32.mrf.mxu0
  %460 = vmatprep.mubr.bf16.mxu0 0
  %461 = vmatmul.mubr.bf16.gmra.mxu0 %v308
  %v462 = vpop.f32.mrf.mxu0
  %v463 = vadd.f32 0.0, %v462
  %v464 = vpop.f32.mrf.mxu0
  %v465 = vpop.f32.mrf.mxu0
  %v466 = vadd.f32 0.0, %v465
  %v467 = vpop.f32.mrf.mxu0
  %468 = vmatprep.mubr.bf16.mxu0 0
  %469 = vmatmul.mubr.bf16.gmra.mxu0 %v311
  %v470 = vpop.f32.mrf.mxu0
  %v471 = vadd.f32 0.0, %v470
  %v472 = vpop.f32.mrf.mxu0
  %v473 = vpop.f32.mrf.mxu0
  %v474 = vadd.f32 0.0, %v473
  %v475 = vpop.f32.mrf.mxu0
  %476 = vmatprep.mubr.bf16.mxu0 0
  %477 = vmatmul.mubr.bf16.gmra.mxu0 %v314
  %v478 = vpop.f32.mrf.mxu0
  %v479 = vadd.f32 0.0, %v478
  %v480 = vpop.f32.mrf.mxu0
  %v481 = vpop.f32.mrf.mxu0
  %v482 = vadd.f32 0.0, %v481
  %v483 = vpop.f32.mrf.mxu0
  %484 = vmatprep.mubr.bf16.mxu0 0
  %485 = vmatmul.mubr.bf16.gmra.mxu0 %v317
  %v486 = vpop.f32.mrf.mxu0
  %v487 = vadd.f32 0.0, %v486
  %v488 = vpop.f32.mrf.mxu0
  %v489 = vpop.f32.mrf.mxu0
  %v490 = vadd.f32 0.0, %v489
  %v491 = vpop.f32.mrf.mxu0
  %492 = vmatprep.mubr.bf16.mxu0 0
  %493 = vmatmul.mubr.bf16.gmra.mxu0 %v320
  %v494 = vpop.f32.mrf.mxu0
  %v495 = vadd.f32 0.0, %v494
  %v496 = vpop.f32.mrf.mxu0
  %v497 = vpop.f32.mrf.mxu0
  %v498 = vadd.f32 0.0, %v497
  %v499 = vpop.f32.mrf.mxu0
  %500 = vmatprep.mubr.bf16.mxu0 0
  %501 = vmatmul.mubr.bf16.gmra.mxu0 %v323
  %v502 = vpop.f32.mrf.mxu0
  %v503 = vadd.f32 0.0, %v502
  %v504 = vpop.f32.mrf.mxu0
  %v505 = vpop.f32.mrf.mxu0
  %v506 = vadd.f32 0.0, %v505
  %v507 = vpop.f32.mrf.mxu0
  %508 = vmatprep.mubr.bf16.mxu0 0
  %509 = vmatmul.mubr.bf16.gmra.mxu0 %v326
  %v510 = vpop.f32.mrf.mxu0
  %v511 = vadd.f32 0.0, %v510
  %v512 = vpop.f32.mrf.mxu0
  %v513 = vpop.f32.mrf.mxu0
  %v514 = vadd.f32 0.0, %v513
  %v515 = vpop.f32.mrf.mxu0
  %516 = vmatprep.mubr.bf16.mxu0 0
  %517 = vmatmul.mubr.bf16.gmra.mxu0 %v329
  %v518 = vpop.f32.mrf.mxu0
  %v519 = vadd.f32 0.0, %v518
  %v520 = vpop.f32.mrf.mxu0
  %v521 = vpop.f32.mrf.mxu0
  %v522 = vadd.f32 0.0, %v521
  %v523 = vpop.f32.mrf.mxu0
  %524 = vmatprep.mubr.bf16.mxu0 0
  %525 = vmatmul.mubr.bf16.gmra.mxu0 %v332
  %v526 = vpop.f32.mrf.mxu0
  %v527 = vadd.f32 0.0, %v526
  %v528 = vpop.f32.mrf.mxu0
  %v529 = vpop.f32.mrf.mxu0
  %v530 = vadd.f32 0.0, %v529
  %v531 = vpop.f32.mrf.mxu0
  %532 = vmatprep.mubr.bf16.mxu0 0
  %533 = vmatmul.mubr.bf16.gmra.mxu0 %v335
  %v534 = vpop.f32.mrf.mxu0
  %v535 = vadd.f32 0.0, %v534
  %v536 = vpop.f32.mrf.mxu0
  %v537 = vpop.f32.mrf.mxu0
  %v538 = vadd.f32 0.0, %v537
  %v539 = vpop.f32.mrf.mxu0
  %540 = vmatprep.mubr.bf16.mxu0 0
  %541 = vmatmul.mubr.bf16.gmra.mxu0 %v338
  %v542 = vpop.f32.mrf.mxu0
  %v543 = vadd.f32 0.0, %v542
  %v544 = vpop.f32.mrf.mxu0
  %v545 = vpop.f32.mrf.mxu0
  %v546 = vadd.f32 0.0, %v545
  %v547 = vpop.f32.mrf.mxu0
  %548 = vmatprep.mubr.bf16.mxu0 0
  %549 = vmatmul.mubr.bf16.gmra.mxu0 %v341
  %v550 = vpop.f32.mrf.mxu0
  %v551 = vadd.f32 0.0, %v550
  %v552 = vpop.f32.mrf.mxu0
  %v553 = vpop.f32.mrf.mxu0
  %v554 = vadd.f32 0.0, %v553
  %v555 = vpop.f32.mrf.mxu0
  %556 = vmatprep.mubr.bf16.mxu0 0
  %557 = vmatmul.mubr.bf16.gmra.mxu0 %v344
  %v558 = vpop.f32.mrf.mxu0
  %v559 = vadd.f32 0.0, %v558
  %v560 = vpop.f32.mrf.mxu0
  %v561 = vpop.f32.mrf.mxu0
  %v562 = vadd.f32 0.0, %v561
  %v563 = vpop.f32.mrf.mxu0
  %564 = vmatprep.mubr.bf16.mxu0 0
  %565 = vmatmul.mubr.bf16.gmra.mxu0 %v347
  %v566 = vpop.f32.mrf.mxu0
  %v567 = vadd.f32 0.0, %v566
  %v568 = vpop.f32.mrf.mxu0
  %v569 = vpop.f32.mrf.mxu0
  %v570 = vadd.f32 0.0, %v569
  %v571 = vpop.f32.mrf.mxu0
  %572 = vmatprep.mubr.bf16.mxu0 0
  %573 = vmatmul.mubr.bf16.gmra.mxu0 %v350
  %v574 = vpop.f32.mrf.mxu0
  %v575 = vadd.f32 0.0, %v574
  %v576 = vpop.f32.mrf.mxu0
  %v577 = vpop.f32.mrf.mxu0
  %v578 = vadd.f32 0.0, %v577
  %v579 = vpop.f32.mrf.mxu0
  %580 = vmatprep.mubr.bf16.mxu0 0
  %581 = vmatmul.mubr.bf16.gmra.mxu0 %v353
  %v582 = vpop.f32.mrf.mxu0
  %v583 = vadd.f32 0.0, %v582
  %v584 = vpop.f32.mrf.mxu0
  %v585 = vpop.f32.mrf.mxu0
  %v586 = vadd.f32 0.0, %v585
  %v587 = vpop.f32.mrf.mxu0
  %588 = vmatprep.mubr.bf16.mxu0 0
  %589 = vmatmul.mubr.bf16.gmra.mxu0 %v356
  %v590 = vpop.f32.mrf.mxu0
  %v591 = vadd.f32 0.0, %v590
  %v592 = vpop.f32.mrf.mxu0
  %v593 = vpop.f32.mrf.mxu0
  %v594 = vadd.f32 0.0, %v593
  %v595 = vpop.f32.mrf.mxu0
  %596 = vmatprep.mubr.bf16.mxu0 0
  %597 = vmatmul.mubr.bf16.gmra.mxu0 %v359
  %v598 = vpop.f32.mrf.mxu0
  %v599 = vadd.f32 0.0, %v598
  %v600 = vpop.f32.mrf.mxu0
  %v601 = vpop.f32.mrf.mxu0
  %v602 = vadd.f32 0.0, %v601
  %v603 = vpop.f32.mrf.mxu0
  %604 = vmatprep.mubr.bf16.mxu0 0
  %605 = vmatmul.mubr.bf16.gmra.mxu0 %v362
  %v606 = vpop.f32.mrf.mxu0
  %v607 = vadd.f32 0.0, %v606
  %v608 = vpop.f32.mrf.mxu0
  %v609 = vpop.f32.mrf.mxu0
  %v610 = vadd.f32 0.0, %v609
  %v611 = vpop.f32.mrf.mxu0
  %612 = vmatprep.mubr.bf16.mxu0 0
  %613 = vmatmul.mubr.bf16.gmra.mxu0 %v365
  %v614 = vpop.f32.mrf.mxu0
  %v615 = vadd.f32 0.0, %v614
  %v616 = vpop.f32.mrf.mxu0
  %v617 = vpop.f32.mrf.mxu0
  %v618 = vadd.f32 0.0, %v617
  %v619 = vpop.f32.mrf.mxu0
  %620 = vmatprep.mubr.bf16.mxu0 0
  %621 = vmatmul.mubr.bf16.gmra.mxu0 %v368
  %v622 = vpop.f32.mrf.mxu0
  %v623 = vadd.f32 0.0, %v622
  %v624 = vpop.f32.mrf.mxu0
  %v625 = vpop.f32.mrf.mxu0
  %v626 = vadd.f32 0.0, %v625
  %v627 = vpop.f32.mrf.mxu0
  %628 = vmatprep.mubr.bf16.mxu0 0
  %629 = vmatmul.mubr.bf16.gmra.mxu0 %v371
  %v630 = vpop.f32.mrf.mxu0
  %v631 = vadd.f32 0.0, %v630
  %v632 = vpop.f32.mrf.mxu0
  %v633 = vpop.f32.mrf.mxu0
  %v634 = vadd.f32 0.0, %v633
  %v635 = vpop.f32.mrf.mxu0
  %636 = vmatprep.mubr.bf16.mxu0 0
  %637 = vmatmul.mubr.bf16.gmra.mxu0 %v374
  %v638 = vpop.f32.mrf.mxu0
  %v639 = vadd.f32 0.0, %v638
  %v640 = vpop.f32.mrf.mxu0
  %v641 = vpop.f32.mrf.mxu0
  %v642 = vadd.f32 0.0, %v641
  %v643 = vpop.f32.mrf.mxu0
  %644 = vmatprep.mubr.bf16.mxu0 0
  %645 = vmatmul.mubr.bf16.gmra.mxu0 %v377
  %v646 = vpop.f32.mrf.mxu0
  %v647 = vadd.f32 0.0, %v646
  %v648 = vpop.f32.mrf.mxu0
  %v649 = vpop.f32.mrf.mxu0
  %v650 = vadd.f32 0.0, %v649
  %v651 = vpop.f32.mrf.mxu0
  %652 = vmatprep.mubr.bf16.mxu0 0
  %653 = vmatmul.mubr.bf16.gmra.mxu0 %v380
  %v654 = vpop.f32.mrf.mxu0
  %v655 = vadd.f32 0.0, %v654
  %v656 = vpop.f32.mrf.mxu0
  %v657 = vpop.f32.mrf.mxu0
  %v658 = vadd.f32 0.0, %v657
  %v659 = vpop.f32.mrf.mxu0
  %660 = vmatprep.mubr.bf16.mxu0 0
  %661 = vmatmul.mubr.bf16.gmra.mxu0 %v383
  %v662 = vpop.f32.mrf.mxu0
  %v663 = vadd.f32 0.0, %v662
  %v664 = vpop.f32.mrf.mxu0
  %v665 = vpop.f32.mrf.mxu0
  %v666 = vadd.f32 0.0, %v665
  %v667 = vpop.f32.mrf.mxu0
  %668 = vmatprep.mubr.bf16.mxu0 0
  %669 = vmatmul.mubr.bf16.gmra.mxu0 %v386
  %v670 = vpop.f32.mrf.mxu0
  %v671 = vadd.f32 0.0, %v670
  %v672 = vpop.f32.mrf.mxu0
  %v673 = vpop.f32.mrf.mxu0
  %v674 = vadd.f32 0.0, %v673
  %v675 = vpop.f32.mrf.mxu0
  %676 = vmatprep.mubr.bf16.mxu0 0
  %677 = vmatmul.mubr.bf16.gmra.mxu0 %v389
  %v678 = vpop.f32.mrf.mxu0
  %v679 = vadd.f32 0.0, %v678
  %v680 = vpop.f32.mrf.mxu0
  %v681 = vpop.f32.mrf.mxu0
  %v682 = vadd.f32 0.0, %v681
  %v683 = vpop.f32.mrf.mxu0
  %684 = vmatprep.mubr.bf16.mxu0 0
  %685 = vmatmul.mubr.bf16.gmra.mxu0 %v392
  %v686 = vpop.f32.mrf.mxu0
  %v687 = vadd.f32 0.0, %v686
  %v688 = vpop.f32.mrf.mxu0
  %v689 = vpop.f32.mrf.mxu0
  %v690 = vadd.f32 0.0, %v689
  %v691 = vpop.f32.mrf.mxu0
  %692 = vmatprep.mubr.bf16.mxu0 0
  %693 = vmatmul.mubr.bf16.gmra.mxu0 %v395
  %v694 = vpop.f32.mrf.mxu0
  %v695 = vadd.f32 0.0, %v694
  %v696 = vpop.f32.mrf.mxu0
  %v697 = vpop.f32.mrf.mxu0
  %v698 = vadd.f32 0.0, %v697
  %v699 = vpop.f32.mrf.mxu0
  %700 = vmatprep.mubr.bf16.mxu0 0
  %701 = vmatmul.mubr.bf16.gmra.mxu0 %v398
  %v702 = vpop.f32.mrf.mxu0
  %v703 = vadd.f32 0.0, %v702
  %v704 = vpop.f32.mrf.mxu0
  %v705 = vpop.f32.mrf.mxu0
  %v706 = vadd.f32 0.0, %v705
  %v707 = vpop.f32.mrf.mxu0
  %708 = vmatprep.mubr.bf16.mxu0 0
  %709 = vmatmul.mubr.bf16.gmra.mxu0 %v401
  %v710 = vpop.f32.mrf.mxu0
  %v711 = vadd.f32 0.0, %v710
  %v712 = vpop.f32.mrf.mxu0
  %v713 = vpop.f32.mrf.mxu0
  %v714 = vadd.f32 0.0, %v713
  %v715 = vpop.f32.mrf.mxu0
  %716 = vmatprep.mubr.bf16.mxu0 0
  %717 = vmatmul.mubr.bf16.gmra.mxu0 %v404
  %v718 = vpop.f32.mrf.mxu0
  %v719 = vadd.f32 0.0, %v718
  %v720 = vpop.f32.mrf.mxu0
  %v721 = vpop.f32.mrf.mxu0
  %v722 = vadd.f32 0.0, %v721
  %v723 = vpop.f32.mrf.mxu0
  %724 = vmatprep.mubr.bf16.mxu0 0
  %725 = vmatmul.mubr.bf16.gmra.mxu0 %v407
  %v726 = vpop.f32.mrf.mxu0
  %v727 = vadd.f32 0.0, %v726
  %v728 = vpop.f32.mrf.mxu0
  %v729 = vpop.f32.mrf.mxu0
  %v730 = vadd.f32 0.0, %v729
  %v731 = vpop.f32.mrf.mxu0
  %732 = vmatprep.mubr.bf16.mxu0 0
  %733 = vmatmul.mubr.bf16.gmra.mxu0 %v410
  %v734 = vpop.f32.mrf.mxu0
  %v735 = vadd.f32 0.0, %v734
  %v736 = vpop.f32.mrf.mxu0
  %v737 = vpop.f32.mrf.mxu0
  %v738 = vpop.f32.mrf.mxu0
  %739 = vdwg.mxu0
  %v740 = vpack.c.bf16 %v450, %v447
  %v741 = vpack.c.bf16 %v458, %v455
  %v742 = vpack.c.bf16 %v466, %v463
  %v743 = vpack.c.bf16 %v474, %v471
  %v744 = vpack.c.bf16 %v482, %v479
  %v745 = vpack.c.bf16 %v490, %v487
  %v746 = vpack.c.bf16 %v498, %v495
  %v747 = vpack.c.bf16 %v506, %v503
  %v748 = vpack.c.bf16 %v514, %v511
  %v749 = vpack.c.bf16 %v522, %v519
  %v750 = vpack.c.bf16 %v530, %v527
  %v751 = vpack.c.bf16 %v538, %v535
  %v752 = vpack.c.bf16 %v546, %v543
  %v753 = vpack.c.bf16 %v554, %v551
  %v754 = vpack.c.bf16 %v562, %v559
  %v755 = vpack.c.bf16 %v570, %v567
  %v756 = vpack.c.bf16 %v578, %v575
  %v757 = vpack.c.bf16 %v586, %v583
  %v758 = vpack.c.bf16 %v594, %v591
  %v759 = vpack.c.bf16 %v602, %v599
  %v760 = vpack.c.bf16 %v610, %v607
  %v761 = vpack.c.bf16 %v618, %v615
  %v762 = vpack.c.bf16 %v626, %v623
  %v763 = vpack.c.bf16 %v634, %v631
  %v764 = vpack.c.bf16 %v642, %v639
  %v765 = vpack.c.bf16 %v650, %v647
  %v766 = vpack.c.bf16 %v658, %v655
  %v767 = vpack.c.bf16 %v666, %v663
  %v768 = vpack.c.bf16 %v674, %v671
  %v769 = vpack.c.bf16 %v682, %v679
  %v770 = vpack.c.bf16 %v690, %v687
  %v771 = vpack.c.bf16 %v698, %v695
  %v772 = vpack.c.bf16 %v706, %v703
  %v773 = vpack.c.bf16 %v714, %v711
  %v774 = vpack.c.bf16 %v722, %v719
  %v775 = vpack.c.bf16 %v730, %v727
  %v776 = vpack.c.bf16 %v735, %v735
  %v814 = vunpack.c.l.b16 %v740
  %v815 = vunpack.c.h.b16 %v740
  %v816 = vunpack.c.l.b16 %v741
  %v817 = vunpack.c.h.b16 %v741
  %v818 = vunpack.c.l.b16 %v742
  %v819 = vunpack.c.h.b16 %v742
  %v820 = vunpack.c.l.b16 %v743
  %v821 = vunpack.c.h.b16 %v743
  %v822 = vunpack.c.l.b16 %v744
  %v823 = vunpack.c.h.b16 %v744
  %v824 = vunpack.c.l.b16 %v745
  %v825 = vunpack.c.h.b16 %v745
  %v826 = vunpack.c.l.b16 %v746
  %v827 = vunpack.c.h.b16 %v746
  %v828 = vunpack.c.l.b16 %v747
  %v829 = vunpack.c.h.b16 %v747
  %v830 = vunpack.c.l.b16 %v748
  %v831 = vunpack.c.h.b16 %v748
  %v832 = vunpack.c.l.b16 %v749
  %v833 = vunpack.c.h.b16 %v749
  %v834 = vunpack.c.l.b16 %v750
  %v835 = vunpack.c.h.b16 %v750
  %v836 = vunpack.c.l.b16 %v751
  %v837 = vunpack.c.h.b16 %v751
  %v838 = vunpack.c.l.b16 %v752
  %v839 = vunpack.c.h.b16 %v752
  %v840 = vunpack.c.l.b16 %v753
  %v841 = vunpack.c.h.b16 %v753
  %v842 = vunpack.c.l.b16 %v754
  %v843 = vunpack.c.h.b16 %v754
  %v844 = vunpack.c.l.b16 %v755
  %v845 = vunpack.c.h.b16 %v755
  %v846 = vunpack.c.l.b16 %v756
  %v847 = vunpack.c.h.b16 %v756
  %v848 = vunpack.c.l.b16 %v757
  %v849 = vunpack.c.h.b16 %v757
  %v850 = vunpack.c.l.b16 %v758
  %v851 = vunpack.c.h.b16 %v758
  %v852 = vunpack.c.l.b16 %v759
  %v853 = vunpack.c.h.b16 %v759
  %v854 = vunpack.c.l.b16 %v760
  %v855 = vunpack.c.h.b16 %v760
  %v856 = vunpack.c.l.b16 %v761
  %v857 = vunpack.c.h.b16 %v761
  %v858 = vunpack.c.l.b16 %v762
  %v859 = vunpack.c.h.b16 %v762
  %v860 = vunpack.c.l.b16 %v763
  %v861 = vunpack.c.h.b16 %v763
  %v862 = vunpack.c.l.b16 %v764
  %v863 = vunpack.c.h.b16 %v764
  %v864 = vunpack.c.l.b16 %v765
  %v865 = vunpack.c.h.b16 %v765
  %v866 = vunpack.c.l.b16 %v766
  %v867 = vunpack.c.h.b16 %v766
  %v868 = vunpack.c.l.b16 %v767
  %v869 = vunpack.c.h.b16 %v767
  %v870 = vunpack.c.l.b16 %v768
  %v871 = vunpack.c.h.b16 %v768
  %v872 = vunpack.c.l.b16 %v769
  %v873 = vunpack.c.h.b16 %v769
  %v874 = vunpack.c.l.b16 %v770
  %v875 = vunpack.c.h.b16 %v770
  %v876 = vunpack.c.l.b16 %v771
  %v877 = vunpack.c.h.b16 %v771
  %v878 = vunpack.c.l.b16 %v772
  %v879 = vunpack.c.h.b16 %v772
  %v880 = vunpack.c.l.b16 %v773
  %v881 = vunpack.c.h.b16 %v773
  %v882 = vunpack.c.l.b16 %v774
  %v883 = vunpack.c.h.b16 %v774
  %v884 = vunpack.c.l.b16 %v775
  %v885 = vunpack.c.h.b16 %v775
  %v886 = vunpack.c.l.b16 %v776
  %v887 = vpack.c.b16 %v814, %v814
  %v888 = vpack.c.b16 %v815, %v815
  %v889 = vpack.c.b16 %v816, %v816
  %v890 = vpack.c.b16 %v817, %v817
  %v891 = vpack.c.b16 %v818, %v818
  %v892 = vpack.c.b16 %v819, %v819
  %v893 = vpack.c.b16 %v820, %v820
  %v894 = vpack.c.b16 %v821, %v821
  %v895 = vpack.c.b16 %v822, %v822
  %v896 = vpack.c.b16 %v823, %v823
  %v897 = vpack.c.b16 %v824, %v824
  %v898 = vpack.c.b16 %v825, %v825
  %v899 = vpack.c.b16 %v826, %v826
  %v900 = vpack.c.b16 %v827, %v827
  %v901 = vpack.c.b16 %v828, %v828
  %v902 = vpack.c.b16 %v829, %v829
  %v903 = vpack.c.b16 %v830, %v830
  %v904 = vpack.c.b16 %v831, %v831
  %v905 = vpack.c.b16 %v832, %v832
  %v906 = vpack.c.b16 %v833, %v833
  %v907 = vpack.c.b16 %v834, %v834
  %v908 = vpack.c.b16 %v835, %v835
  %v909 = vpack.c.b16 %v836, %v836
  %v910 = vpack.c.b16 %v837, %v837
  %v911 = vpack.c.b16 %v838, %v838
  %v912 = vpack.c.b16 %v839, %v839
  %v913 = vpack.c.b16 %v840, %v840
  %v914 = vpack.c.b16 %v841, %v841
  %v915 = vpack.c.b16 %v842, %v842
  %v916 = vpack.c.b16 %v843, %v843
  %v917 = vpack.c.b16 %v844, %v844
  %v918 = vpack.c.b16 %v845, %v845
  %v919 = vpack.c.b16 %v846, %v846
  %v920 = vpack.c.b16 %v847, %v847
  %v921 = vpack.c.b16 %v848, %v848
  %v922 = vpack.c.b16 %v849, %v849
  %v923 = vpack.c.b16 %v850, %v850
  %v924 = vpack.c.b16 %v851, %v851
  %v925 = vpack.c.b16 %v852, %v852
  %v926 = vpack.c.b16 %v853, %v853
  %v927 = vpack.c.b16 %v854, %v854
  %v928 = vpack.c.b16 %v855, %v855
  %v929 = vpack.c.b16 %v856, %v856
  %v930 = vpack.c.b16 %v857, %v857
  %v931 = vpack.c.b16 %v858, %v858
  %v932 = vpack.c.b16 %v859, %v859
  %v933 = vpack.c.b16 %v860, %v860
  %v934 = vpack.c.b16 %v861, %v861
  %v935 = vpack.c.b16 %v862, %v862
  %v936 = vpack.c.b16 %v863, %v863
  %v937 = vpack.c.b16 %v864, %v864
  %v938 = vpack.c.b16 %v865, %v865
  %v939 = vpack.c.b16 %v866, %v866
  %v940 = vpack.c.b16 %v867, %v867
  %v941 = vpack.c.b16 %v868, %v868
  %v942 = vpack.c.b16 %v869, %v869
  %v943 = vpack.c.b16 %v870, %v870
  %v944 = vpack.c.b16 %v871, %v871
  %v945 = vpack.c.b16 %v872, %v872
  %v946 = vpack.c.b16 %v873, %v873
  %v947 = vpack.c.b16 %v874, %v874
  %v948 = vpack.c.b16 %v875, %v875
  %v949 = vpack.c.b16 %v876, %v876
  %v950 = vpack.c.b16 %v877, %v877
  %v951 = vpack.c.b16 %v878, %v878
  %v952 = vpack.c.b16 %v879, %v879
  %v953 = vpack.c.b16 %v880, %v880
  %v954 = vpack.c.b16 %v881, %v881
  %v955 = vpack.c.b16 %v882, %v882
  %v956 = vpack.c.b16 %v883, %v883
  %v957 = vpack.c.b16 %v884, %v884
  %v958 = vpack.c.b16 %v885, %v885
  %v959 = vpack.c.b16 %v886, %v886
  %vm1033 = vcmask 257024
  %1034 = vst.msk [vmem:[%s2] sm:$0xf] %vm1033, %v887
  %1035 = vst.msk [vmem:[%s2 + $0x4] sm:$0xf] %vm1033, %v888
  %1036 = vst.msk [vmem:[%s2 + $0x8] sm:$0xf] %vm1033, %v889
  %1037 = vst.msk [vmem:[%s2 + $0xc] sm:$0xf] %vm1033, %v890
  %1038 = vst.msk [vmem:[%s2 + $0x10] sm:$0xf] %vm1033, %v891
  %1039 = vst.msk [vmem:[%s2 + $0x14] sm:$0xf] %vm1033, %v892
  %1040 = vst.msk [vmem:[%s2 + $0x18] sm:$0xf] %vm1033, %v893
  %1041 = vst.msk [vmem:[%s2 + $0x1c] sm:$0xf] %vm1033, %v894
  %1042 = vst.msk [vmem:[%s2 + $0x20] sm:$0xf] %vm1033, %v895
  %1043 = vst.msk [vmem:[%s2 + $0x24] sm:$0xf] %vm1033, %v896
  %1044 = vst.msk [vmem:[%s2 + $0x28] sm:$0xf] %vm1033, %v897
  %1045 = vst.msk [vmem:[%s2 + $0x2c] sm:$0xf] %vm1033, %v898
  %1046 = vst.msk [vmem:[%s2 + $0x30] sm:$0xf] %vm1033, %v899
  %1047 = vst.msk [vmem:[%s2 + $0x34] sm:$0xf] %vm1033, %v900
  %1048 = vst.msk [vmem:[%s2 + $0x38] sm:$0xf] %vm1033, %v901
  %1049 = vst.msk [vmem:[%s2 + $0x3c] sm:$0xf] %vm1033, %v902
  %1050 = vst.msk [vmem:[%s2 + $0x40] sm:$0xf] %vm1033, %v903
  %1051 = vst.msk [vmem:[%s2 + $0x44] sm:$0xf] %vm1033, %v904
  %1052 = vst.msk [vmem:[%s2 + $0x48] sm:$0xf] %vm1033, %v905
  %1053 = vst.msk [vmem:[%s2 + $0x4c] sm:$0xf] %vm1033, %v906
  %1054 = vst.msk [vmem:[%s2 + $0x50] sm:$0xf] %vm1033, %v907
  %1055 = vst.msk [vmem:[%s2 + $0x54] sm:$0xf] %vm1033, %v908
  %1056 = vst.msk [vmem:[%s2 + $0x58] sm:$0xf] %vm1033, %v909
  %1057 = vst.msk [vmem:[%s2 + $0x5c] sm:$0xf] %vm1033, %v910
  %1058 = vst.msk [vmem:[%s2 + $0x60] sm:$0xf] %vm1033, %v911
  %1059 = vst.msk [vmem:[%s2 + $0x64] sm:$0xf] %vm1033, %v912
  %1060 = vst.msk [vmem:[%s2 + $0x68] sm:$0xf] %vm1033, %v913
  %1061 = vst.msk [vmem:[%s2 + $0x6c] sm:$0xf] %vm1033, %v914
  %1062 = vst.msk [vmem:[%s2 + $0x70] sm:$0xf] %vm1033, %v915
  %1063 = vst.msk [vmem:[%s2 + $0x74] sm:$0xf] %vm1033, %v916
  %1064 = vst.msk [vmem:[%s2 + $0x78] sm:$0xf] %vm1033, %v917
  %1065 = vst.msk [vmem:[%s2 + $0x7c] sm:$0xf] %vm1033, %v918
  %1066 = vst.msk [vmem:[%s2 + $0x80] sm:$0xf] %vm1033, %v919
  %1067 = vst.msk [vmem:[%s2 + $0x84] sm:$0xf] %vm1033, %v920
  %1068 = vst.msk [vmem:[%s2 + $0x88] sm:$0xf] %vm1033, %v921
  %1069 = vst.msk [vmem:[%s2 + $0x8c] sm:$0xf] %vm1033, %v922
  %1070 = vst.msk [vmem:[%s2 + $0x90] sm:$0xf] %vm1033, %v923
  %1071 = vst.msk [vmem:[%s2 + $0x94] sm:$0xf] %vm1033, %v924
  %1072 = vst.msk [vmem:[%s2 + $0x98] sm:$0xf] %vm1033, %v925
  %1073 = vst.msk [vmem:[%s2 + $0x9c] sm:$0xf] %vm1033, %v926
  %1074 = vst.msk [vmem:[%s2 + $0xa0] sm:$0xf] %vm1033, %v927
  %1075 = vst.msk [vmem:[%s2 + $0xa4] sm:$0xf] %vm1033, %v928
  %1076 = vst.msk [vmem:[%s2 + $0xa8] sm:$0xf] %vm1033, %v929
  %1077 = vst.msk [vmem:[%s2 + $0xac] sm:$0xf] %vm1033, %v930
  %1078 = vst.msk [vmem:[%s2 + $0xb0] sm:$0xf] %vm1033, %v931
  %1079 = vst.msk [vmem:[%s2 + $0xb4] sm:$0xf] %vm1033, %v932
  %1080 = vst.msk [vmem:[%s2 + $0xb8] sm:$0xf] %vm1033, %v933
  %1081 = vst.msk [vmem:[%s2 + $0xbc] sm:$0xf] %vm1033, %v934
  %1082 = vst.msk [vmem:[%s2 + $0xc0] sm:$0xf] %vm1033, %v935
  %1083 = vst.msk [vmem:[%s2 + $0xc4] sm:$0xf] %vm1033, %v936
  %1084 = vst.msk [vmem:[%s2 + $0xc8] sm:$0xf] %vm1033, %v937
  %1085 = vst.msk [vmem:[%s2 + $0xcc] sm:$0xf] %vm1033, %v938
  %1086 = vst.msk [vmem:[%s2 + $0xd0] sm:$0xf] %vm1033, %v939
  %1087 = vst.msk [vmem:[%s2 + $0xd4] sm:$0xf] %vm1033, %v940
  %1088 = vst.msk [vmem:[%s2 + $0xd8] sm:$0xf] %vm1033, %v941
  %1089 = vst.msk [vmem:[%s2 + $0xdc] sm:$0xf] %vm1033, %v942
  %1090 = vst.msk [vmem:[%s2 + $0xe0] sm:$0xf] %vm1033, %v943
  %1091 = vst.msk [vmem:[%s2 + $0xe4] sm:$0xf] %vm1033, %v944
  %1092 = vst.msk [vmem:[%s2 + $0xe8] sm:$0xf] %vm1033, %v945
  %1093 = vst.msk [vmem:[%s2 + $0xec] sm:$0xf] %vm1033, %v946
  %1094 = vst.msk [vmem:[%s2 + $0xf0] sm:$0xf] %vm1033, %v947
  %1095 = vst.msk [vmem:[%s2 + $0xf4] sm:$0xf] %vm1033, %v948
  %1096 = vst.msk [vmem:[%s2 + $0xf8] sm:$0xf] %vm1033, %v949
  %1097 = vst.msk [vmem:[%s2 + $0xfc] sm:$0xf] %vm1033, %v950
  %1098 = vst.msk [vmem:[%s2 + $0x100] sm:$0xf] %vm1033, %v951
  %1099 = vst.msk [vmem:[%s2 + $0x104] sm:$0xf] %vm1033, %v952
  %1100 = vst.msk [vmem:[%s2 + $0x108] sm:$0xf] %vm1033, %v953
  %1101 = vst.msk [vmem:[%s2 + $0x10c] sm:$0xf] %vm1033, %v954
  %1102 = vst.msk [vmem:[%s2 + $0x110] sm:$0xf] %vm1033, %v955
  %1103 = vst.msk [vmem:[%s2 + $0x114] sm:$0xf] %vm1033, %v956
  %1104 = vst.msk [vmem:[%s2 + $0x118] sm:$0xf] %vm1033, %v957
  %1105 = vst.msk [vmem:[%s2 + $0x11c] sm:$0xf] %vm1033, %v958
  %vm1106 = vcmask 253952
  %1107 = vst.msk [vmem:[%s2 + $0x120] sm:$0x1] %vm1106, %v959
  // Predicated region
  $region10: #{generator_forward.15} parent=0 // pred_check
    _
  $region11: #{generator_forward.15} parent=0 // pred_check_branch
    %1109 = sbr.rel (0) target = $region13
  $region12: #{generator_forward.15} parent=0 // pred_region
    _
  $region13: #{generator_forward.15} parent=0 // pred_fallthru
    _
  // Predicated region
  $region14: #{generator_forward.15} parent=0 // pred_check
    _
  $region15: #{generator_forward.15} parent=0 // pred_check_branch
    %1111 = sbr.rel (0) target = $region17
  $region16: #{generator_forward.15} parent=0 // pred_region
    _
  $region17: #{generator_forward.15} parent=0 // pred_fallthru
    _

// kernel: generator_forward.16
$region0: #{generator_forward.16}
  #allocation0 [shape = 'u32[]', space=smem, size = 0x4, offset = 0x4, fixed_abs, tag = 'smem constant byte address 0x4 - core index']
  #allocation1 [shape = 'u32[144,128]{1,0:T(1,128)}', space=vmem, size = 0x12000, scoped, tag = 'internal scratch']
  %s0 = inlined_call_operand.vmem [shape: bf16[64,256], index: 0, kind: input, shape index: {}]
  %s1 = inlined_call_operand.vmem [shape: f32[1,256], index: 1, kind: output, shape index: {0}]
  %s2 = inlined_call_operand.vmem [shape: f32[1,256], index: 2, kind: output, shape index: {1}]
  %3 = xla_tuple %s1, %s2
  %s4 = sld [smem:[#allocation0]]
  $region26: #{generator_forward.16} parent=0
    _
  %s6 = ssub.s32 1, %s4
  %s7 = scalar_select 0, %s6, %s4
  // Predicated region
  $region2: #{generator_forward.16} parent=0 // pred_check
    _
  $region3: #{generator_forward.16} parent=0 // pred_check_branch
    %9 = sbr.rel (0) target = $region5
  $region4: #{generator_forward.16} parent=0 // pred_region
    _
  $region5: #{generator_forward.16} parent=0 // pred_fallthru
    _
  %p10 = scmp.eq.s32.totalorder 0, 0
  // Predicated region
  $region6: #{generator_forward.16} parent=0 // pred_check
    %p11 = pneg %p10
  $region7: #{generator_forward.16} parent=0 // pred_check_branch
    %13 = sbr.rel (%p11) target = $region9
  $region8: #{generator_forward.16} parent=0 // pred_region
    %v14 = vlaneseq
    %vm15 = vcmp.ge.s32.totalorder %v14, 0
    %vm16 = vcmp.lt.s32.totalorder %v14, 256
    %vm17 = vmand %vm15, %vm16
    %18 = vst.msk [vmem:[%s1] sm:$0x3] %vm17, 0.0
    %19 = vst.msk [vmem:[%s2] sm:$0x3] %vm17, 0.0
  $region9: #{generator_forward.16} parent=0 // pred_fallthru
    _
  %v20 = vld [vmem:[%s0] sm:$0xff]
  %v21 = vld [vmem:[%s0 + $0x8] sm:$0xff]
  %v22 = vld [vmem:[%s0 + $0x10] sm:$0xff]
  %v23 = vld [vmem:[%s0 + $0x18] sm:$0xff]
  %v24 = vld [vmem:[%s0 + $0x20] sm:$0xff]
  %v25 = vld [vmem:[%s0 + $0x28] sm:$0xff]
  %v26 = vld [vmem:[%s0 + $0x30] sm:$0xff]
  %v27 = vld [vmem:[%s0 + $0x38] sm:$0xff]
  %v28 = vunpack.c.l.bf16 %v20
  %v29 = vunpack.c.h.bf16 %v20
  %v30 = vunpack.c.l.bf16 %v21
  %v31 = vunpack.c.h.bf16 %v21
  %v32 = vunpack.c.l.bf16 %v22
  %v33 = vunpack.c.h.bf16 %v22
  %v34 = vunpack.c.l.bf16 %v23
  %v35 = vunpack.c.h.bf16 %v23
  %v36 = vunpack.c.l.bf16 %v24
  %v37 = vunpack.c.h.bf16 %v24
  %v38 = vunpack.c.l.bf16 %v25
  %v39 = vunpack.c.h.bf16 %v25
  %v40 = vunpack.c.l.bf16 %v26
  %v41 = vunpack.c.h.bf16 %v26
  %v42 = vunpack.c.l.bf16 %v27
  %v43 = vunpack.c.h.bf16 %v27
  %v44 = vld [vmem:[%s1] sm:$0x3]
  %v45 = vadd.f32 %v28, %v30
  %v46 = vadd.f32 %v45, %v32
  %v47 = vadd.f32 %v46, %v34
  %v48 = vadd.f32 %v47, %v36
  %v49 = vadd.f32 %v48, %v38
  %v50 = vadd.f32 %v49, %v40
  %v51 = vadd.f32 %v50, %v42
  %v52 = vrot.slane %v51, 4
  %v53 = vadd.f32 %v51, %v52
  %v54 = vrot.slane %v53, 2
  %v55 = vadd.f32 %v53, %v54
  %v56 = vrot.slane %v55, 1
  %v57 = vadd.f32 %v55, %v56
  %v58 = vadd.f32 %v29, %v31
  %v59 = vadd.f32 %v58, %v33
  %v60 = vadd.f32 %v59, %v35
  %v61 = vadd.f32 %v60, %v37
  %v62 = vadd.f32 %v61, %v39
  %v63 = vadd.f32 %v62, %v41
  %v64 = vadd.f32 %v63, %v43
  %v65 = vrot.slane %v64, 4
  %v66 = vadd.f32 %v64, %v65
  %v67 = vrot.slane %v66, 2
  %v68 = vadd.f32 %v66, %v67
  %v69 = vrot.slane %v68, 1
  %v70 = vadd.f32 %v68, %v69
  %v73 = vcombine.low %v57, %v70
  %v75 = vunpack.c.l.s4 1966171168
  %v76 = vunpack.c.0.s8 %v75
  %v77 = vlaneseq
  %v78 = vshrl.u32 %v77, 7
  %v79 = vsub.s32 %v76, %v78
  %v80 = vrot.slane %v73, %v79
  %v82 = vunpack.c.l.s4 1966171168
  %v83 = vunpack.c.0.s8 %v82
  %v84 = vlaneseq
  %v85 = vshrl.u32 %v84, 7
  %v86 = vsub.s32 %v83, %v85
  %v87 = vrot.slane %v80, %v86
  %v89 = vadd.f32 %v44, %v87
  %v90 = vlaneseq
  %vm91 = vcmp.ge.s32.totalorder %v90, 0
  %vm92 = vcmp.lt.s32.totalorder %v90, 256
  %vm93 = vmand %vm91, %vm92
  %94 = vst.msk [vmem:[%s1] sm:$0x3] %vm93, %v89
  %v95 = vld [vmem:[%s2] sm:$0x3]
  %v96 = vmul.f32 %v28, %v28
  %v97 = vmul.f32 %v29, %v29
  %v98 = vmul.f32 %v30, %v30
  %v99 = vmul.f32 %v31, %v31
  %v100 = vmul.f32 %v32, %v32
  %v101 = vmul.f32 %v33, %v33
  %v102 = vmul.f32 %v34, %v34
  %v103 = vmul.f32 %v35, %v35
  %v104 = vmul.f32 %v36, %v36
  %v105 = vmul.f32 %v37, %v37
  %v106 = vmul.f32 %v38, %v38
  %v107 = vmul.f32 %v39, %v39
  %v108 = vmul.f32 %v40, %v40
  %v109 = vmul.f32 %v41, %v41
  %v110 = vmul.f32 %v42, %v42
  %v111 = vmul.f32 %v43, %v43
  %v112 = vadd.f32 %v96, %v98
  %v113 = vadd.f32 %v112, %v100
  %v114 = vadd.f32 %v113, %v102
  %v115 = vadd.f32 %v114, %v104
  %v116 = vadd.f32 %v115, %v106
  %v117 = vadd.f32 %v116, %v108
  %v118 = vadd.f32 %v117, %v110
  %v119 = vrot.slane %v118, 4
  %v120 = vadd.f32 %v118, %v119
  %v121 = vrot.slane %v120, 2
  %v122 = vadd.f32 %v120, %v121
  %v123 = vrot.slane %v122, 1
  %v124 = vadd.f32 %v122, %v123
  %v125 = vadd.f32 %v97, %v99
  %v126 = vadd.f32 %v125, %v101
  %v127 = vadd.f32 %v126, %v103
  %v128 = vadd.f32 %v127, %v105
  %v129 = vadd.f32 %v128, %v107
  %v130 = vadd.f32 %v129, %v109
  %v131 = vadd.f32 %v130, %v111
  %v132 = vrot.slane %v131, 4
  %v133 = vadd.f32 %v131, %v132
  %v134 = vrot.slane %v133, 2
  %v135 = vadd.f32 %v133, %v134
  %v136 = vrot.slane %v135, 1
  %v137 = vadd.f32 %v135, %v136
  %v140 = vcombine.low %v124, %v137
  %v142 = vunpack.c.l.s4 1966171168
  %v143 = vunpack.c.0.s8 %v142
  %v144 = vlaneseq
  %v145 = vshrl.u32 %v144, 7
  %v146 = vsub.s32 %v143, %v145
  %v147 = vrot.slane %v140, %v146
  %v149 = vunpack.c.l.s4 1966171168
  %v150 = vunpack.c.0.s8 %v149
  %v151 = vlaneseq
  %v152 = vshrl.u32 %v151, 7
  %v153 = vsub.s32 %v150, %v152
  %v154 = vrot.slane %v147, %v153
  %v156 = vadd.f32 %v95, %v154
  %157 = vst.msk [vmem:[%s2] sm:$0x3] %vm93, %v156
  // Predicated region
  $region10: #{generator_forward.16} parent=0 // pred_check
    _
  $region11: #{generator_forward.16} parent=0 // pred_check_branch
    %159 = sbr.rel (0) target = $region13
  $region12: #{generator_forward.16} parent=0 // pred_region
    _
  $region13: #{generator_forward.16} parent=0 // pred_fallthru
    _
  // Predicated region
  $region14: #{generator_forward.16} parent=0 // pred_check
    _
  $region15: #{generator_forward.16} parent=0 // pred_check_branch
    %161 = sbr.rel (0) target = $region17
  $region16: #{generator_forward.16} parent=0 // pred_region
    _
  $region17: #{generator_forward.16} parent=0 // pred_fallthru
    _
  // Predicated region
  $region18: #{generator_forward.16} parent=0 // pred_check
    _
  $region19: #{generator_forward.16} parent=0 // pred_check_branch
    %163 = sbr.rel (0) target = $region21
  $region20: #{generator_forward.16} parent=0 // pred_region
    _
  $region21: #{generator_forward.16} parent=0 // pred_fallthru
    _
  // Predicated region
  $region22: #{generator_forward.16} parent=0 // pred_check
    _
  $region23: #{generator_forward.16} parent=0 // pred_check_branch
    %165 = sbr.rel (0) target = $region25
  $region24: #{generator_forward.16} parent=0 // pred_region
    _
  $region25: #{generator_forward.16} parent=0 // pred_fallthru
    _

// kernel: generator_forward.17
$region0: #{generator_forward.17}
  #allocation0 [shape = 'u32[]', space=smem, size = 0x4, offset = 0x4, fixed_abs, tag = 'smem constant byte address 0x4 - core index']
  #allocation1 [shape = 'u32[144,128]{1,0:T(1,128)}', space=vmem, size = 0x12000, scoped, tag = 'internal scratch']
  %s0 = inlined_call_operand.vmem [shape: bf16[2178,32], index: 0, kind: input, shape index: {}]
  %s1 = inlined_call_operand.vmem [shape: bf16[32,128], index: 1, kind: input, shape index: {}]
  %s2 = inlined_call_operand.vmem [shape: f32[2178,128], index: 2, kind: output, shape index: {}]
  %s3 = sld [smem:[#allocation0]]
  $region18: #{generator_forward.17} parent=0
    _
  %s5 = ssub.s32 1, %s3
  %s6 = scalar_select 0, %s5, %s3
  // Predicated region
  $region2: #{generator_forward.17} parent=0 // pred_check
    _
  $region3: #{generator_forward.17} parent=0 // pred_check_branch
    %8 = sbr.rel (0) target = $region5
  $region4: #{generator_forward.17} parent=0 // pred_region
    _
  $region5: #{generator_forward.17} parent=0 // pred_fallthru
    _
  // Predicated region
  $region6: #{generator_forward.17} parent=0 // pred_check
    _
  $region7: #{generator_forward.17} parent=0 // pred_check_branch
    %10 = sbr.rel (0) target = $region9
  $region8: #{generator_forward.17} parent=0 // pred_region
    _
  $region9: #{generator_forward.17} parent=0 // pred_fallthru
    _
  %v12 = vld [vmem:[%s0] sm:$0xf]
  %v13 = vld [vmem:[%s0 + $0x4] sm:$0xf]
  %v14 = vld [vmem:[%s0 + $0x8] sm:$0xf]
  %v15 = vld [vmem:[%s0 + $0xc] sm:$0xf]
  %v16 = vld [vmem:[%s0 + $0x10] sm:$0xf]
  %v17 = vld [vmem:[%s0 + $0x14] sm:$0xf]
  %v18 = vld [vmem:[%s0 + $0x18] sm:$0xf]
  %v19 = vld [vmem:[%s0 + $0x1c] sm:$0xf]
  %v20 = vld [vmem:[%s0 + $0x20] sm:$0xf]
  %v21 = vld [vmem:[%s0 + $0x24] sm:$0xf]
  %v22 = vld [vmem:[%s0 + $0x28] sm:$0xf]
  %v23 = vld [vmem:[%s0 + $0x2c] sm:$0xf]
  %v24 = vld [vmem:[%s0 + $0x30] sm:$0xf]
  %v25 = vld [vmem:[%s0 + $0x34] sm:$0xf]
  %v26 = vld [vmem:[%s0 + $0x38] sm:$0xf]
  %v27 = vld [vmem:[%s0 + $0x3c] sm:$0xf]
  %v28 = vld [vmem:[%s0 + $0x40] sm:$0xf]
  %v29 = vld [vmem:[%s0 + $0x44] sm:$0xf]
  %v30 = vld [vmem:[%s0 + $0x48] sm:$0xf]
  %v31 = vld [vmem:[%s0 + $0x4c] sm:$0xf]
  %v32 = vld [vmem:[%s0 + $0x50] sm:$0xf]
  %v33 = vld [vmem:[%s0 + $0x54] sm:$0xf]
  %v34 = vld [vmem:[%s0 + $0x58] sm:$0xf]
  %v35 = vld [vmem:[%s0 + $0x5c] sm:$0xf]
  %v36 = vld [vmem:[%s0 + $0x60] sm:$0xf]
  %v37 = vld [vmem:[%s0 + $0x64] sm:$0xf]
  %v38 = vld [vmem:[%s0 + $0x68] sm:$0xf]
  %v39 = vld [vmem:[%s0 + $0x6c] sm:$0xf]
  %v40 = vld [vmem:[%s0 + $0x70] sm:$0xf]
  %v41 = vld [vmem:[%s0 + $0x74] sm:$0xf]
  %v42 = vld [vmem:[%s0 + $0x78] sm:$0xf]
  %v43 = vld [vmem:[%s0 + $0x7c] sm:$0xf]
  %v44 = vld [vmem:[%s0 + $0x80] sm:$0xf]
  %v45 = vld [vmem:[%s0 + $0x84] sm:$0xf]
  %v46 = vld [vmem:[%s0 + $0x88] sm:$0xf]
  %v47 = vld [vmem:[%s0 + $0x8c] sm:$0xf]
  %v48 = vld [vmem:[%s0 + $0x90] sm:$0xf]
  %v49 = vld [vmem:[%s0 + $0x94] sm:$0xf]
  %v50 = vld [vmem:[%s0 + $0x98] sm:$0xf]
  %v51 = vld [vmem:[%s0 + $0x9c] sm:$0xf]
  %v52 = vld [vmem:[%s0 + $0xa0] sm:$0xf]
  %v53 = vld [vmem:[%s0 + $0xa4] sm:$0xf]
  %v54 = vld [vmem:[%s0 + $0xa8] sm:$0xf]
  %v55 = vld [vmem:[%s0 + $0xac] sm:$0xf]
  %v56 = vld [vmem:[%s0 + $0xb0] sm:$0xf]
  %v57 = vld [vmem:[%s0 + $0xb4] sm:$0xf]
  %v58 = vld [vmem:[%s0 + $0xb8] sm:$0xf]
  %v59 = vld [vmem:[%s0 + $0xbc] sm:$0xf]
  %v60 = vld [vmem:[%s0 + $0xc0] sm:$0xf]
  %v61 = vld [vmem:[%s0 + $0xc4] sm:$0xf]
  %v62 = vld [vmem:[%s0 + $0xc8] sm:$0xf]
  %v63 = vld [vmem:[%s0 + $0xcc] sm:$0xf]
  %v64 = vld [vmem:[%s0 + $0xd0] sm:$0xf]
  %v65 = vld [vmem:[%s0 + $0xd4] sm:$0xf]
  %v66 = vld [vmem:[%s0 + $0xd8] sm:$0xf]
  %v67 = vld [vmem:[%s0 + $0xdc] sm:$0xf]
  %v68 = vld [vmem:[%s0 + $0xe0] sm:$0xf]
  %v69 = vld [vmem:[%s0 + $0xe4] sm:$0xf]
  %v70 = vld [vmem:[%s0 + $0xe8] sm:$0xf]
  %v71 = vld [vmem:[%s0 + $0xec] sm:$0xf]
  %v72 = vld [vmem:[%s0 + $0xf0] sm:$0xf]
  %v73 = vld [vmem:[%s0 + $0xf4] sm:$0xf]
  %v74 = vld [vmem:[%s0 + $0xf8] sm:$0xf]
  %v75 = vld [vmem:[%s0 + $0xfc] sm:$0xf]
  %v76 = vld [vmem:[%s0 + $0x100] sm:$0xf]
  %v77 = vld [vmem:[%s0 + $0x104] sm:$0xf]
  %v78 = vld [vmem:[%s0 + $0x108] sm:$0xf]
  %v79 = vld [vmem:[%s0 + $0x10c] sm:$0xf]
  %v80 = vld [vmem:[%s0 + $0x110] sm:$0xf]
  %v81 = vld [vmem:[%s0 + $0x114] sm:$0xf]
  %v82 = vld [vmem:[%s0 + $0x118] sm:$0xf]
  %v83 = vld [vmem:[%s0 + $0x11c] sm:$0xf]
  %v84 = vld [vmem:[%s0 + $0x120] sm:$0xf]
  %v85 = vld [vmem:[%s0 + $0x124] sm:$0xf]
  %v86 = vld [vmem:[%s0 + $0x128] sm:$0xf]
  %v87 = vld [vmem:[%s0 + $0x12c] sm:$0xf]
  %v88 = vld [vmem:[%s0 + $0x130] sm:$0xf]
  %v89 = vld [vmem:[%s0 + $0x134] sm:$0xf]
  %v90 = vld [vmem:[%s0 + $0x138] sm:$0xf]
  %v91 = vld [vmem:[%s0 + $0x13c] sm:$0xf]
  %v92 = vld [vmem:[%s0 + $0x140] sm:$0xf]
  %v93 = vld [vmem:[%s0 + $0x144] sm:$0xf]
  %v94 = vld [vmem:[%s0 + $0x148] sm:$0xf]
  %v95 = vld [vmem:[%s0 + $0x14c] sm:$0xf]
  %v96 = vld [vmem:[%s0 + $0x150] sm:$0xf]
  %v97 = vld [vmem:[%s0 + $0x154] sm:$0xf]
  %v98 = vld [vmem:[%s0 + $0x158] sm:$0xf]
  %v99 = vld [vmem:[%s0 + $0x15c] sm:$0xf]
  %v100 = vld [vmem:[%s0 + $0x160] sm:$0xf]
  %v101 = vld [vmem:[%s0 + $0x164] sm:$0xf]
  %v102 = vld [vmem:[%s0 + $0x168] sm:$0xf]
  %v103 = vld [vmem:[%s0 + $0x16c] sm:$0xf]
  %v104 = vld [vmem:[%s0 + $0x170] sm:$0xf]
  %v105 = vld [vmem:[%s0 + $0x174] sm:$0xf]
  %v106 = vld [vmem:[%s0 + $0x178] sm:$0xf]
  %v107 = vld [vmem:[%s0 + $0x17c] sm:$0xf]
  %v108 = vld [vmem:[%s0 + $0x180] sm:$0xf]
  %v109 = vld [vmem:[%s0 + $0x184] sm:$0xf]
  %v110 = vld [vmem:[%s0 + $0x188] sm:$0xf]
  %v111 = vld [vmem:[%s0 + $0x18c] sm:$0xf]
  %v112 = vld [vmem:[%s0 + $0x190] sm:$0xf]
  %v113 = vld [vmem:[%s0 + $0x194] sm:$0xf]
  %v114 = vld [vmem:[%s0 + $0x198] sm:$0xf]
  %v115 = vld [vmem:[%s0 + $0x19c] sm:$0xf]
  %v116 = vld [vmem:[%s0 + $0x1a0] sm:$0xf]
  %v117 = vld [vmem:[%s0 + $0x1a4] sm:$0xf]
  %v118 = vld [vmem:[%s0 + $0x1a8] sm:$0xf]
  %v119 = vld [vmem:[%s0 + $0x1ac] sm:$0xf]
  %v120 = vld [vmem:[%s0 + $0x1b0] sm:$0xf]
  %v121 = vld [vmem:[%s0 + $0x1b4] sm:$0xf]
  %v122 = vld [vmem:[%s0 + $0x1b8] sm:$0xf]
  %v123 = vld [vmem:[%s0 + $0x1bc] sm:$0xf]
  %v124 = vld [vmem:[%s0 + $0x1c0] sm:$0xf]
  %v125 = vld [vmem:[%s0 + $0x1c4] sm:$0xf]
  %v126 = vld [vmem:[%s0 + $0x1c8] sm:$0xf]
  %v127 = vld [vmem:[%s0 + $0x1cc] sm:$0xf]
  %v128 = vld [vmem:[%s0 + $0x1d0] sm:$0xf]
  %v129 = vld [vmem:[%s0 + $0x1d4] sm:$0xf]
  %v130 = vld [vmem:[%s0 + $0x1d8] sm:$0xf]
  %v131 = vld [vmem:[%s0 + $0x1dc] sm:$0xf]
  %v132 = vld [vmem:[%s0 + $0x1e0] sm:$0xf]
  %v133 = vld [vmem:[%s0 + $0x1e4] sm:$0xf]
  %v134 = vld [vmem:[%s0 + $0x1e8] sm:$0xf]
  %v135 = vld [vmem:[%s0 + $0x1ec] sm:$0xf]
  %v136 = vld [vmem:[%s0 + $0x1f0] sm:$0xf]
  %v137 = vld [vmem:[%s0 + $0x1f4] sm:$0xf]
  %v138 = vld [vmem:[%s0 + $0x1f8] sm:$0xf]
  %v139 = vld [vmem:[%s0 + $0x1fc] sm:$0xf]
  %v140 = vld [vmem:[%s0 + $0x200] sm:$0xf]
  %v141 = vld [vmem:[%s0 + $0x204] sm:$0xf]
  %v142 = vld [vmem:[%s0 + $0x208] sm:$0xf]
  %v143 = vld [vmem:[%s0 + $0x20c] sm:$0xf]
  %v144 = vld [vmem:[%s0 + $0x210] sm:$0xf]
  %v145 = vld [vmem:[%s0 + $0x214] sm:$0xf]
  %v146 = vld [vmem:[%s0 + $0x218] sm:$0xf]
  %v147 = vld [vmem:[%s0 + $0x21c] sm:$0xf]
  %v148 = vld [vmem:[%s0 + $0x220] sm:$0xf]
  %v149 = vld [vmem:[%s0 + $0x224] sm:$0xf]
  %v150 = vld [vmem:[%s0 + $0x228] sm:$0xf]
  %v151 = vld [vmem:[%s0 + $0x22c] sm:$0xf]
  %v152 = vld [vmem:[%s0 + $0x230] sm:$0xf]
  %v153 = vld [vmem:[%s0 + $0x234] sm:$0xf]
  %v154 = vld [vmem:[%s0 + $0x238] sm:$0xf]
  %v155 = vld [vmem:[%s0 + $0x23c] sm:$0xf]
  %v156 = vld [vmem:[%s0 + $0x240] sm:$0xf]
  %v157 = vld [vmem:[%s0 + $0x244] sm:$0xf]
  %v158 = vld [vmem:[%s0 + $0x248] sm:$0xf]
  %v159 = vld [vmem:[%s0 + $0x24c] sm:$0xf]
  %v160 = vld [vmem:[%s0 + $0x250] sm:$0xf]
  %v161 = vld [vmem:[%s0 + $0x254] sm:$0xf]
  %v162 = vld [vmem:[%s0 + $0x258] sm:$0xf]
  %v163 = vld [vmem:[%s0 + $0x25c] sm:$0xf]
  %v164 = vld [vmem:[%s0 + $0x260] sm:$0xf]
  %v165 = vld [vmem:[%s0 + $0x264] sm:$0xf]
  %v166 = vld [vmem:[%s0 + $0x268] sm:$0xf]
  %v167 = vld [vmem:[%s0 + $0x26c] sm:$0xf]
  %v168 = vld [vmem:[%s0 + $0x270] sm:$0xf]
  %v169 = vld [vmem:[%s0 + $0x274] sm:$0xf]
  %v170 = vld [vmem:[%s0 + $0x278] sm:$0xf]
  %v171 = vld [vmem:[%s0 + $0x27c] sm:$0xf]
  %v172 = vld [vmem:[%s0 + $0x280] sm:$0xf]
  %v173 = vld [vmem:[%s0 + $0x284] sm:$0xf]
  %v174 = vld [vmem:[%s0 + $0x288] sm:$0xf]
  %v175 = vld [vmem:[%s0 + $0x28c] sm:$0xf]
  %v176 = vld [vmem:[%s0 + $0x290] sm:$0xf]
  %v177 = vld [vmem:[%s0 + $0x294] sm:$0xf]
  %v178 = vld [vmem:[%s0 + $0x298] sm:$0xf]
  %v179 = vld [vmem:[%s0 + $0x29c] sm:$0xf]
  %v180 = vld [vmem:[%s0 + $0x2a0] sm:$0xf]
  %v181 = vld [vmem:[%s0 + $0x2a4] sm:$0xf]
  %v182 = vld [vmem:[%s0 + $0x2a8] sm:$0xf]
  %v183 = vld [vmem:[%s0 + $0x2ac] sm:$0xf]
  %v184 = vld [vmem:[%s0 + $0x2b0] sm:$0xf]
  %v185 = vld [vmem:[%s0 + $0x2b4] sm:$0xf]
  %v186 = vld [vmem:[%s0 + $0x2b8] sm:$0xf]
  %v187 = vld [vmem:[%s0 + $0x2bc] sm:$0xf]
  %v188 = vld [vmem:[%s0 + $0x2c0] sm:$0xf]
  %v189 = vld [vmem:[%s0 + $0x2c4] sm:$0xf]
  %v190 = vld [vmem:[%s0 + $0x2c8] sm:$0xf]
  %v191 = vld [vmem:[%s0 + $0x2cc] sm:$0xf]
  %v192 = vld [vmem:[%s0 + $0x2d0] sm:$0xf]
  %v193 = vld [vmem:[%s0 + $0x2d4] sm:$0xf]
  %v194 = vld [vmem:[%s0 + $0x2d8] sm:$0xf]
  %v195 = vld [vmem:[%s0 + $0x2dc] sm:$0xf]
  %v196 = vld [vmem:[%s0 + $0x2e0] sm:$0xf]
  %v197 = vld [vmem:[%s0 + $0x2e4] sm:$0xf]
  %v198 = vld [vmem:[%s0 + $0x2e8] sm:$0xf]
  %v199 = vld [vmem:[%s0 + $0x2ec] sm:$0xf]
  %v200 = vld [vmem:[%s0 + $0x2f0] sm:$0xf]
  %v201 = vld [vmem:[%s0 + $0x2f4] sm:$0xf]
  %v202 = vld [vmem:[%s0 + $0x2f8] sm:$0xf]
  %v203 = vld [vmem:[%s0 + $0x2fc] sm:$0xf]
  %v204 = vld [vmem:[%s0 + $0x300] sm:$0xf]
  %v205 = vld [vmem:[%s0 + $0x304] sm:$0xf]
  %v206 = vld [vmem:[%s0 + $0x308] sm:$0xf]
  %v207 = vld [vmem:[%s0 + $0x30c] sm:$0xf]
  %v208 = vld [vmem:[%s0 + $0x310] sm:$0xf]
  %v209 = vld [vmem:[%s0 + $0x314] sm:$0xf]
  %v210 = vld [vmem:[%s0 + $0x318] sm:$0xf]
  %v211 = vld [vmem:[%s0 + $0x31c] sm:$0xf]
  %v212 = vld [vmem:[%s0 + $0x320] sm:$0xf]
  %v213 = vld [vmem:[%s0 + $0x324] sm:$0xf]
  %v214 = vld [vmem:[%s0 + $0x328] sm:$0xf]
  %v215 = vld [vmem:[%s0 + $0x32c] sm:$0xf]
  %v216 = vld [vmem:[%s0 + $0x330] sm:$0xf]
  %v217 = vld [vmem:[%s0 + $0x334] sm:$0xf]
  %v218 = vld [vmem:[%s0 + $0x338] sm:$0xf]
  %v219 = vld [vmem:[%s0 + $0x33c] sm:$0xf]
  %v220 = vld [vmem:[%s0 + $0x340] sm:$0xf]
  %v221 = vld [vmem:[%s0 + $0x344] sm:$0xf]
  %v222 = vld [vmem:[%s0 + $0x348] sm:$0xf]
  %v223 = vld [vmem:[%s0 + $0x34c] sm:$0xf]
  %v224 = vld [vmem:[%s0 + $0x350] sm:$0xf]
  %v225 = vld [vmem:[%s0 + $0x354] sm:$0xf]
  %v226 = vld [vmem:[%s0 + $0x358] sm:$0xf]
  %v227 = vld [vmem:[%s0 + $0x35c] sm:$0xf]
  %v228 = vld [vmem:[%s0 + $0x360] sm:$0xf]
  %v229 = vld [vmem:[%s0 + $0x364] sm:$0xf]
  %v230 = vld [vmem:[%s0 + $0x368] sm:$0xf]
  %v231 = vld [vmem:[%s0 + $0x36c] sm:$0xf]
  %v232 = vld [vmem:[%s0 + $0x370] sm:$0xf]
  %v233 = vld [vmem:[%s0 + $0x374] sm:$0xf]
  %v234 = vld [vmem:[%s0 + $0x378] sm:$0xf]
  %v235 = vld [vmem:[%s0 + $0x37c] sm:$0xf]
  %v236 = vld [vmem:[%s0 + $0x380] sm:$0xf]
  %v237 = vld [vmem:[%s0 + $0x384] sm:$0xf]
  %v238 = vld [vmem:[%s0 + $0x388] sm:$0xf]
  %v239 = vld [vmem:[%s0 + $0x38c] sm:$0xf]
  %v240 = vld [vmem:[%s0 + $0x390] sm:$0xf]
  %v241 = vld [vmem:[%s0 + $0x394] sm:$0xf]
  %v242 = vld [vmem:[%s0 + $0x398] sm:$0xf]
  %v243 = vld [vmem:[%s0 + $0x39c] sm:$0xf]
  %v244 = vld [vmem:[%s0 + $0x3a0] sm:$0xf]
  %v245 = vld [vmem:[%s0 + $0x3a4] sm:$0xf]
  %v246 = vld [vmem:[%s0 + $0x3a8] sm:$0xf]
  %v247 = vld [vmem:[%s0 + $0x3ac] sm:$0xf]
  %v248 = vld [vmem:[%s0 + $0x3b0] sm:$0xf]
  %v249 = vld [vmem:[%s0 + $0x3b4] sm:$0xf]
  %v250 = vld [vmem:[%s0 + $0x3b8] sm:$0xf]
  %v251 = vld [vmem:[%s0 + $0x3bc] sm:$0xf]
  %v252 = vld [vmem:[%s0 + $0x3c0] sm:$0xf]
  %v253 = vld [vmem:[%s0 + $0x3c4] sm:$0xf]
  %v254 = vld [vmem:[%s0 + $0x3c8] sm:$0xf]
  %v255 = vld [vmem:[%s0 + $0x3cc] sm:$0xf]
  %v256 = vld [vmem:[%s0 + $0x3d0] sm:$0xf]
  %v257 = vld [vmem:[%s0 + $0x3d4] sm:$0xf]
  %v258 = vld [vmem:[%s0 + $0x3d8] sm:$0xf]
  %v259 = vld [vmem:[%s0 + $0x3dc] sm:$0xf]
  %v260 = vld [vmem:[%s0 + $0x3e0] sm:$0xf]
  %v261 = vld [vmem:[%s0 + $0x3e4] sm:$0xf]
  %v262 = vld [vmem:[%s0 + $0x3e8] sm:$0xf]
  %v263 = vld [vmem:[%s0 + $0x3ec] sm:$0xf]
  %v264 = vld [vmem:[%s0 + $0x3f0] sm:$0xf]
  %v265 = vld [vmem:[%s0 + $0x3f4] sm:$0xf]
  %v266 = vld [vmem:[%s0 + $0x3f8] sm:$0xf]
  %v267 = vld [vmem:[%s0 + $0x3fc] sm:$0xf]
  %v268 = vld [vmem:[%s0 + $0x400] sm:$0xf]
  %v269 = vld [vmem:[%s0 + $0x404] sm:$0xf]
  %v270 = vld [vmem:[%s0 + $0x408] sm:$0xf]
  %v271 = vld [vmem:[%s0 + $0x40c] sm:$0xf]
  %v272 = vld [vmem:[%s0 + $0x410] sm:$0xf]
  %v273 = vld [vmem:[%s0 + $0x414] sm:$0xf]
  %v274 = vld [vmem:[%s0 + $0x418] sm:$0xf]
  %v275 = vld [vmem:[%s0 + $0x41c] sm:$0xf]
  %v276 = vld [vmem:[%s0 + $0x420] sm:$0xf]
  %v277 = vld [vmem:[%s0 + $0x424] sm:$0xf]
  %v278 = vld [vmem:[%s0 + $0x428] sm:$0xf]
  %v279 = vld [vmem:[%s0 + $0x42c] sm:$0xf]
  %v280 = vld [vmem:[%s0 + $0x430] sm:$0xf]
  %v281 = vld [vmem:[%s0 + $0x434] sm:$0xf]
  %v282 = vld [vmem:[%s0 + $0x438] sm:$0xf]
  %v283 = vld [vmem:[%s0 + $0x43c] sm:$0xf]
  %v284 = vld [vmem:[%s0 + $0x440] sm:$0x1]
  %v285 = vld [vmem:[%s1] sm:$0xf]
  %v286 = vld [vmem:[%s1 + $0x4] sm:$0xf]
  %v287 = vld [vmem:[%s1 + $0x8] sm:$0xf]
  %v288 = vld [vmem:[%s1 + $0xc] sm:$0xf]
  %v562 = vunpack.c.l.b16 %v12
  %v563 = vunpack.c.l.b16 %v13
  %v564 = vunpack.c.l.b16 %v14
  %v565 = vunpack.c.l.b16 %v15
  %v566 = vunpack.c.l.b16 %v16
  %v567 = vunpack.c.l.b16 %v17
  %v568 = vunpack.c.l.b16 %v18
  %v569 = vunpack.c.l.b16 %v19
  %v570 = vunpack.c.l.b16 %v20
  %v571 = vunpack.c.l.b16 %v21
  %v572 = vunpack.c.l.b16 %v22
  %v573 = vunpack.c.l.b16 %v23
  %v574 = vunpack.c.l.b16 %v24
  %v575 = vunpack.c.l.b16 %v25
  %v576 = vunpack.c.l.b16 %v26
  %v577 = vunpack.c.l.b16 %v27
  %v578 = vunpack.c.l.b16 %v28
  %v579 = vunpack.c.l.b16 %v29
  %v580 = vunpack.c.l.b16 %v30
  %v581 = vunpack.c.l.b16 %v31
  %v582 = vunpack.c.l.b16 %v32
  %v583 = vunpack.c.l.b16 %v33
  %v584 = vunpack.c.l.b16 %v34
  %v585 = vunpack.c.l.b16 %v35
  %v586 = vunpack.c.l.b16 %v36
  %v587 = vunpack.c.l.b16 %v37
  %v588 = vunpack.c.l.b16 %v38
  %v589 = vunpack.c.l.b16 %v39
  %v590 = vunpack.c.l.b16 %v40
  %v591 = vunpack.c.l.b16 %v41
  %v592 = vunpack.c.l.b16 %v42
  %v593 = vunpack.c.l.b16 %v43
  %v594 = vunpack.c.l.b16 %v44
  %v595 = vunpack.c.l.b16 %v45
  %v596 = vunpack.c.l.b16 %v46
  %v597 = vunpack.c.l.b16 %v47
  %v598 = vunpack.c.l.b16 %v48
  %v599 = vunpack.c.l.b16 %v49
  %v600 = vunpack.c.l.b16 %v50
  %v601 = vunpack.c.l.b16 %v51
  %v602 = vunpack.c.l.b16 %v52
  %v603 = vunpack.c.l.b16 %v53
  %v604 = vunpack.c.l.b16 %v54
  %v605 = vunpack.c.l.b16 %v55
  %v606 = vunpack.c.l.b16 %v56
  %v607 = vunpack.c.l.b16 %v57
  %v608 = vunpack.c.l.b16 %v58
  %v609 = vunpack.c.l.b16 %v59
  %v610 = vunpack.c.l.b16 %v60
  %v611 = vunpack.c.l.b16 %v61
  %v612 = vunpack.c.l.b16 %v62
  %v613 = vunpack.c.l.b16 %v63
  %v614 = vunpack.c.l.b16 %v64
  %v615 = vunpack.c.l.b16 %v65
  %v616 = vunpack.c.l.b16 %v66
  %v617 = vunpack.c.l.b16 %v67
  %v618 = vunpack.c.l.b16 %v68
  %v619 = vunpack.c.l.b16 %v69
  %v620 = vunpack.c.l.b16 %v70
  %v621 = vunpack.c.l.b16 %v71
  %v622 = vunpack.c.l.b16 %v72
  %v623 = vunpack.c.l.b16 %v73
  %v624 = vunpack.c.l.b16 %v74
  %v625 = vunpack.c.l.b16 %v75
  %v626 = vunpack.c.l.b16 %v76
  %v627 = vunpack.c.l.b16 %v77
  %v628 = vunpack.c.l.b16 %v78
  %v629 = vunpack.c.l.b16 %v79
  %v630 = vunpack.c.l.b16 %v80
  %v631 = vunpack.c.l.b16 %v81
  %v632 = vunpack.c.l.b16 %v82
  %v633 = vunpack.c.l.b16 %v83
  %v634 = vunpack.c.l.b16 %v84
  %v635 = vunpack.c.l.b16 %v85
  %v636 = vunpack.c.l.b16 %v86
  %v637 = vunpack.c.l.b16 %v87
  %v638 = vunpack.c.l.b16 %v88
  %v639 = vunpack.c.l.b16 %v89
  %v640 = vunpack.c.l.b16 %v90
  %v641 = vunpack.c.l.b16 %v91
  %v642 = vunpack.c.l.b16 %v92
  %v643 = vunpack.c.l.b16 %v93
  %v644 = vunpack.c.l.b16 %v94
  %v645 = vunpack.c.l.b16 %v95
  %v646 = vunpack.c.l.b16 %v96
  %v647 = vunpack.c.l.b16 %v97
  %v648 = vunpack.c.l.b16 %v98
  %v649 = vunpack.c.l.b16 %v99
  %v650 = vunpack.c.l.b16 %v100
  %v651 = vunpack.c.l.b16 %v101
  %v652 = vunpack.c.l.b16 %v102
  %v653 = vunpack.c.l.b16 %v103
  %v654 = vunpack.c.l.b16 %v104
  %v655 = vunpack.c.l.b16 %v105
  %v656 = vunpack.c.l.b16 %v106
  %v657 = vunpack.c.l.b16 %v107
  %v658 = vunpack.c.l.b16 %v108
  %v659 = vunpack.c.l.b16 %v109
  %v660 = vunpack.c.l.b16 %v110
  %v661 = vunpack.c.l.b16 %v111
  %v662 = vunpack.c.l.b16 %v112
  %v663 = vunpack.c.l.b16 %v113
  %v664 = vunpack.c.l.b16 %v114
  %v665 = vunpack.c.l.b16 %v115
  %v666 = vunpack.c.l.b16 %v116
  %v667 = vunpack.c.l.b16 %v117
  %v668 = vunpack.c.l.b16 %v118
  %v669 = vunpack.c.l.b16 %v119
  %v670 = vunpack.c.l.b16 %v120
  %v671 = vunpack.c.l.b16 %v121
  %v672 = vunpack.c.l.b16 %v122
  %v673 = vunpack.c.l.b16 %v123
  %v674 = vunpack.c.l.b16 %v124
  %v675 = vunpack.c.l.b16 %v125
  %v676 = vunpack.c.l.b16 %v126
  %v677 = vunpack.c.l.b16 %v127
  %v678 = vunpack.c.l.b16 %v128
  %v679 = vunpack.c.l.b16 %v129
  %v680 = vunpack.c.l.b16 %v130
  %v681 = vunpack.c.l.b16 %v131
  %v682 = vunpack.c.l.b16 %v132
  %v683 = vunpack.c.l.b16 %v133
  %v684 = vunpack.c.l.b16 %v134
  %v685 = vunpack.c.l.b16 %v135
  %v686 = vunpack.c.l.b16 %v136
  %v687 = vunpack.c.l.b16 %v137
  %v688 = vunpack.c.l.b16 %v138
  %v689 = vunpack.c.l.b16 %v139
  %v690 = vunpack.c.l.b16 %v140
  %v691 = vunpack.c.l.b16 %v141
  %v692 = vunpack.c.l.b16 %v142
  %v693 = vunpack.c.l.b16 %v143
  %v694 = vunpack.c.l.b16 %v144
  %v695 = vunpack.c.l.b16 %v145
  %v696 = vunpack.c.l.b16 %v146
  %v697 = vunpack.c.l.b16 %v147
  %v698 = vunpack.c.l.b16 %v148
  %v699 = vunpack.c.l.b16 %v149
  %v700 = vunpack.c.l.b16 %v150
  %v701 = vunpack.c.l.b16 %v151
  %v702 = vunpack.c.l.b16 %v152
  %v703 = vunpack.c.l.b16 %v153
  %v704 = vunpack.c.l.b16 %v154
  %v705 = vunpack.c.l.b16 %v155
  %v706 = vunpack.c.l.b16 %v156
  %v707 = vunpack.c.l.b16 %v157
  %v708 = vunpack.c.l.b16 %v158
  %v709 = vunpack.c.l.b16 %v159
  %v710 = vunpack.c.l.b16 %v160
  %v711 = vunpack.c.l.b16 %v161
  %v712 = vunpack.c.l.b16 %v162
  %v713 = vunpack.c.l.b16 %v163
  %v714 = vunpack.c.l.b16 %v164
  %v715 = vunpack.c.l.b16 %v165
  %v716 = vunpack.c.l.b16 %v166
  %v717 = vunpack.c.l.b16 %v167
  %v718 = vunpack.c.l.b16 %v168
  %v719 = vunpack.c.l.b16 %v169
  %v720 = vunpack.c.l.b16 %v170
  %v721 = vunpack.c.l.b16 %v171
  %v722 = vunpack.c.l.b16 %v172
  %v723 = vunpack.c.l.b16 %v173
  %v724 = vunpack.c.l.b16 %v174
  %v725 = vunpack.c.l.b16 %v175
  %v726 = vunpack.c.l.b16 %v176
  %v727 = vunpack.c.l.b16 %v177
  %v728 = vunpack.c.l.b16 %v178
  %v729 = vunpack.c.l.b16 %v179
  %v730 = vunpack.c.l.b16 %v180
  %v731 = vunpack.c.l.b16 %v181
  %v732 = vunpack.c.l.b16 %v182
  %v733 = vunpack.c.l.b16 %v183
  %v734 = vunpack.c.l.b16 %v184
  %v735 = vunpack.c.l.b16 %v185
  %v736 = vunpack.c.l.b16 %v186
  %v737 = vunpack.c.l.b16 %v187
  %v738 = vunpack.c.l.b16 %v188
  %v739 = vunpack.c.l.b16 %v189
  %v740 = vunpack.c.l.b16 %v190
  %v741 = vunpack.c.l.b16 %v191
  %v742 = vunpack.c.l.b16 %v192
  %v743 = vunpack.c.l.b16 %v193
  %v744 = vunpack.c.l.b16 %v194
  %v745 = vunpack.c.l.b16 %v195
  %v746 = vunpack.c.l.b16 %v196
  %v747 = vunpack.c.l.b16 %v197
  %v748 = vunpack.c.l.b16 %v198
  %v749 = vunpack.c.l.b16 %v199
  %v750 = vunpack.c.l.b16 %v200
  %v751 = vunpack.c.l.b16 %v201
  %v752 = vunpack.c.l.b16 %v202
  %v753 = vunpack.c.l.b16 %v203
  %v754 = vunpack.c.l.b16 %v204
  %v755 = vunpack.c.l.b16 %v205
  %v756 = vunpack.c.l.b16 %v206
  %v757 = vunpack.c.l.b16 %v207
  %v758 = vunpack.c.l.b16 %v208
  %v759 = vunpack.c.l.b16 %v209
  %v760 = vunpack.c.l.b16 %v210
  %v761 = vunpack.c.l.b16 %v211
  %v762 = vunpack.c.l.b16 %v212
  %v763 = vunpack.c.l.b16 %v213
  %v764 = vunpack.c.l.b16 %v214
  %v765 = vunpack.c.l.b16 %v215
  %v766 = vunpack.c.l.b16 %v216
  %v767 = vunpack.c.l.b16 %v217
  %v768 = vunpack.c.l.b16 %v218
  %v769 = vunpack.c.l.b16 %v219
  %v770 = vunpack.c.l.b16 %v220
  %v771 = vunpack.c.l.b16 %v221
  %v772 = vunpack.c.l.b16 %v222
  %v773 = vunpack.c.l.b16 %v223
  %v774 = vunpack.c.l.b16 %v224
  %v775 = vunpack.c.l.b16 %v225
  %v776 = vunpack.c.l.b16 %v226
  %v777 = vunpack.c.l.b16 %v227
  %v778 = vunpack.c.l.b16 %v228
  %v779 = vunpack.c.l.b16 %v229
  %v780 = vunpack.c.l.b16 %v230
  %v781 = vunpack.c.l.b16 %v231
  %v782 = vunpack.c.l.b16 %v232
  %v783 = vunpack.c.l.b16 %v233
  %v784 = vunpack.c.l.b16 %v234
  %v785 = vunpack.c.l.b16 %v235
  %v786 = vunpack.c.l.b16 %v236
  %v787 = vunpack.c.l.b16 %v237
  %v788 = vunpack.c.l.b16 %v238
  %v789 = vunpack.c.l.b16 %v239
  %v790 = vunpack.c.l.b16 %v240
  %v791 = vunpack.c.l.b16 %v241
  %v792 = vunpack.c.l.b16 %v242
  %v793 = vunpack.c.l.b16 %v243
  %v794 = vunpack.c.l.b16 %v244
  %v795 = vunpack.c.l.b16 %v245
  %v796 = vunpack.c.l.b16 %v246
  %v797 = vunpack.c.l.b16 %v247
  %v798 = vunpack.c.l.b16 %v248
  %v799 = vunpack.c.l.b16 %v249
  %v800 = vunpack.c.l.b16 %v250
  %v801 = vunpack.c.l.b16 %v251
  %v802 = vunpack.c.l.b16 %v252
  %v803 = vunpack.c.l.b16 %v253
  %v804 = vunpack.c.l.b16 %v254
  %v805 = vunpack.c.l.b16 %v255
  %v806 = vunpack.c.l.b16 %v256
  %v807 = vunpack.c.l.b16 %v257
  %v808 = vunpack.c.l.b16 %v258
  %v809 = vunpack.c.l.b16 %v259
  %v810 = vunpack.c.l.b16 %v260
  %v811 = vunpack.c.l.b16 %v261
  %v812 = vunpack.c.l.b16 %v262
  %v813 = vunpack.c.l.b16 %v263
  %v814 = vunpack.c.l.b16 %v264
  %v815 = vunpack.c.l.b16 %v265
  %v816 = vunpack.c.l.b16 %v266
  %v817 = vunpack.c.l.b16 %v267
  %v818 = vunpack.c.l.b16 %v268
  %v819 = vunpack.c.l.b16 %v269
  %v820 = vunpack.c.l.b16 %v270
  %v821 = vunpack.c.l.b16 %v271
  %v822 = vunpack.c.l.b16 %v272
  %v823 = vunpack.c.l.b16 %v273
  %v824 = vunpack.c.l.b16 %v274
  %v825 = vunpack.c.l.b16 %v275
  %v826 = vunpack.c.l.b16 %v276
  %v827 = vunpack.c.l.b16 %v277
  %v828 = vunpack.c.l.b16 %v278
  %v829 = vunpack.c.l.b16 %v279
  %v830 = vunpack.c.l.b16 %v280
  %v831 = vunpack.c.l.b16 %v281
  %v832 = vunpack.c.l.b16 %v282
  %v833 = vunpack.c.l.b16 %v283
  %v834 = vunpack.c.l.b16 %v284
  %v835 = vpack.c.b16 %v563, %v562
  %v836 = vpack.c.b16 %v565, %v564
  %v837 = vpack.c.b16 %v567, %v566
  %v838 = vpack.c.b16 %v569, %v568
  %v839 = vpack.c.b16 %v571, %v570
  %v840 = vpack.c.b16 %v573, %v572
  %v841 = vpack.c.b16 %v575, %v574
  %v842 = vpack.c.b16 %v577, %v576
  %v843 = vpack.c.b16 %v579, %v578
  %v844 = vpack.c.b16 %v581, %v580
  %v845 = vpack.c.b16 %v583, %v582
  %v846 = vpack.c.b16 %v585, %v584
  %v847 = vpack.c.b16 %v587, %v586
  %v848 = vpack.c.b16 %v589, %v588
  %v849 = vpack.c.b16 %v591, %v590
  %v850 = vpack.c.b16 %v593, %v592
  %v851 = vpack.c.b16 %v595, %v594
  %v852 = vpack.c.b16 %v597, %v596
  %v853 = vpack.c.b16 %v599, %v598
  %v854 = vpack.c.b16 %v601, %v600
  %v855 = vpack.c.b16 %v603, %v602
  %v856 = vpack.c.b16 %v605, %v604
  %v857 = vpack.c.b16 %v607, %v606
  %v858 = vpack.c.b16 %v609, %v608
  %v859 = vpack.c.b16 %v611, %v610
  %v860 = vpack.c.b16 %v613, %v612
  %v861 = vpack.c.b16 %v615, %v614
  %v862 = vpack.c.b16 %v617, %v616
  %v863 = vpack.c.b16 %v619, %v618
  %v864 = vpack.c.b16 %v621, %v620
  %v865 = vpack.c.b16 %v623, %v622
  %v866 = vpack.c.b16 %v625, %v624
  %v867 = vpack.c.b16 %v627, %v626
  %v868 = vpack.c.b16 %v629, %v628
  %v869 = vpack.c.b16 %v631, %v630
  %v870 = vpack.c.b16 %v633, %v632
  %v871 = vpack.c.b16 %v635, %v634
  %v872 = vpack.c.b16 %v637, %v636
  %v873 = vpack.c.b16 %v639, %v638
  %v874 = vpack.c.b16 %v641, %v640
  %v875 = vpack.c.b16 %v643, %v642
  %v876 = vpack.c.b16 %v645, %v644
  %v877 = vpack.c.b16 %v647, %v646
  %v878 = vpack.c.b16 %v649, %v648
  %v879 = vpack.c.b16 %v651, %v650
  %v880 = vpack.c.b16 %v653, %v652
  %v881 = vpack.c.b16 %v655, %v654
  %v882 = vpack.c.b16 %v657, %v656
  %v883 = vpack.c.b16 %v659, %v658
  %v884 = vpack.c.b16 %v661, %v660
  %v885 = vpack.c.b16 %v663, %v662
  %v886 = vpack.c.b16 %v665, %v664
  %v887 = vpack.c.b16 %v667, %v666
  %v888 = vpack.c.b16 %v669, %v668
  %v889 = vpack.c.b16 %v671, %v670
  %v890 = vpack.c.b16 %v673, %v672
  %v891 = vpack.c.b16 %v675, %v674
  %v892 = vpack.c.b16 %v677, %v676
  %v893 = vpack.c.b16 %v679, %v678
  %v894 = vpack.c.b16 %v681, %v680
  %v895 = vpack.c.b16 %v683, %v682
  %v896 = vpack.c.b16 %v685, %v684
  %v897 = vpack.c.b16 %v687, %v686
  %v898 = vpack.c.b16 %v689, %v688
  %v899 = vpack.c.b16 %v691, %v690
  %v900 = vpack.c.b16 %v693, %v692
  %v901 = vpack.c.b16 %v695, %v694
  %v902 = vpack.c.b16 %v697, %v696
  %v903 = vpack.c.b16 %v699, %v698
  %v904 = vpack.c.b16 %v701, %v700
  %v905 = vpack.c.b16 %v703, %v702
  %v906 = vpack.c.b16 %v705, %v704
  %v907 = vpack.c.b16 %v707, %v706
  %v908 = vpack.c.b16 %v709, %v708
  %v909 = vpack.c.b16 %v711, %v710
  %v910 = vpack.c.b16 %v713, %v712
  %v911 = vpack.c.b16 %v715, %v714
  %v912 = vpack.c.b16 %v717, %v716
  %v913 = vpack.c.b16 %v719, %v718
  %v914 = vpack.c.b16 %v721, %v720
  %v915 = vpack.c.b16 %v723, %v722
  %v916 = vpack.c.b16 %v725, %v724
  %v917 = vpack.c.b16 %v727, %v726
  %v918 = vpack.c.b16 %v729, %v728
  %v919 = vpack.c.b16 %v731, %v730
  %v920 = vpack.c.b16 %v733, %v732
  %v921 = vpack.c.b16 %v735, %v734
  %v922 = vpack.c.b16 %v737, %v736
  %v923 = vpack.c.b16 %v739, %v738
  %v924 = vpack.c.b16 %v741, %v740
  %v925 = vpack.c.b16 %v743, %v742
  %v926 = vpack.c.b16 %v745, %v744
  %v927 = vpack.c.b16 %v747, %v746
  %v928 = vpack.c.b16 %v749, %v748
  %v929 = vpack.c.b16 %v751, %v750
  %v930 = vpack.c.b16 %v753, %v752
  %v931 = vpack.c.b16 %v755, %v754
  %v932 = vpack.c.b16 %v757, %v756
  %v933 = vpack.c.b16 %v759, %v758
  %v934 = vpack.c.b16 %v761, %v760
  %v935 = vpack.c.b16 %v763, %v762
  %v936 = vpack.c.b16 %v765, %v764
  %v937 = vpack.c.b16 %v767, %v766
  %v938 = vpack.c.b16 %v769, %v768
  %v939 = vpack.c.b16 %v771, %v770
  %v940 = vpack.c.b16 %v773, %v772
  %v941 = vpack.c.b16 %v775, %v774
  %v942 = vpack.c.b16 %v777, %v776
  %v943 = vpack.c.b16 %v779, %v778
  %v944 = vpack.c.b16 %v781, %v780
  %v945 = vpack.c.b16 %v783, %v782
  %v946 = vpack.c.b16 %v785, %v784
  %v947 = vpack.c.b16 %v787, %v786
  %v948 = vpack.c.b16 %v789, %v788
  %v949 = vpack.c.b16 %v791, %v790
  %v950 = vpack.c.b16 %v793, %v792
  %v951 = vpack.c.b16 %v795, %v794
  %v952 = vpack.c.b16 %v797, %v796
  %v953 = vpack.c.b16 %v799, %v798
  %v954 = vpack.c.b16 %v801, %v800
  %v955 = vpack.c.b16 %v803, %v802
  %v956 = vpack.c.b16 %v805, %v804
  %v957 = vpack.c.b16 %v807, %v806
  %v958 = vpack.c.b16 %v809, %v808
  %v959 = vpack.c.b16 %v811, %v810
  %v960 = vpack.c.b16 %v813, %v812
  %v961 = vpack.c.b16 %v815, %v814
  %v962 = vpack.c.b16 %v817, %v816
  %v963 = vpack.c.b16 %v819, %v818
  %v964 = vpack.c.b16 %v821, %v820
  %v965 = vpack.c.b16 %v823, %v822
  %v966 = vpack.c.b16 %v825, %v824
  %v967 = vpack.c.b16 %v827, %v826
  %v968 = vpack.c.b16 %v829, %v828
  %v969 = vpack.c.b16 %v831, %v830
  %v970 = vpack.c.b16 %v833, %v832
  %v971 = vpack.c.b16 %v834, %v834
  %v976 = vunpack.c.l.b16 %v285
  %v977 = vunpack.c.l.b16 %v286
  %v978 = vunpack.c.l.b16 %v287
  %v979 = vunpack.c.l.b16 %v288
  %v980 = vpack.c.b16 %v977, %v976
  %v981 = vpack.c.b16 %v979, %v978
  %vm984 = vcmask 261120
  %v986 = vsel %vm984, %v835, 0
  %v989 = vsel %vm984, %v836, 0
  %v992 = vsel %vm984, %v837, 0
  %v995 = vsel %vm984, %v838, 0
  %v998 = vsel %vm984, %v839, 0
  %v1001 = vsel %vm984, %v840, 0
  %v1004 = vsel %vm984, %v841, 0
  %v1007 = vsel %vm984, %v842, 0
  %v1010 = vsel %vm984, %v843, 0
  %v1013 = vsel %vm984, %v844, 0
  %v1016 = vsel %vm984, %v845, 0
  %v1019 = vsel %vm984, %v846, 0
  %v1022 = vsel %vm984, %v847, 0
  %v1025 = vsel %vm984, %v848, 0
  %v1028 = vsel %vm984, %v849, 0
  %v1031 = vsel %vm984, %v850, 0
  %v1034 = vsel %vm984, %v851, 0
  %v1037 = vsel %vm984, %v852, 0
  %v1040 = vsel %vm984, %v853, 0
  %v1043 = vsel %vm984, %v854, 0
  %v1046 = vsel %vm984, %v855, 0
  %v1049 = vsel %vm984, %v856, 0
  %v1052 = vsel %vm984, %v857, 0
  %v1055 = vsel %vm984, %v858, 0
  %v1058 = vsel %vm984, %v859, 0
  %v1061 = vsel %vm984, %v860, 0
  %v1064 = vsel %vm984, %v861, 0
  %v1067 = vsel %vm984, %v862, 0
  %v1070 = vsel %vm984, %v863, 0
  %v1073 = vsel %vm984, %v864, 0
  %v1076 = vsel %vm984, %v865, 0
  %v1079 = vsel %vm984, %v866, 0
  %v1082 = vsel %vm984, %v867, 0
  %v1085 = vsel %vm984, %v868, 0
  %v1088 = vsel %vm984, %v869, 0
  %v1091 = vsel %vm984, %v870, 0
  %v1094 = vsel %vm984, %v871, 0
  %v1097 = vsel %vm984, %v872, 0
  %v1100 = vsel %vm984, %v873, 0
  %v1103 = vsel %vm984, %v874, 0
  %v1106 = vsel %vm984, %v875, 0
  %v1109 = vsel %vm984, %v876, 0
  %v1112 = vsel %vm984, %v877, 0
  %v1115 = vsel %vm984, %v878, 0
  %v1118 = vsel %vm984, %v879, 0
  %v1121 = vsel %vm984, %v880, 0
  %v1124 = vsel %vm984, %v881, 0
  %v1127 = vsel %vm984, %v882, 0
  %v1130 = vsel %vm984, %v883, 0
  %v1133 = vsel %vm984, %v884, 0
  %v1136 = vsel %vm984, %v885, 0
  %v1139 = vsel %vm984, %v886, 0
  %v1142 = vsel %vm984, %v887, 0
  %v1145 = vsel %vm984, %v888, 0
  %v1148 = vsel %vm984, %v889, 0
  %v1151 = vsel %vm984, %v890, 0
  %v1154 = vsel %vm984, %v891, 0
  %v1157 = vsel %vm984, %v892, 0
  %v1160 = vsel %vm984, %v893, 0
  %v1163 = vsel %vm984, %v894, 0
  %v1166 = vsel %vm984, %v895, 0
  %v1169 = vsel %vm984, %v896, 0
  %v1172 = vsel %vm984, %v897, 0
  %v1175 = vsel %vm984, %v898, 0
  %v1178 = vsel %vm984, %v899, 0
  %v1181 = vsel %vm984, %v900, 0
  %v1184 = vsel %vm984, %v901, 0
  %v1187 = vsel %vm984, %v902, 0
  %v1190 = vsel %vm984, %v903, 0
  %v1193 = vsel %vm984, %v904, 0
  %v1196 = vsel %vm984, %v905, 0
  %v1199 = vsel %vm984, %v906, 0
  %v1202 = vsel %vm984, %v907, 0
  %v1205 = vsel %vm984, %v908, 0
  %v1208 = vsel %vm984, %v909, 0
  %v1211 = vsel %vm984, %v910, 0
  %v1214 = vsel %vm984, %v911, 0
  %v1217 = vsel %vm984, %v912, 0
  %v1220 = vsel %vm984, %v913, 0
  %v1223 = vsel %vm984, %v914, 0
  %v1226 = vsel %vm984, %v915, 0
  %v1229 = vsel %vm984, %v916, 0
  %v1232 = vsel %vm984, %v917, 0
  %v1235 = vsel %vm984, %v918, 0
  %v1238 = vsel %vm984, %v919, 0
  %v1241 = vsel %vm984, %v920, 0
  %v1244 = vsel %vm984, %v921, 0
  %v1247 = vsel %vm984, %v922, 0
  %v1250 = vsel %vm984, %v923, 0
  %v1253 = vsel %vm984, %v924, 0
  %v1256 = vsel %vm984, %v925, 0
  %v1259 = vsel %vm984, %v926, 0
  %v1262 = vsel %vm984, %v927, 0
  %v1265 = vsel %vm984, %v928, 0
  %v1268 = vsel %vm984, %v929, 0
  %v1271 = vsel %vm984, %v930, 0
  %v1274 = vsel %vm984, %v931, 0
  %v1277 = vsel %vm984, %v932, 0
  %v1280 = vsel %vm984, %v933, 0
  %v1283 = vsel %vm984, %v934, 0
  %v1286 = vsel %vm984, %v935, 0
  %v1289 = vsel %vm984, %v936, 0
  %v1292 = vsel %vm984, %v937, 0
  %v1295 = vsel %vm984, %v938, 0
  %v1298 = vsel %vm984, %v939, 0
  %v1301 = vsel %vm984, %v940, 0
  %v1304 = vsel %vm984, %v941, 0
  %v1307 = vsel %vm984, %v942, 0
  %v1310 = vsel %vm984, %v943, 0
  %v1313 = vsel %vm984, %v944, 0
  %v1316 = vsel %vm984, %v945, 0
  %v1319 = vsel %vm984, %v946, 0
  %v1322 = vsel %vm984, %v947, 0
  %v1325 = vsel %vm984, %v948, 0
  %v1328 = vsel %vm984, %v949, 0
  %v1331 = vsel %vm984, %v950, 0
  %v1334 = vsel %vm984, %v951, 0
  %v1337 = vsel %vm984, %v952, 0
  %v1340 = vsel %vm984, %v953, 0
  %v1343 = vsel %vm984, %v954, 0
  %v1346 = vsel %vm984, %v955, 0
  %v1349 = vsel %vm984, %v956, 0
  %v1352 = vsel %vm984, %v957, 0
  %v1355 = vsel %vm984, %v958, 0
  %v1358 = vsel %vm984, %v959, 0
  %v1361 = vsel %vm984, %v960, 0
  %v1364 = vsel %vm984, %v961, 0
  %v1367 = vsel %vm984, %v962, 0
  %v1370 = vsel %vm984, %v963, 0
  %v1373 = vsel %vm984, %v964, 0
  %v1376 = vsel %vm984, %v965, 0
  %v1379 = vsel %vm984, %v966, 0
  %v1382 = vsel %vm984, %v967, 0
  %v1385 = vsel %vm984, %v968, 0
  %v1388 = vsel %vm984, %v969, 0
  %v1391 = vsel %vm984, %v970, 0
  %v1394 = vsel %vm984, %v971, 0
  %1396 = vmatprep.subr.bf16.mxu0 0
  %1397 = vmatpush1.bf16.msra.mxu0 0
  %1398 = vmatprep.subr.bf16.mxu0 0
  %1399 = vmatpush1.bf16.msra.mxu0 0
  %1400 = vmatprep.subr.bf16.mxu0 0
  %1401 = vmatpush1.bf16.msra.mxu0 0
  %1402 = vmatprep.subr.bf16.mxu0 0
  %1403 = vmatpush1.bf16.msra.mxu0 0
  %1404 = vmatprep.subr.bf16.mxu0 0
  %1405 = vmatpush1.bf16.msra.mxu0 0
  %1406 = vmatprep.subr.bf16.mxu0 0
  %1407 = vmatpush1.bf16.msra.mxu0 0
  %1408 = vmatprep.subr.bf16.mxu0 0
  %1409 = vmatpush1.bf16.msra.mxu0 %v981
  %1410 = vmatprep.subr.bf16.mxu0 0
  %1411 = vmatpush1.bf16.msra.mxu0 %v980
  %1412 = vmatprep.subr.bf16.mxu0 0
  %1413 = vmatpush2.bf16.msra.mxu0 0
  %1414 = vmatprep.subr.bf16.mxu0 0
  %1415 = vmatpush2.bf16.msra.mxu0 0
  %1416 = vmatprep.subr.bf16.mxu0 0
  %1417 = vmatpush2.bf16.msra.mxu0 0
  %1418 = vmatprep.subr.bf16.mxu0 0
  %1419 = vmatpush2.bf16.msra.mxu0 0
  %1420 = vmatprep.subr.bf16.mxu0 0
  %1421 = vmatpush2.bf16.msra.mxu0 0
  %1422 = vmatprep.subr.bf16.mxu0 0
  %1423 = vmatpush2.bf16.msra.mxu0 0
  %1424 = vmatprep.subr.bf16.mxu0 0
  %1425 = vmatpush2.bf16.msra.mxu0 0
  %1426 = vmatprep.subr.bf16.mxu0 0
  %1427 = vmatpush2.bf16.msra.mxu0 0
  %1428 = vmatprep.mubr.bf16.mxu0 0
  %1429 = vmatmul.mubr.bf16.gmra.mxu0 %v986
  %v1430 = vpop.f32.mrf.mxu0
  %v1431 = vadd.f32 0.0, %v1430
  %v1432 = vpop.f32.mrf.mxu0
  %v1433 = vpop.f32.mrf.mxu0
  %v1434 = vadd.f32 0.0, %v1433
  %v1435 = vpop.f32.mrf.mxu0
  %1436 = vmatprep.mubr.bf16.mxu0 0
  %1437 = vmatmul.mubr.bf16.gmra.mxu0 %v989
  %v1438 = vpop.f32.mrf.mxu0
  %v1439 = vadd.f32 0.0, %v1438
  %v1440 = vpop.f32.mrf.mxu0
  %v1441 = vpop.f32.mrf.mxu0
  %v1442 = vadd.f32 0.0, %v1441
  %v1443 = vpop.f32.mrf.mxu0
  %1444 = vmatprep.mubr.bf16.mxu0 0
  %1445 = vmatmul.mubr.bf16.gmra.mxu0 %v992
  %v1446 = vpop.f32.mrf.mxu0
  %v1447 = vadd.f32 0.0, %v1446
  %v1448 = vpop.f32.mrf.mxu0
  %v1449 = vpop.f32.mrf.mxu0
  %v1450 = vadd.f32 0.0, %v1449
  %v1451 = vpop.f32.mrf.mxu0
  %1452 = vmatprep.mubr.bf16.mxu0 0
  %1453 = vmatmul.mubr.bf16.gmra.mxu0 %v995
  %v1454 = vpop.f32.mrf.mxu0
  %v1455 = vadd.f32 0.0, %v1454
  %v1456 = vpop.f32.mrf.mxu0
  %v1457 = vpop.f32.mrf.mxu0
  %v1458 = vadd.f32 0.0, %v1457
  %v1459 = vpop.f32.mrf.mxu0
  %1460 = vmatprep.mubr.bf16.mxu0 0
  %1461 = vmatmul.mubr.bf16.gmra.mxu0 %v998
  %v1462 = vpop.f32.mrf.mxu0
  %v1463 = vadd.f32 0.0, %v1462
  %v1464 = vpop.f32.mrf.mxu0
  %v1465 = vpop.f32.mrf.mxu0
  %v1466 = vadd.f32 0.0, %v1465
  %v1467 = vpop.f32.mrf.mxu0
  %1468 = vmatprep.mubr.bf16.mxu0 0
  %1469 = vmatmul.mubr.bf16.gmra.mxu0 %v1001
  %v1470 = vpop.f32.mrf.mxu0
  %v1471 = vadd.f32 0.0, %v1470
  %v1472 = vpop.f32.mrf.mxu0
  %v1473 = vpop.f32.mrf.mxu0
  %v1474 = vadd.f32 0.0, %v1473
  %v1475 = vpop.f32.mrf.mxu0
  %1476 = vmatprep.mubr.bf16.mxu0 0
  %1477 = vmatmul.mubr.bf16.gmra.mxu0 %v1004
  %v1478 = vpop.f32.mrf.mxu0
  %v1479 = vadd.f32 0.0, %v1478
  %v1480 = vpop.f32.mrf.mxu0
  %v1481 = vpop.f32.mrf.mxu0
  %v1482 = vadd.f32 0.0, %v1481
  %v1483 = vpop.f32.mrf.mxu0
  %1484 = vmatprep.mubr.bf16.mxu0 0
  %1485 = vmatmul.mubr.bf16.gmra.mxu0 %v1007
  %v1486 = vpop.f32.mrf.mxu0
  %v1487 = vadd.f32 0.0, %v1486
  %v1488 = vpop.f32.mrf.mxu0
  %v1489 = vpop.f32.mrf.mxu0
  %v1490 = vadd.f32 0.0, %v1489
  %v1491 = vpop.f32.mrf.mxu0
  %1492 = vmatprep.mubr.bf16.mxu0 0
  %1493 = vmatmul.mubr.bf16.gmra.mxu0 %v1010
  %v1494 = vpop.f32.mrf.mxu0
  %v1495 = vadd.f32 0.0, %v1494
  %v1496 = vpop.f32.mrf.mxu0
  %v1497 = vpop.f32.mrf.mxu0
  %v1498 = vadd.f32 0.0, %v1497
  %v1499 = vpop.f32.mrf.mxu0
  %1500 = vmatprep.mubr.bf16.mxu0 0
  %1501 = vmatmul.mubr.bf16.gmra.mxu0 %v1013
  %v1502 = vpop.f32.mrf.mxu0
  %v1503 = vadd.f32 0.0, %v1502
  %v1504 = vpop.f32.mrf.mxu0
  %v1505 = vpop.f32.mrf.mxu0
  %v1506 = vadd.f32 0.0, %v1505
  %v1507 = vpop.f32.mrf.mxu0
  %1508 = vmatprep.mubr.bf16.mxu0 0
  %1509 = vmatmul.mubr.bf16.gmra.mxu0 %v1016
  %v1510 = vpop.f32.mrf.mxu0
  %v1511 = vadd.f32 0.0, %v1510
  %v1512 = vpop.f32.mrf.mxu0
  %v1513 = vpop.f32.mrf.mxu0
  %v1514 = vadd.f32 0.0, %v1513
  %v1515 = vpop.f32.mrf.mxu0
  %1516 = vmatprep.mubr.bf16.mxu0 0
  %1517 = vmatmul.mubr.bf16.gmra.mxu0 %v1019
  %v1518 = vpop.f32.mrf.mxu0
  %v1519 = vadd.f32 0.0, %v1518
  %v1520 = vpop.f32.mrf.mxu0
  %v1521 = vpop.f32.mrf.mxu0
  %v1522 = vadd.f32 0.0, %v1521
  %v1523 = vpop.f32.mrf.mxu0
  %1524 = vmatprep.mubr.bf16.mxu0 0
  %1525 = vmatmul.mubr.bf16.gmra.mxu0 %v1022
  %v1526 = vpop.f32.mrf.mxu0
  %v1527 = vadd.f32 0.0, %v1526
  %v1528 = vpop.f32.mrf.mxu0
  %v1529 = vpop.f32.mrf.mxu0
  %v1530 = vadd.f32 0.0, %v1529
  %v1531 = vpop.f32.mrf.mxu0
  %1532 = vmatprep.mubr.bf16.mxu0 0
  %1533 = vmatmul.mubr.bf16.gmra.mxu0 %v1025
  %v1534 = vpop.f32.mrf.mxu0
  %v1535 = vadd.f32 0.0, %v1534
  %v1536 = vpop.f32.mrf.mxu0
  %v1537 = vpop.f32.mrf.mxu0
  %v1538 = vadd.f32 0.0, %v1537
  %v1539 = vpop.f32.mrf.mxu0
  %1540 = vmatprep.mubr.bf16.mxu0 0
  %1541 = vmatmul.mubr.bf16.gmra.mxu0 %v1028
  %v1542 = vpop.f32.mrf.mxu0
  %v1543 = vadd.f32 0.0, %v1542
  %v1544 = vpop.f32.mrf.mxu0
  %v1545 = vpop.f32.mrf.mxu0
  %v1546 = vadd.f32 0.0, %v1545
  %v1547 = vpop.f32.mrf.mxu0
  %1548 = vmatprep.mubr.bf16.mxu0 0
  %1549 = vmatmul.mubr.bf16.gmra.mxu0 %v1031
  %v1550 = vpop.f32.mrf.mxu0
  %v1551 = vadd.f32 0.0, %v1550
  %v1552 = vpop.f32.mrf.mxu0
  %v1553 = vpop.f32.mrf.mxu0
  %v1554 = vadd.f32 0.0, %v1553
  %v1555 = vpop.f32.mrf.mxu0
  %1556 = vmatprep.mubr.bf16.mxu0 0
  %1557 = vmatmul.mubr.bf16.gmra.mxu0 %v1034
  %v1558 = vpop.f32.mrf.mxu0
  %v1559 = vadd.f32 0.0, %v1558
  %v1560 = vpop.f32.mrf.mxu0
  %v1561 = vpop.f32.mrf.mxu0
  %v1562 = vadd.f32 0.0, %v1561
  %v1563 = vpop.f32.mrf.mxu0
  %1564 = vmatprep.mubr.bf16.mxu0 0
  %1565 = vmatmul.mubr.bf16.gmra.mxu0 %v1037
  %v1566 = vpop.f32.mrf.mxu0
  %v1567 = vadd.f32 0.0, %v1566
  %v1568 = vpop.f32.mrf.mxu0
  %v1569 = vpop.f32.mrf.mxu0
  %v1570 = vadd.f32 0.0, %v1569
  %v1571 = vpop.f32.mrf.mxu0
  %1572 = vmatprep.mubr.bf16.mxu0 0
  %1573 = vmatmul.mubr.bf16.gmra.mxu0 %v1040
  %v1574 = vpop.f32.mrf.mxu0
  %v1575 = vadd.f32 0.0, %v1574
  %v1576 = vpop.f32.mrf.mxu0
  %v1577 = vpop.f32.mrf.mxu0
  %v1578 = vadd.f32 0.0, %v1577
  %v1579 = vpop.f32.mrf.mxu0
  %1580 = vmatprep.mubr.bf16.mxu0 0
  %1581 = vmatmul.mubr.bf16.gmra.mxu0 %v1043
  %v1582 = vpop.f32.mrf.mxu0
  %v1583 = vadd.f32 0.0, %v1582
  %v1584 = vpop.f32.mrf.mxu0
  %v1585 = vpop.f32.mrf.mxu0
  %v1586 = vadd.f32 0.0, %v1585
  %v1587 = vpop.f32.mrf.mxu0
  %1588 = vmatprep.mubr.bf16.mxu0 0
  %1589 = vmatmul.mubr.bf16.gmra.mxu0 %v1046
  %v1590 = vpop.f32.mrf.mxu0
  %v1591 = vadd.f32 0.0, %v1590
  %v1592 = vpop.f32.mrf.mxu0
  %v1593 = vpop.f32.mrf.mxu0
  %v1594 = vadd.f32 0.0, %v1593
  %v1595 = vpop.f32.mrf.mxu0
  %1596 = vmatprep.mubr.bf16.mxu0 0
  %1597 = vmatmul.mubr.bf16.gmra.mxu0 %v1049
  %v1598 = vpop.f32.mrf.mxu0
  %v1599 = vadd.f32 0.0, %v1598
  %v1600 = vpop.f32.mrf.mxu0
  %v1601 = vpop.f32.mrf.mxu0
  %v1602 = vadd.f32 0.0, %v1601
  %v1603 = vpop.f32.mrf.mxu0
  %1604 = vmatprep.mubr.bf16.mxu0 0
  %1605 = vmatmul.mubr.bf16.gmra.mxu0 %v1052
  %v1606 = vpop.f32.mrf.mxu0
  %v1607 = vadd.f32 0.0, %v1606
  %v1608 = vpop.f32.mrf.mxu0
  %v1609 = vpop.f32.mrf.mxu0
  %v1610 = vadd.f32 0.0, %v1609
  %v1611 = vpop.f32.mrf.mxu0
  %1612 = vmatprep.mubr.bf16.mxu0 0
  %1613 = vmatmul.mubr.bf16.gmra.mxu0 %v1055
  %v1614 = vpop.f32.mrf.mxu0
  %v1615 = vadd.f32 0.0, %v1614
  %v1616 = vpop.f32.mrf.mxu0
  %v1617 = vpop.f32.mrf.mxu0
  %v1618 = vadd.f32 0.0, %v1617
  %v1619 = vpop.f32.mrf.mxu0
  %1620 = vmatprep.mubr.bf16.mxu0 0
  %1621 = vmatmul.mubr.bf16.gmra.mxu0 %v1058
  %v1622 = vpop.f32.mrf.mxu0
  %v1623 = vadd.f32 0.0, %v1622
  %v1624 = vpop.f32.mrf.mxu0
  %v1625 = vpop.f32.mrf.mxu0
  %v1626 = vadd.f32 0.0, %v1625
  %v1627 = vpop.f32.mrf.mxu0
  %1628 = vmatprep.mubr.bf16.mxu0 0
  %1629 = vmatmul.mubr.bf16.gmra.mxu0 %v1061
  %v1630 = vpop.f32.mrf.mxu0
  %v1631 = vadd.f32 0.0, %v1630
  %v1632 = vpop.f32.mrf.mxu0
  %v1633 = vpop.f32.mrf.mxu0
  %v1634 = vadd.f32 0.0, %v1633
  %v1635 = vpop.f32.mrf.mxu0
  %1636 = vmatprep.mubr.bf16.mxu0 0
  %1637 = vmatmul.mubr.bf16.gmra.mxu0 %v1064
  %v1638 = vpop.f32.mrf.mxu0
  %v1639 = vadd.f32 0.0, %v1638
  %v1640 = vpop.f32.mrf.mxu0
  %v1641 = vpop.f32.mrf.mxu0
  %v1642 = vadd.f32 0.0, %v1641
  %v1643 = vpop.f32.mrf.mxu0
  %1644 = vmatprep.mubr.bf16.mxu0 0
  %1645 = vmatmul.mubr.bf16.gmra.mxu0 %v1067
  %v1646 = vpop.f32.mrf.mxu0
  %v1647 = vadd.f32 0.0, %v1646
  %v1648 = vpop.f32.mrf.mxu0
  %v1649 = vpop.f32.mrf.mxu0
  %v1650 = vadd.f32 0.0, %v1649
  %v1651 = vpop.f32.mrf.mxu0
  %1652 = vmatprep.mubr.bf16.mxu0 0
  %1653 = vmatmul.mubr.bf16.gmra.mxu0 %v1070
  %v1654 = vpop.f32.mrf.mxu0
  %v1655 = vadd.f32 0.0, %v1654
  %v1656 = vpop.f32.mrf.mxu0
  %v1657 = vpop.f32.mrf.mxu0
  %v1658 = vadd.f32 0.0, %v1657
  %v1659 = vpop.f32.mrf.mxu0
  %1660 = vmatprep.mubr.bf16.mxu0 0
  %1661 = vmatmul.mubr.bf16.gmra.mxu0 %v1073
  %v1662 = vpop.f32.mrf.mxu0
  %v1663 = vadd.f32 0.0, %v1662
  %v1664 = vpop.f32.mrf.mxu0
  %v1665 = vpop.f32.mrf.mxu0
  %v1666 = vadd.f32 0.0, %v1665
  %v1667 = vpop.f32.mrf.mxu0
  %1668 = vmatprep.mubr.bf16.mxu0 0
  %1669 = vmatmul.mubr.bf16.gmra.mxu0 %v1076
  %v1670 = vpop.f32.mrf.mxu0
  %v1671 = vadd.f32 0.0, %v1670
  %v1672 = vpop.f32.mrf.mxu0
  %v1673 = vpop.f32.mrf.mxu0
  %v1674 = vadd.f32 0.0, %v1673
  %v1675 = vpop.f32.mrf.mxu0
  %1676 = vmatprep.mubr.bf16.mxu0 0
  %1677 = vmatmul.mubr.bf16.gmra.mxu0 %v1079
  %v1678 = vpop.f32.mrf.mxu0
  %v1679 = vadd.f32 0.0, %v1678
  %v1680 = vpop.f32.mrf.mxu0
  %v1681 = vpop.f32.mrf.mxu0
  %v1682 = vadd.f32 0.0, %v1681
  %v1683 = vpop.f32.mrf.mxu0
  %1684 = vmatprep.mubr.bf16.mxu0 0
  %1685 = vmatmul.mubr.bf16.gmra.mxu0 %v1082
  %v1686 = vpop.f32.mrf.mxu0
  %v1687 = vadd.f32 0.0, %v1686
  %v1688 = vpop.f32.mrf.mxu0
  %v1689 = vpop.f32.mrf.mxu0
  %v1690 = vadd.f32 0.0, %v1689
  %v1691 = vpop.f32.mrf.mxu0
  %1692 = vmatprep.mubr.bf16.mxu0 0
  %1693 = vmatmul.mubr.bf16.gmra.mxu0 %v1085
  %v1694 = vpop.f32.mrf.mxu0
  %v1695 = vadd.f32 0.0, %v1694
  %v1696 = vpop.f32.mrf.mxu0
  %v1697 = vpop.f32.mrf.mxu0
  %v1698 = vadd.f32 0.0, %v1697
  %v1699 = vpop.f32.mrf.mxu0
  %1700 = vmatprep.mubr.bf16.mxu0 0
  %1701 = vmatmul.mubr.bf16.gmra.mxu0 %v1088
  %v1702 = vpop.f32.mrf.mxu0
  %v1703 = vadd.f32 0.0, %v1702
  %v1704 = vpop.f32.mrf.mxu0
  %v1705 = vpop.f32.mrf.mxu0
  %v1706 = vadd.f32 0.0, %v1705
  %v1707 = vpop.f32.mrf.mxu0
  %1708 = vmatprep.mubr.bf16.mxu0 0
  %1709 = vmatmul.mubr.bf16.gmra.mxu0 %v1091
  %v1710 = vpop.f32.mrf.mxu0
  %v1711 = vadd.f32 0.0, %v1710
  %v1712 = vpop.f32.mrf.mxu0
  %v1713 = vpop.f32.mrf.mxu0
  %v1714 = vadd.f32 0.0, %v1713
  %v1715 = vpop.f32.mrf.mxu0
  %1716 = vmatprep.mubr.bf16.mxu0 0
  %1717 = vmatmul.mubr.bf16.gmra.mxu0 %v1094
  %v1718 = vpop.f32.mrf.mxu0
  %v1719 = vadd.f32 0.0, %v1718
  %v1720 = vpop.f32.mrf.mxu0
  %v1721 = vpop.f32.mrf.mxu0
  %v1722 = vadd.f32 0.0, %v1721
  %v1723 = vpop.f32.mrf.mxu0
  %1724 = vmatprep.mubr.bf16.mxu0 0
  %1725 = vmatmul.mubr.bf16.gmra.mxu0 %v1097
  %v1726 = vpop.f32.mrf.mxu0
  %v1727 = vadd.f32 0.0, %v1726
  %v1728 = vpop.f32.mrf.mxu0
  %v1729 = vpop.f32.mrf.mxu0
  %v1730 = vadd.f32 0.0, %v1729
  %v1731 = vpop.f32.mrf.mxu0
  %1732 = vmatprep.mubr.bf16.mxu0 0
  %1733 = vmatmul.mubr.bf16.gmra.mxu0 %v1100
  %v1734 = vpop.f32.mrf.mxu0
  %v1735 = vadd.f32 0.0, %v1734
  %v1736 = vpop.f32.mrf.mxu0
  %v1737 = vpop.f32.mrf.mxu0
  %v1738 = vadd.f32 0.0, %v1737
  %v1739 = vpop.f32.mrf.mxu0
  %1740 = vmatprep.mubr.bf16.mxu0 0
  %1741 = vmatmul.mubr.bf16.gmra.mxu0 %v1103
  %v1742 = vpop.f32.mrf.mxu0
  %v1743 = vadd.f32 0.0, %v1742
  %v1744 = vpop.f32.mrf.mxu0
  %v1745 = vpop.f32.mrf.mxu0
  %v1746 = vadd.f32 0.0, %v1745
  %v1747 = vpop.f32.mrf.mxu0
  %1748 = vmatprep.mubr.bf16.mxu0 0
  %1749 = vmatmul.mubr.bf16.gmra.mxu0 %v1106
  %v1750 = vpop.f32.mrf.mxu0
  %v1751 = vadd.f32 0.0, %v1750
  %v1752 = vpop.f32.mrf.mxu0
  %v1753 = vpop.f32.mrf.mxu0
  %v1754 = vadd.f32 0.0, %v1753
  %v1755 = vpop.f32.mrf.mxu0
  %1756 = vmatprep.mubr.bf16.mxu0 0
  %1757 = vmatmul.mubr.bf16.gmra.mxu0 %v1109
  %v1758 = vpop.f32.mrf.mxu0
  %v1759 = vadd.f32 0.0, %v1758
  %v1760 = vpop.f32.mrf.mxu0
  %v1761 = vpop.f32.mrf.mxu0
  %v1762 = vadd.f32 0.0, %v1761
  %v1763 = vpop.f32.mrf.mxu0
  %1764 = vmatprep.mubr.bf16.mxu0 0
  %1765 = vmatmul.mubr.bf16.gmra.mxu0 %v1112
  %v1766 = vpop.f32.mrf.mxu0
  %v1767 = vadd.f32 0.0, %v1766
  %v1768 = vpop.f32.mrf.mxu0
  %v1769 = vpop.f32.mrf.mxu0
  %v1770 = vadd.f32 0.0, %v1769
  %v1771 = vpop.f32.mrf.mxu0
  %1772 = vmatprep.mubr.bf16.mxu0 0
  %1773 = vmatmul.mubr.bf16.gmra.mxu0 %v1115
  %v1774 = vpop.f32.mrf.mxu0
  %v1775 = vadd.f32 0.0, %v1774
  %v1776 = vpop.f32.mrf.mxu0
  %v1777 = vpop.f32.mrf.mxu0
  %v1778 = vadd.f32 0.0, %v1777
  %v1779 = vpop.f32.mrf.mxu0
  %1780 = vmatprep.mubr.bf16.mxu0 0
  %1781 = vmatmul.mubr.bf16.gmra.mxu0 %v1118
  %v1782 = vpop.f32.mrf.mxu0
  %v1783 = vadd.f32 0.0, %v1782
  %v1784 = vpop.f32.mrf.mxu0
  %v1785 = vpop.f32.mrf.mxu0
  %v1786 = vadd.f32 0.0, %v1785
  %v1787 = vpop.f32.mrf.mxu0
  %1788 = vmatprep.mubr.bf16.mxu0 0
  %1789 = vmatmul.mubr.bf16.gmra.mxu0 %v1121
  %v1790 = vpop.f32.mrf.mxu0
  %v1791 = vadd.f32 0.0, %v1790
  %v1792 = vpop.f32.mrf.mxu0
  %v1793 = vpop.f32.mrf.mxu0
  %v1794 = vadd.f32 0.0, %v1793
  %v1795 = vpop.f32.mrf.mxu0
  %1796 = vmatprep.mubr.bf16.mxu0 0
  %1797 = vmatmul.mubr.bf16.gmra.mxu0 %v1124
  %v1798 = vpop.f32.mrf.mxu0
  %v1799 = vadd.f32 0.0, %v1798
  %v1800 = vpop.f32.mrf.mxu0
  %v1801 = vpop.f32.mrf.mxu0
  %v1802 = vadd.f32 0.0, %v1801
  %v1803 = vpop.f32.mrf.mxu0
  %1804 = vmatprep.mubr.bf16.mxu0 0
  %1805 = vmatmul.mubr.bf16.gmra.mxu0 %v1127
  %v1806 = vpop.f32.mrf.mxu0
  %v1807 = vadd.f32 0.0, %v1806
  %v1808 = vpop.f32.mrf.mxu0
  %v1809 = vpop.f32.mrf.mxu0
  %v1810 = vadd.f32 0.0, %v1809
  %v1811 = vpop.f32.mrf.mxu0
  %1812 = vmatprep.mubr.bf16.mxu0 0
  %1813 = vmatmul.mubr.bf16.gmra.mxu0 %v1130
  %v1814 = vpop.f32.mrf.mxu0
  %v1815 = vadd.f32 0.0, %v1814
  %v1816 = vpop.f32.mrf.mxu0
  %v1817 = vpop.f32.mrf.mxu0
  %v1818 = vadd.f32 0.0, %v1817
  %v1819 = vpop.f32.mrf.mxu0
  %1820 = vmatprep.mubr.bf16.mxu0 0
  %1821 = vmatmul.mubr.bf16.gmra.mxu0 %v1133
  %v1822 = vpop.f32.mrf.mxu0
  %v1823 = vadd.f32 0.0, %v1822
  %v1824 = vpop.f32.mrf.mxu0
  %v1825 = vpop.f32.mrf.mxu0
  %v1826 = vadd.f32 0.0, %v1825
  %v1827 = vpop.f32.mrf.mxu0
  %1828 = vmatprep.mubr.bf16.mxu0 0
  %1829 = vmatmul.mubr.bf16.gmra.mxu0 %v1136
  %v1830 = vpop.f32.mrf.mxu0
  %v1831 = vadd.f32 0.0, %v1830
  %v1832 = vpop.f32.mrf.mxu0
  %v1833 = vpop.f32.mrf.mxu0
  %v1834 = vadd.f32 0.0, %v1833
  %v1835 = vpop.f32.mrf.mxu0
  %1836 = vmatprep.mubr.bf16.mxu0 0
  %1837 = vmatmul.mubr.bf16.gmra.mxu0 %v1139
  %v1838 = vpop.f32.mrf.mxu0
  %v1839 = vadd.f32 0.0, %v1838
  %v1840 = vpop.f32.mrf.mxu0
  %v1841 = vpop.f32.mrf.mxu0
  %v1842 = vadd.f32 0.0, %v1841
  %v1843 = vpop.f32.mrf.mxu0
  %1844 = vmatprep.mubr.bf16.mxu0 0
  %1845 = vmatmul.mubr.bf16.gmra.mxu0 %v1142
  %v1846 = vpop.f32.mrf.mxu0
  %v1847 = vadd.f32 0.0, %v1846
  %v1848 = vpop.f32.mrf.mxu0
  %v1849 = vpop.f32.mrf.mxu0
  %v1850 = vadd.f32 0.0, %v1849
  %v1851 = vpop.f32.mrf.mxu0
  %1852 = vmatprep.mubr.bf16.mxu0 0
  %1853 = vmatmul.mubr.bf16.gmra.mxu0 %v1145
  %v1854 = vpop.f32.mrf.mxu0
  %v1855 = vadd.f32 0.0, %v1854
  %v1856 = vpop.f32.mrf.mxu0
  %v1857 = vpop.f32.mrf.mxu0
  %v1858 = vadd.f32 0.0, %v1857
  %v1859 = vpop.f32.mrf.mxu0
  %1860 = vmatprep.mubr.bf16.mxu0 0
  %1861 = vmatmul.mubr.bf16.gmra.mxu0 %v1148
  %v1862 = vpop.f32.mrf.mxu0
  %v1863 = vadd.f32 0.0, %v1862
  %v1864 = vpop.f32.mrf.mxu0
  %v1865 = vpop.f32.mrf.mxu0
  %v1866 = vadd.f32 0.0, %v1865
  %v1867 = vpop.f32.mrf.mxu0
  %1868 = vmatprep.mubr.bf16.mxu0 0
  %1869 = vmatmul.mubr.bf16.gmra.mxu0 %v1151
  %v1870 = vpop.f32.mrf.mxu0
  %v1871 = vadd.f32 0.0, %v1870
  %v1872 = vpop.f32.mrf.mxu0
  %v1873 = vpop.f32.mrf.mxu0
  %v1874 = vadd.f32 0.0, %v1873
  %v1875 = vpop.f32.mrf.mxu0
  %1876 = vmatprep.mubr.bf16.mxu0 0
  %1877 = vmatmul.mubr.bf16.gmra.mxu0 %v1154
  %v1878 = vpop.f32.mrf.mxu0
  %v1879 = vadd.f32 0.0, %v1878
  %v1880 = vpop.f32.mrf.mxu0
  %v1881 = vpop.f32.mrf.mxu0
  %v1882 = vadd.f32 0.0, %v1881
  %v1883 = vpop.f32.mrf.mxu0
  %1884 = vmatprep.mubr.bf16.mxu0 0
  %1885 = vmatmul.mubr.bf16.gmra.mxu0 %v1157
  %v1886 = vpop.f32.mrf.mxu0
  %v1887 = vadd.f32 0.0, %v1886
  %v1888 = vpop.f32.mrf.mxu0
  %v1889 = vpop.f32.mrf.mxu0
  %v1890 = vadd.f32 0.0, %v1889
  %v1891 = vpop.f32.mrf.mxu0
  %1892 = vmatprep.mubr.bf16.mxu0 0
  %1893 = vmatmul.mubr.bf16.gmra.mxu0 %v1160
  %v1894 = vpop.f32.mrf.mxu0
  %v1895 = vadd.f32 0.0, %v1894
  %v1896 = vpop.f32.mrf.mxu0
  %v1897 = vpop.f32.mrf.mxu0
  %v1898 = vadd.f32 0.0, %v1897
  %v1899 = vpop.f32.mrf.mxu0
  %1900 = vmatprep.mubr.bf16.mxu0 0
  %1901 = vmatmul.mubr.bf16.gmra.mxu0 %v1163
  %v1902 = vpop.f32.mrf.mxu0
  %v1903 = vadd.f32 0.0, %v1902
  %v1904 = vpop.f32.mrf.mxu0
  %v1905 = vpop.f32.mrf.mxu0
  %v1906 = vadd.f32 0.0, %v1905
  %v1907 = vpop.f32.mrf.mxu0
  %1908 = vmatprep.mubr.bf16.mxu0 0
  %1909 = vmatmul.mubr.bf16.gmra.mxu0 %v1166
  %v1910 = vpop.f32.mrf.mxu0
  %v1911 = vadd.f32 0.0, %v1910
  %v1912 = vpop.f32.mrf.mxu0
  %v1913 = vpop.f32.mrf.mxu0
  %v1914 = vadd.f32 0.0, %v1913
  %v1915 = vpop.f32.mrf.mxu0
  %1916 = vmatprep.mubr.bf16.mxu0 0
  %1917 = vmatmul.mubr.bf16.gmra.mxu0 %v1169
  %v1918 = vpop.f32.mrf.mxu0
  %v1919 = vadd.f32 0.0, %v1918
  %v1920 = vpop.f32.mrf.mxu0
  %v1921 = vpop.f32.mrf.mxu0
  %v1922 = vadd.f32 0.0, %v1921
  %v1923 = vpop.f32.mrf.mxu0
  %1924 = vmatprep.mubr.bf16.mxu0 0
  %1925 = vmatmul.mubr.bf16.gmra.mxu0 %v1172
  %v1926 = vpop.f32.mrf.mxu0
  %v1927 = vadd.f32 0.0, %v1926
  %v1928 = vpop.f32.mrf.mxu0
  %v1929 = vpop.f32.mrf.mxu0
  %v1930 = vadd.f32 0.0, %v1929
  %v1931 = vpop.f32.mrf.mxu0
  %1932 = vmatprep.mubr.bf16.mxu0 0
  %1933 = vmatmul.mubr.bf16.gmra.mxu0 %v1175
  %v1934 = vpop.f32.mrf.mxu0
  %v1935 = vadd.f32 0.0, %v1934
  %v1936 = vpop.f32.mrf.mxu0
  %v1937 = vpop.f32.mrf.mxu0
  %v1938 = vadd.f32 0.0, %v1937
  %v1939 = vpop.f32.mrf.mxu0
  %1940 = vmatprep.mubr.bf16.mxu0 0
  %1941 = vmatmul.mubr.bf16.gmra.mxu0 %v1178
  %v1942 = vpop.f32.mrf.mxu0
  %v1943 = vadd.f32 0.0, %v1942
  %v1944 = vpop.f32.mrf.mxu0
  %v1945 = vpop.f32.mrf.mxu0
  %v1946 = vadd.f32 0.0, %v1945
  %v1947 = vpop.f32.mrf.mxu0
  %1948 = vmatprep.mubr.bf16.mxu0 0
  %1949 = vmatmul.mubr.bf16.gmra.mxu0 %v1181
  %v1950 = vpop.f32.mrf.mxu0
  %v1951 = vadd.f32 0.0, %v1950
  %v1952 = vpop.f32.mrf.mxu0
  %v1953 = vpop.f32.mrf.mxu0
  %v1954 = vadd.f32 0.0, %v1953
  %v1955 = vpop.f32.mrf.mxu0
  %1956 = vmatprep.mubr.bf16.mxu0 0
  %1957 = vmatmul.mubr.bf16.gmra.mxu0 %v1184
  %v1958 = vpop.f32.mrf.mxu0
  %v1959 = vadd.f32 0.0, %v1958
  %v1960 = vpop.f32.mrf.mxu0
  %v1961 = vpop.f32.mrf.mxu0
  %v1962 = vadd.f32 0.0, %v1961
  %v1963 = vpop.f32.mrf.mxu0
  %1964 = vmatprep.mubr.bf16.mxu0 0
  %1965 = vmatmul.mubr.bf16.gmra.mxu0 %v1187
  %v1966 = vpop.f32.mrf.mxu0
  %v1967 = vadd.f32 0.0, %v1966
  %v1968 = vpop.f32.mrf.mxu0
  %v1969 = vpop.f32.mrf.mxu0
  %v1970 = vadd.f32 0.0, %v1969
  %v1971 = vpop.f32.mrf.mxu0
  %1972 = vmatprep.mubr.bf16.mxu0 0
  %1973 = vmatmul.mubr.bf16.gmra.mxu0 %v1190
  %v1974 = vpop.f32.mrf.mxu0
  %v1975 = vadd.f32 0.0, %v1974
  %v1976 = vpop.f32.mrf.mxu0
  %v1977 = vpop.f32.mrf.mxu0
  %v1978 = vadd.f32 0.0, %v1977
  %v1979 = vpop.f32.mrf.mxu0
  %1980 = vmatprep.mubr.bf16.mxu0 0
  %1981 = vmatmul.mubr.bf16.gmra.mxu0 %v1193
  %v1982 = vpop.f32.mrf.mxu0
  %v1983 = vadd.f32 0.0, %v1982
  %v1984 = vpop.f32.mrf.mxu0
  %v1985 = vpop.f32.mrf.mxu0
  %v1986 = vadd.f32 0.0, %v1985
  %v1987 = vpop.f32.mrf.mxu0
  %1988 = vmatprep.mubr.bf16.mxu0 0
  %1989 = vmatmul.mubr.bf16.gmra.mxu0 %v1196
  %v1990 = vpop.f32.mrf.mxu0
  %v1991 = vadd.f32 0.0, %v1990
  %v1992 = vpop.f32.mrf.mxu0
  %v1993 = vpop.f32.mrf.mxu0
  %v1994 = vadd.f32 0.0, %v1993
  %v1995 = vpop.f32.mrf.mxu0
  %1996 = vmatprep.mubr.bf16.mxu0 0
  %1997 = vmatmul.mubr.bf16.gmra.mxu0 %v1199
  %v1998 = vpop.f32.mrf.mxu0
  %v1999 = vadd.f32 0.0, %v1998
  %v2000 = vpop.f32.mrf.mxu0
  %v2001 = vpop.f32.mrf.mxu0
  %v2002 = vadd.f32 0.0, %v2001
  %v2003 = vpop.f32.mrf.mxu0
  %2004 = vmatprep.mubr.bf16.mxu0 0
  %2005 = vmatmul.mubr.bf16.gmra.mxu0 %v1202
  %v2006 = vpop.f32.mrf.mxu0
  %v2007 = vadd.f32 0.0, %v2006
  %v2008 = vpop.f32.mrf.mxu0
  %v2009 = vpop.f32.mrf.mxu0
  %v2010 = vadd.f32 0.0, %v2009
  %v2011 = vpop.f32.mrf.mxu0
  %2012 = vmatprep.mubr.bf16.mxu0 0
  %2013 = vmatmul.mubr.bf16.gmra.mxu0 %v1205
  %v2014 = vpop.f32.mrf.mxu0
  %v2015 = vadd.f32 0.0, %v2014
  %v2016 = vpop.f32.mrf.mxu0
  %v2017 = vpop.f32.mrf.mxu0
  %v2018 = vadd.f32 0.0, %v2017
  %v2019 = vpop.f32.mrf.mxu0
  %2020 = vmatprep.mubr.bf16.mxu0 0
  %2021 = vmatmul.mubr.bf16.gmra.mxu0 %v1208
  %v2022 = vpop.f32.mrf.mxu0
  %v2023 = vadd.f32 0.0, %v2022
  %v2024 = vpop.f32.mrf.mxu0
  %v2025 = vpop.f32.mrf.mxu0
  %v2026 = vadd.f32 0.0, %v2025
  %v2027 = vpop.f32.mrf.mxu0
  %2028 = vmatprep.mubr.bf16.mxu0 0
  %2029 = vmatmul.mubr.bf16.gmra.mxu0 %v1211
  %v2030 = vpop.f32.mrf.mxu0
  %v2031 = vadd.f32 0.0, %v2030
  %v2032 = vpop.f32.mrf.mxu0
  %v2033 = vpop.f32.mrf.mxu0
  %v2034 = vadd.f32 0.0, %v2033
  %v2035 = vpop.f32.mrf.mxu0
  %2036 = vmatprep.mubr.bf16.mxu0 0
  %2037 = vmatmul.mubr.bf16.gmra.mxu0 %v1214
  %v2038 = vpop.f32.mrf.mxu0
  %v2039 = vadd.f32 0.0, %v2038
  %v2040 = vpop.f32.mrf.mxu0
  %v2041 = vpop.f32.mrf.mxu0
  %v2042 = vadd.f32 0.0, %v2041
  %v2043 = vpop.f32.mrf.mxu0
  %2044 = vmatprep.mubr.bf16.mxu0 0
  %2045 = vmatmul.mubr.bf16.gmra.mxu0 %v1217
  %v2046 = vpop.f32.mrf.mxu0
  %v2047 = vadd.f32 0.0, %v2046
  %v2048 = vpop.f32.mrf.mxu0
  %v2049 = vpop.f32.mrf.mxu0
  %v2050 = vadd.f32 0.0, %v2049
  %v2051 = vpop.f32.mrf.mxu0
  %2052 = vmatprep.mubr.bf16.mxu0 0
  %2053 = vmatmul.mubr.bf16.gmra.mxu0 %v1220
  %v2054 = vpop.f32.mrf.mxu0
  %v2055 = vadd.f32 0.0, %v2054
  %v2056 = vpop.f32.mrf.mxu0
  %v2057 = vpop.f32.mrf.mxu0
  %v2058 = vadd.f32 0.0, %v2057
  %v2059 = vpop.f32.mrf.mxu0
  %2060 = vmatprep.mubr.bf16.mxu0 0
  %2061 = vmatmul.mubr.bf16.gmra.mxu0 %v1223
  %v2062 = vpop.f32.mrf.mxu0
  %v2063 = vadd.f32 0.0, %v2062
  %v2064 = vpop.f32.mrf.mxu0
  %v2065 = vpop.f32.mrf.mxu0
  %v2066 = vadd.f32 0.0, %v2065
  %v2067 = vpop.f32.mrf.mxu0
  %2068 = vmatprep.mubr.bf16.mxu0 0
  %2069 = vmatmul.mubr.bf16.gmra.mxu0 %v1226
  %v2070 = vpop.f32.mrf.mxu0
  %v2071 = vadd.f32 0.0, %v2070
  %v2072 = vpop.f32.mrf.mxu0
  %v2073 = vpop.f32.mrf.mxu0
  %v2074 = vadd.f32 0.0, %v2073
  %v2075 = vpop.f32.mrf.mxu0
  %2076 = vmatprep.mubr.bf16.mxu0 0
  %2077 = vmatmul.mubr.bf16.gmra.mxu0 %v1229
  %v2078 = vpop.f32.mrf.mxu0
  %v2079 = vadd.f32 0.0, %v2078
  %v2080 = vpop.f32.mrf.mxu0
  %v2081 = vpop.f32.mrf.mxu0
  %v2082 = vadd.f32 0.0, %v2081
  %v2083 = vpop.f32.mrf.mxu0
  %2084 = vmatprep.mubr.bf16.mxu0 0
  %2085 = vmatmul.mubr.bf16.gmra.mxu0 %v1232
  %v2086 = vpop.f32.mrf.mxu0
  %v2087 = vadd.f32 0.0, %v2086
  %v2088 = vpop.f32.mrf.mxu0
  %v2089 = vpop.f32.mrf.mxu0
  %v2090 = vadd.f32 0.0, %v2089
  %v2091 = vpop.f32.mrf.mxu0
  %2092 = vmatprep.mubr.bf16.mxu0 0
  %2093 = vmatmul.mubr.bf16.gmra.mxu0 %v1235
  %v2094 = vpop.f32.mrf.mxu0
  %v2095 = vadd.f32 0.0, %v2094
  %v2096 = vpop.f32.mrf.mxu0
  %v2097 = vpop.f32.mrf.mxu0
  %v2098 = vadd.f32 0.0, %v2097
  %v2099 = vpop.f32.mrf.mxu0
  %2100 = vmatprep.mubr.bf16.mxu0 0
  %2101 = vmatmul.mubr.bf16.gmra.mxu0 %v1238
  %v2102 = vpop.f32.mrf.mxu0
  %v2103 = vadd.f32 0.0, %v2102
  %v2104 = vpop.f32.mrf.mxu0
  %v2105 = vpop.f32.mrf.mxu0
  %v2106 = vadd.f32 0.0, %v2105
  %v2107 = vpop.f32.mrf.mxu0
  %2108 = vmatprep.mubr.bf16.mxu0 0
  %2109 = vmatmul.mubr.bf16.gmra.mxu0 %v1241
  %v2110 = vpop.f32.mrf.mxu0
  %v2111 = vadd.f32 0.0, %v2110
  %v2112 = vpop.f32.mrf.mxu0
  %v2113 = vpop.f32.mrf.mxu0
  %v2114 = vadd.f32 0.0, %v2113
  %v2115 = vpop.f32.mrf.mxu0
  %2116 = vmatprep.mubr.bf16.mxu0 0
  %2117 = vmatmul.mubr.bf16.gmra.mxu0 %v1244
  %v2118 = vpop.f32.mrf.mxu0
  %v2119 = vadd.f32 0.0, %v2118
  %v2120 = vpop.f32.mrf.mxu0
  %v2121 = vpop.f32.mrf.mxu0
  %v2122 = vadd.f32 0.0, %v2121
  %v2123 = vpop.f32.mrf.mxu0
  %2124 = vmatprep.mubr.bf16.mxu0 0
  %2125 = vmatmul.mubr.bf16.gmra.mxu0 %v1247
  %v2126 = vpop.f32.mrf.mxu0
  %v2127 = vadd.f32 0.0, %v2126
  %v2128 = vpop.f32.mrf.mxu0
  %v2129 = vpop.f32.mrf.mxu0
  %v2130 = vadd.f32 0.0, %v2129
  %v2131 = vpop.f32.mrf.mxu0
  %2132 = vmatprep.mubr.bf16.mxu0 0
  %2133 = vmatmul.mubr.bf16.gmra.mxu0 %v1250
  %v2134 = vpop.f32.mrf.mxu0
  %v2135 = vadd.f32 0.0, %v2134
  %v2136 = vpop.f32.mrf.mxu0
  %v2137 = vpop.f32.mrf.mxu0
  %v2138 = vadd.f32 0.0, %v2137
  %v2139 = vpop.f32.mrf.mxu0
  %2140 = vmatprep.mubr.bf16.mxu0 0
  %2141 = vmatmul.mubr.bf16.gmra.mxu0 %v1253
  %v2142 = vpop.f32.mrf.mxu0
  %v2143 = vadd.f32 0.0, %v2142
  %v2144 = vpop.f32.mrf.mxu0
  %v2145 = vpop.f32.mrf.mxu0
  %v2146 = vadd.f32 0.0, %v2145
  %v2147 = vpop.f32.mrf.mxu0
  %2148 = vmatprep.mubr.bf16.mxu0 0
  %2149 = vmatmul.mubr.bf16.gmra.mxu0 %v1256
  %v2150 = vpop.f32.mrf.mxu0
  %v2151 = vadd.f32 0.0, %v2150
  %v2152 = vpop.f32.mrf.mxu0
  %v2153 = vpop.f32.mrf.mxu0
  %v2154 = vadd.f32 0.0, %v2153
  %v2155 = vpop.f32.mrf.mxu0
  %2156 = vmatprep.mubr.bf16.mxu0 0
  %2157 = vmatmul.mubr.bf16.gmra.mxu0 %v1259
  %v2158 = vpop.f32.mrf.mxu0
  %v2159 = vadd.f32 0.0, %v2158
  %v2160 = vpop.f32.mrf.mxu0
  %v2161 = vpop.f32.mrf.mxu0
  %v2162 = vadd.f32 0.0, %v2161
  %v2163 = vpop.f32.mrf.mxu0
  %2164 = vmatprep.mubr.bf16.mxu0 0
  %2165 = vmatmul.mubr.bf16.gmra.mxu0 %v1262
  %v2166 = vpop.f32.mrf.mxu0
  %v2167 = vadd.f32 0.0, %v2166
  %v2168 = vpop.f32.mrf.mxu0
  %v2169 = vpop.f32.mrf.mxu0
  %v2170 = vadd.f32 0.0, %v2169
  %v2171 = vpop.f32.mrf.mxu0
  %2172 = vmatprep.mubr.bf16.mxu0 0
  %2173 = vmatmul.mubr.bf16.gmra.mxu0 %v1265
  %v2174 = vpop.f32.mrf.mxu0
  %v2175 = vadd.f32 0.0, %v2174
  %v2176 = vpop.f32.mrf.mxu0
  %v2177 = vpop.f32.mrf.mxu0
  %v2178 = vadd.f32 0.0, %v2177
  %v2179 = vpop.f32.mrf.mxu0
  %2180 = vmatprep.mubr.bf16.mxu0 0
  %2181 = vmatmul.mubr.bf16.gmra.mxu0 %v1268
  %v2182 = vpop.f32.mrf.mxu0
  %v2183 = vadd.f32 0.0, %v2182
  %v2184 = vpop.f32.mrf.mxu0
  %v2185 = vpop.f32.mrf.mxu0
  %v2186 = vadd.f32 0.0, %v2185
  %v2187 = vpop.f32.mrf.mxu0
  %2188 = vmatprep.mubr.bf16.mxu0 0
  %2189 = vmatmul.mubr.bf16.gmra.mxu0 %v1271
  %v2190 = vpop.f32.mrf.mxu0
  %v2191 = vadd.f32 0.0, %v2190
  %v2192 = vpop.f32.mrf.mxu0
  %v2193 = vpop.f32.mrf.mxu0
  %v2194 = vadd.f32 0.0, %v2193
  %v2195 = vpop.f32.mrf.mxu0
  %2196 = vmatprep.mubr.bf16.mxu0 0
  %2197 = vmatmul.mubr.bf16.gmra.mxu0 %v1274
  %v2198 = vpop.f32.mrf.mxu0
  %v2199 = vadd.f32 0.0, %v2198
  %v2200 = vpop.f32.mrf.mxu0
  %v2201 = vpop.f32.mrf.mxu0
  %v2202 = vadd.f32 0.0, %v2201
  %v2203 = vpop.f32.mrf.mxu0
  %2204 = vmatprep.mubr.bf16.mxu0 0
  %2205 = vmatmul.mubr.bf16.gmra.mxu0 %v1277
  %v2206 = vpop.f32.mrf.mxu0
  %v2207 = vadd.f32 0.0, %v2206
  %v2208 = vpop.f32.mrf.mxu0
  %v2209 = vpop.f32.mrf.mxu0
  %v2210 = vadd.f32 0.0, %v2209
  %v2211 = vpop.f32.mrf.mxu0
  %2212 = vmatprep.mubr.bf16.mxu0 0
  %2213 = vmatmul.mubr.bf16.gmra.mxu0 %v1280
  %v2214 = vpop.f32.mrf.mxu0
  %v2215 = vadd.f32 0.0, %v2214
  %v2216 = vpop.f32.mrf.mxu0
  %v2217 = vpop.f32.mrf.mxu0
  %v2218 = vadd.f32 0.0, %v2217
  %v2219 = vpop.f32.mrf.mxu0
  %2220 = vmatprep.mubr.bf16.mxu0 0
  %2221 = vmatmul.mubr.bf16.gmra.mxu0 %v1283
  %v2222 = vpop.f32.mrf.mxu0
  %v2223 = vadd.f32 0.0, %v2222
  %v2224 = vpop.f32.mrf.mxu0
  %v2225 = vpop.f32.mrf.mxu0
  %v2226 = vadd.f32 0.0, %v2225
  %v2227 = vpop.f32.mrf.mxu0
  %2228 = vmatprep.mubr.bf16.mxu0 0
  %2229 = vmatmul.mubr.bf16.gmra.mxu0 %v1286
  %v2230 = vpop.f32.mrf.mxu0
  %v2231 = vadd.f32 0.0, %v2230
  %v2232 = vpop.f32.mrf.mxu0
  %v2233 = vpop.f32.mrf.mxu0
  %v2234 = vadd.f32 0.0, %v2233
  %v2235 = vpop.f32.mrf.mxu0
  %2236 = vmatprep.mubr.bf16.mxu0 0
  %2237 = vmatmul.mubr.bf16.gmra.mxu0 %v1289
  %v2238 = vpop.f32.mrf.mxu0
  %v2239 = vadd.f32 0.0, %v2238
  %v2240 = vpop.f32.mrf.mxu0
  %v2241 = vpop.f32.mrf.mxu0
  %v2242 = vadd.f32 0.0, %v2241
  %v2243 = vpop.f32.mrf.mxu0
  %2244 = vmatprep.mubr.bf16.mxu0 0
  %2245 = vmatmul.mubr.bf16.gmra.mxu0 %v1292
  %v2246 = vpop.f32.mrf.mxu0
  %v2247 = vadd.f32 0.0, %v2246
  %v2248 = vpop.f32.mrf.mxu0
  %v2249 = vpop.f32.mrf.mxu0
  %v2250 = vadd.f32 0.0, %v2249
  %v2251 = vpop.f32.mrf.mxu0
  %2252 = vmatprep.mubr.bf16.mxu0 0
  %2253 = vmatmul.mubr.bf16.gmra.mxu0 %v1295
  %v2254 = vpop.f32.mrf.mxu0
  %v2255 = vadd.f32 0.0, %v2254
  %v2256 = vpop.f32.mrf.mxu0
  %v2257 = vpop.f32.mrf.mxu0
  %v2258 = vadd.f32 0.0, %v2257
  %v2259 = vpop.f32.mrf.mxu0
  %2260 = vmatprep.mubr.bf16.mxu0 0
  %2261 = vmatmul.mubr.bf16.gmra.mxu0 %v1298
  %v2262 = vpop.f32.mrf.mxu0
  %v2263 = vadd.f32 0.0, %v2262
  %v2264 = vpop.f32.mrf.mxu0
  %v2265 = vpop.f32.mrf.mxu0
  %v2266 = vadd.f32 0.0, %v2265
  %v2267 = vpop.f32.mrf.mxu0
  %2268 = vmatprep.mubr.bf16.mxu0 0
  %2269 = vmatmul.mubr.bf16.gmra.mxu0 %v1301
  %v2270 = vpop.f32.mrf.mxu0
  %v2271 = vadd.f32 0.0, %v2270
  %v2272 = vpop.f32.mrf.mxu0
  %v2273 = vpop.f32.mrf.mxu0
  %v2274 = vadd.f32 0.0, %v2273
  %v2275 = vpop.f32.mrf.mxu0
  %2276 = vmatprep.mubr.bf16.mxu0 0
  %2277 = vmatmul.mubr.bf16.gmra.mxu0 %v1304
  %v2278 = vpop.f32.mrf.mxu0
  %v2279 = vadd.f32 0.0, %v2278
  %v2280 = vpop.f32.mrf.mxu0
  %v2281 = vpop.f32.mrf.mxu0
  %v2282 = vadd.f32 0.0, %v2281
  %v2283 = vpop.f32.mrf.mxu0
  %2284 = vmatprep.mubr.bf16.mxu0 0
  %2285 = vmatmul.mubr.bf16.gmra.mxu0 %v1307
  %v2286 = vpop.f32.mrf.mxu0
  %v2287 = vadd.f32 0.0, %v2286
  %v2288 = vpop.f32.mrf.mxu0
  %v2289 = vpop.f32.mrf.mxu0
  %v2290 = vadd.f32 0.0, %v2289
  %v2291 = vpop.f32.mrf.mxu0
  %2292 = vmatprep.mubr.bf16.mxu0 0
  %2293 = vmatmul.mubr.bf16.gmra.mxu0 %v1310
  %v2294 = vpop.f32.mrf.mxu0
  %v2295 = vadd.f32 0.0, %v2294
  %v2296 = vpop.f32.mrf.mxu0
  %v2297 = vpop.f32.mrf.mxu0
  %v2298 = vadd.f32 0.0, %v2297
  %v2299 = vpop.f32.mrf.mxu0
  %2300 = vmatprep.mubr.bf16.mxu0 0
  %2301 = vmatmul.mubr.bf16.gmra.mxu0 %v1313
  %v2302 = vpop.f32.mrf.mxu0
  %v2303 = vadd.f32 0.0, %v2302
  %v2304 = vpop.f32.mrf.mxu0
  %v2305 = vpop.f32.mrf.mxu0
  %v2306 = vadd.f32 0.0, %v2305
  %v2307 = vpop.f32.mrf.mxu0
  %2308 = vmatprep.mubr.bf16.mxu0 0
  %2309 = vmatmul.mubr.bf16.gmra.mxu0 %v1316
  %v2310 = vpop.f32.mrf.mxu0
  %v2311 = vadd.f32 0.0, %v2310
  %v2312 = vpop.f32.mrf.mxu0
  %v2313 = vpop.f32.mrf.mxu0
  %v2314 = vadd.f32 0.0, %v2313
  %v2315 = vpop.f32.mrf.mxu0
  %2316 = vmatprep.mubr.bf16.mxu0 0
  %2317 = vmatmul.mubr.bf16.gmra.mxu0 %v1319
  %v2318 = vpop.f32.mrf.mxu0
  %v2319 = vadd.f32 0.0, %v2318
  %v2320 = vpop.f32.mrf.mxu0
  %v2321 = vpop.f32.mrf.mxu0
  %v2322 = vadd.f32 0.0, %v2321
  %v2323 = vpop.f32.mrf.mxu0
  %2324 = vmatprep.mubr.bf16.mxu0 0
  %2325 = vmatmul.mubr.bf16.gmra.mxu0 %v1322
  %v2326 = vpop.f32.mrf.mxu0
  %v2327 = vadd.f32 0.0, %v2326
  %v2328 = vpop.f32.mrf.mxu0
  %v2329 = vpop.f32.mrf.mxu0
  %v2330 = vadd.f32 0.0, %v2329
  %v2331 = vpop.f32.mrf.mxu0
  %2332 = vmatprep.mubr.bf16.mxu0 0
  %2333 = vmatmul.mubr.bf16.gmra.mxu0 %v1325
  %v2334 = vpop.f32.mrf.mxu0
  %v2335 = vadd.f32 0.0, %v2334
  %v2336 = vpop.f32.mrf.mxu0
  %v2337 = vpop.f32.mrf.mxu0
  %v2338 = vadd.f32 0.0, %v2337
  %v2339 = vpop.f32.mrf.mxu0
  %2340 = vmatprep.mubr.bf16.mxu0 0
  %2341 = vmatmul.mubr.bf16.gmra.mxu0 %v1328
  %v2342 = vpop.f32.mrf.mxu0
  %v2343 = vadd.f32 0.0, %v2342
  %v2344 = vpop.f32.mrf.mxu0
  %v2345 = vpop.f32.mrf.mxu0
  %v2346 = vadd.f32 0.0, %v2345
  %v2347 = vpop.f32.mrf.mxu0
  %2348 = vmatprep.mubr.bf16.mxu0 0
  %2349 = vmatmul.mubr.bf16.gmra.mxu0 %v1331
  %v2350 = vpop.f32.mrf.mxu0
  %v2351 = vadd.f32 0.0, %v2350
  %v2352 = vpop.f32.mrf.mxu0
  %v2353 = vpop.f32.mrf.mxu0
  %v2354 = vadd.f32 0.0, %v2353
  %v2355 = vpop.f32.mrf.mxu0
  %2356 = vmatprep.mubr.bf16.mxu0 0
  %2357 = vmatmul.mubr.bf16.gmra.mxu0 %v1334
  %v2358 = vpop.f32.mrf.mxu0
  %v2359 = vadd.f32 0.0, %v2358
  %v2360 = vpop.f32.mrf.mxu0
  %v2361 = vpop.f32.mrf.mxu0
  %v2362 = vadd.f32 0.0, %v2361
  %v2363 = vpop.f32.mrf.mxu0
  %2364 = vmatprep.mubr.bf16.mxu0 0
  %2365 = vmatmul.mubr.bf16.gmra.mxu0 %v1337
  %v2366 = vpop.f32.mrf.mxu0
  %v2367 = vadd.f32 0.0, %v2366
  %v2368 = vpop.f32.mrf.mxu0
  %v2369 = vpop.f32.mrf.mxu0
  %v2370 = vadd.f32 0.0, %v2369
  %v2371 = vpop.f32.mrf.mxu0
  %2372 = vmatprep.mubr.bf16.mxu0 0
  %2373 = vmatmul.mubr.bf16.gmra.mxu0 %v1340
  %v2374 = vpop.f32.mrf.mxu0
  %v2375 = vadd.f32 0.0, %v2374
  %v2376 = vpop.f32.mrf.mxu0
  %v2377 = vpop.f32.mrf.mxu0
  %v2378 = vadd.f32 0.0, %v2377
  %v2379 = vpop.f32.mrf.mxu0
  %2380 = vmatprep.mubr.bf16.mxu0 0
  %2381 = vmatmul.mubr.bf16.gmra.mxu0 %v1343
  %v2382 = vpop.f32.mrf.mxu0
  %v2383 = vadd.f32 0.0, %v2382
  %v2384 = vpop.f32.mrf.mxu0
  %v2385 = vpop.f32.mrf.mxu0
  %v2386 = vadd.f32 0.0, %v2385
  %v2387 = vpop.f32.mrf.mxu0
  %2388 = vmatprep.mubr.bf16.mxu0 0
  %2389 = vmatmul.mubr.bf16.gmra.mxu0 %v1346
  %v2390 = vpop.f32.mrf.mxu0
  %v2391 = vadd.f32 0.0, %v2390
  %v2392 = vpop.f32.mrf.mxu0
  %v2393 = vpop.f32.mrf.mxu0
  %v2394 = vadd.f32 0.0, %v2393
  %v2395 = vpop.f32.mrf.mxu0
  %2396 = vmatprep.mubr.bf16.mxu0 0
  %2397 = vmatmul.mubr.bf16.gmra.mxu0 %v1349
  %v2398 = vpop.f32.mrf.mxu0
  %v2399 = vadd.f32 0.0, %v2398
  %v2400 = vpop.f32.mrf.mxu0
  %v2401 = vpop.f32.mrf.mxu0
  %v2402 = vadd.f32 0.0, %v2401
  %v2403 = vpop.f32.mrf.mxu0
  %2404 = vmatprep.mubr.bf16.mxu0 0
  %2405 = vmatmul.mubr.bf16.gmra.mxu0 %v1352
  %v2406 = vpop.f32.mrf.mxu0
  %v2407 = vadd.f32 0.0, %v2406
  %v2408 = vpop.f32.mrf.mxu0
  %v2409 = vpop.f32.mrf.mxu0
  %v2410 = vadd.f32 0.0, %v2409
  %v2411 = vpop.f32.mrf.mxu0
  %2412 = vmatprep.mubr.bf16.mxu0 0
  %2413 = vmatmul.mubr.bf16.gmra.mxu0 %v1355
  %v2414 = vpop.f32.mrf.mxu0
  %v2415 = vadd.f32 0.0, %v2414
  %v2416 = vpop.f32.mrf.mxu0
  %v2417 = vpop.f32.mrf.mxu0
  %v2418 = vadd.f32 0.0, %v2417
  %v2419 = vpop.f32.mrf.mxu0
  %2420 = vmatprep.mubr.bf16.mxu0 0
  %2421 = vmatmul.mubr.bf16.gmra.mxu0 %v1358
  %v2422 = vpop.f32.mrf.mxu0
  %v2423 = vadd.f32 0.0, %v2422
  %v2424 = vpop.f32.mrf.mxu0
  %v2425 = vpop.f32.mrf.mxu0
  %v2426 = vadd.f32 0.0, %v2425
  %v2427 = vpop.f32.mrf.mxu0
  %2428 = vmatprep.mubr.bf16.mxu0 0
  %2429 = vmatmul.mubr.bf16.gmra.mxu0 %v1361
  %v2430 = vpop.f32.mrf.mxu0
  %v2431 = vadd.f32 0.0, %v2430
  %v2432 = vpop.f32.mrf.mxu0
  %v2433 = vpop.f32.mrf.mxu0
  %v2434 = vadd.f32 0.0, %v2433
  %v2435 = vpop.f32.mrf.mxu0
  %2436 = vmatprep.mubr.bf16.mxu0 0
  %2437 = vmatmul.mubr.bf16.gmra.mxu0 %v1364
  %v2438 = vpop.f32.mrf.mxu0
  %v2439 = vadd.f32 0.0, %v2438
  %v2440 = vpop.f32.mrf.mxu0
  %v2441 = vpop.f32.mrf.mxu0
  %v2442 = vadd.f32 0.0, %v2441
  %v2443 = vpop.f32.mrf.mxu0
  %2444 = vmatprep.mubr.bf16.mxu0 0
  %2445 = vmatmul.mubr.bf16.gmra.mxu0 %v1367
  %v2446 = vpop.f32.mrf.mxu0
  %v2447 = vadd.f32 0.0, %v2446
  %v2448 = vpop.f32.mrf.mxu0
  %v2449 = vpop.f32.mrf.mxu0
  %v2450 = vadd.f32 0.0, %v2449
  %v2451 = vpop.f32.mrf.mxu0
  %2452 = vmatprep.mubr.bf16.mxu0 0
  %2453 = vmatmul.mubr.bf16.gmra.mxu0 %v1370
  %v2454 = vpop.f32.mrf.mxu0
  %v2455 = vadd.f32 0.0, %v2454
  %v2456 = vpop.f32.mrf.mxu0
  %v2457 = vpop.f32.mrf.mxu0
  %v2458 = vadd.f32 0.0, %v2457
  %v2459 = vpop.f32.mrf.mxu0
  %2460 = vmatprep.mubr.bf16.mxu0 0
  %2461 = vmatmul.mubr.bf16.gmra.mxu0 %v1373
  %v2462 = vpop.f32.mrf.mxu0
  %v2463 = vadd.f32 0.0, %v2462
  %v2464 = vpop.f32.mrf.mxu0
  %v2465 = vpop.f32.mrf.mxu0
  %v2466 = vadd.f32 0.0, %v2465
  %v2467 = vpop.f32.mrf.mxu0
  %2468 = vmatprep.mubr.bf16.mxu0 0
  %2469 = vmatmul.mubr.bf16.gmra.mxu0 %v1376
  %v2470 = vpop.f32.mrf.mxu0
  %v2471 = vadd.f32 0.0, %v2470
  %v2472 = vpop.f32.mrf.mxu0
  %v2473 = vpop.f32.mrf.mxu0
  %v2474 = vadd.f32 0.0, %v2473
  %v2475 = vpop.f32.mrf.mxu0
  %2476 = vmatprep.mubr.bf16.mxu0 0
  %2477 = vmatmul.mubr.bf16.gmra.mxu0 %v1379
  %v2478 = vpop.f32.mrf.mxu0
  %v2479 = vadd.f32 0.0, %v2478
  %v2480 = vpop.f32.mrf.mxu0
  %v2481 = vpop.f32.mrf.mxu0
  %v2482 = vadd.f32 0.0, %v2481
  %v2483 = vpop.f32.mrf.mxu0
  %2484 = vmatprep.mubr.bf16.mxu0 0
  %2485 = vmatmul.mubr.bf16.gmra.mxu0 %v1382
  %v2486 = vpop.f32.mrf.mxu0
  %v2487 = vadd.f32 0.0, %v2486
  %v2488 = vpop.f32.mrf.mxu0
  %v2489 = vpop.f32.mrf.mxu0
  %v2490 = vadd.f32 0.0, %v2489
  %v2491 = vpop.f32.mrf.mxu0
  %2492 = vmatprep.mubr.bf16.mxu0 0
  %2493 = vmatmul.mubr.bf16.gmra.mxu0 %v1385
  %v2494 = vpop.f32.mrf.mxu0
  %v2495 = vadd.f32 0.0, %v2494
  %v2496 = vpop.f32.mrf.mxu0
  %v2497 = vpop.f32.mrf.mxu0
  %v2498 = vadd.f32 0.0, %v2497
  %v2499 = vpop.f32.mrf.mxu0
  %2500 = vmatprep.mubr.bf16.mxu0 0
  %2501 = vmatmul.mubr.bf16.gmra.mxu0 %v1388
  %v2502 = vpop.f32.mrf.mxu0
  %v2503 = vadd.f32 0.0, %v2502
  %v2504 = vpop.f32.mrf.mxu0
  %v2505 = vpop.f32.mrf.mxu0
  %v2506 = vadd.f32 0.0, %v2505
  %v2507 = vpop.f32.mrf.mxu0
  %2508 = vmatprep.mubr.bf16.mxu0 0
  %2509 = vmatmul.mubr.bf16.gmra.mxu0 %v1391
  %v2510 = vpop.f32.mrf.mxu0
  %v2511 = vadd.f32 0.0, %v2510
  %v2512 = vpop.f32.mrf.mxu0
  %v2513 = vpop.f32.mrf.mxu0
  %v2514 = vadd.f32 0.0, %v2513
  %v2515 = vpop.f32.mrf.mxu0
  %2516 = vmatprep.mubr.bf16.mxu0 0
  %2517 = vmatmul.mubr.bf16.gmra.mxu0 %v1394
  %v2518 = vpop.f32.mrf.mxu0
  %v2519 = vadd.f32 0.0, %v2518
  %v2520 = vpop.f32.mrf.mxu0
  %v2521 = vpop.f32.mrf.mxu0
  %v2522 = vpop.f32.mrf.mxu0
  %2523 = vdwg.mxu0
  %v2524 = vtanh.pop %v1431
  %v2525 = vtanh.pop %v1434
  %v2526 = vtanh.pop %v1439
  %v2527 = vtanh.pop %v1442
  %v2528 = vtanh.pop %v1447
  %v2529 = vtanh.pop %v1450
  %v2530 = vtanh.pop %v1455
  %v2531 = vtanh.pop %v1458
  %v2532 = vtanh.pop %v1463
  %v2533 = vtanh.pop %v1466
  %v2534 = vtanh.pop %v1471
  %v2535 = vtanh.pop %v1474
  %v2536 = vtanh.pop %v1479
  %v2537 = vtanh.pop %v1482
  %v2538 = vtanh.pop %v1487
  %v2539 = vtanh.pop %v1490
  %v2540 = vtanh.pop %v1495
  %v2541 = vtanh.pop %v1498
  %v2542 = vtanh.pop %v1503
  %v2543 = vtanh.pop %v1506
  %v2544 = vtanh.pop %v1511
  %v2545 = vtanh.pop %v1514
  %v2546 = vtanh.pop %v1519
  %v2547 = vtanh.pop %v1522
  %v2548 = vtanh.pop %v1527
  %v2549 = vtanh.pop %v1530
  %v2550 = vtanh.pop %v1535
  %v2551 = vtanh.pop %v1538
  %v2552 = vtanh.pop %v1543
  %v2553 = vtanh.pop %v1546
  %v2554 = vtanh.pop %v1551
  %v2555 = vtanh.pop %v1554
  %v2556 = vtanh.pop %v1559
  %v2557 = vtanh.pop %v1562
  %v2558 = vtanh.pop %v1567
  %v2559 = vtanh.pop %v1570
  %v2560 = vtanh.pop %v1575
  %v2561 = vtanh.pop %v1578
  %v2562 = vtanh.pop %v1583
  %v2563 = vtanh.pop %v1586
  %v2564 = vtanh.pop %v1591
  %v2565 = vtanh.pop %v1594
  %v2566 = vtanh.pop %v1599
  %v2567 = vtanh.pop %v1602
  %v2568 = vtanh.pop %v1607
  %v2569 = vtanh.pop %v1610
  %v2570 = vtanh.pop %v1615
  %v2571 = vtanh.pop %v1618
  %v2572 = vtanh.pop %v1623
  %v2573 = vtanh.pop %v1626
  %v2574 = vtanh.pop %v1631
  %v2575 = vtanh.pop %v1634
  %v2576 = vtanh.pop %v1639
  %v2577 = vtanh.pop %v1642
  %v2578 = vtanh.pop %v1647
  %v2579 = vtanh.pop %v1650
  %v2580 = vtanh.pop %v1655
  %v2581 = vtanh.pop %v1658
  %v2582 = vtanh.pop %v1663
  %v2583 = vtanh.pop %v1666
  %v2584 = vtanh.pop %v1671
  %v2585 = vtanh.pop %v1674
  %v2586 = vtanh.pop %v1679
  %v2587 = vtanh.pop %v1682
  %v2588 = vtanh.pop %v1687
  %v2589 = vtanh.pop %v1690
  %v2590 = vtanh.pop %v1695
  %v2591 = vtanh.pop %v1698
  %v2592 = vtanh.pop %v1703
  %v2593 = vtanh.pop %v1706
  %v2594 = vtanh.pop %v1711
  %v2595 = vtanh.pop %v1714
  %v2596 = vtanh.pop %v1719
  %v2597 = vtanh.pop %v1722
  %v2598 = vtanh.pop %v1727
  %v2599 = vtanh.pop %v1730
  %v2600 = vtanh.pop %v1735
  %v2601 = vtanh.pop %v1738
  %v2602 = vtanh.pop %v1743
  %v2603 = vtanh.pop %v1746
  %v2604 = vtanh.pop %v1751
  %v2605 = vtanh.pop %v1754
  %v2606 = vtanh.pop %v1759
  %v2607 = vtanh.pop %v1762
  %v2608 = vtanh.pop %v1767
  %v2609 = vtanh.pop %v1770
  %v2610 = vtanh.pop %v1775
  %v2611 = vtanh.pop %v1778
  %v2612 = vtanh.pop %v1783
  %v2613 = vtanh.pop %v1786
  %v2614 = vtanh.pop %v1791
  %v2615 = vtanh.pop %v1794
  %v2616 = vtanh.pop %v1799
  %v2617 = vtanh.pop %v1802
  %v2618 = vtanh.pop %v1807
  %v2619 = vtanh.pop %v1810
  %v2620 = vtanh.pop %v1815
  %v2621 = vtanh.pop %v1818
  %v2622 = vtanh.pop %v1823
  %v2623 = vtanh.pop %v1826
  %v2624 = vtanh.pop %v1831
  %v2625 = vtanh.pop %v1834
  %v2626 = vtanh.pop %v1839
  %v2627 = vtanh.pop %v1842
  %v2628 = vtanh.pop %v1847
  %v2629 = vtanh.pop %v1850
  %v2630 = vtanh.pop %v1855
  %v2631 = vtanh.pop %v1858
  %v2632 = vtanh.pop %v1863
  %v2633 = vtanh.pop %v1866
  %v2634 = vtanh.pop %v1871
  %v2635 = vtanh.pop %v1874
  %v2636 = vtanh.pop %v1879
  %v2637 = vtanh.pop %v1882
  %v2638 = vtanh.pop %v1887
  %v2639 = vtanh.pop %v1890
  %v2640 = vtanh.pop %v1895
  %v2641 = vtanh.pop %v1898
  %v2642 = vtanh.pop %v1903
  %v2643 = vtanh.pop %v1906
  %v2644 = vtanh.pop %v1911
  %v2645 = vtanh.pop %v1914
  %v2646 = vtanh.pop %v1919
  %v2647 = vtanh.pop %v1922
  %v2648 = vtanh.pop %v1927
  %v2649 = vtanh.pop %v1930
  %v2650 = vtanh.pop %v1935
  %v2651 = vtanh.pop %v1938
  %v2652 = vtanh.pop %v1943
  %v2653 = vtanh.pop %v1946
  %v2654 = vtanh.pop %v1951
  %v2655 = vtanh.pop %v1954
  %v2656 = vtanh.pop %v1959
  %v2657 = vtanh.pop %v1962
  %v2658 = vtanh.pop %v1967
  %v2659 = vtanh.pop %v1970
  %v2660 = vtanh.pop %v1975
  %v2661 = vtanh.pop %v1978
  %v2662 = vtanh.pop %v1983
  %v2663 = vtanh.pop %v1986
  %v2664 = vtanh.pop %v1991
  %v2665 = vtanh.pop %v1994
  %v2666 = vtanh.pop %v1999
  %v2667 = vtanh.pop %v2002
  %v2668 = vtanh.pop %v2007
  %v2669 = vtanh.pop %v2010
  %v2670 = vtanh.pop %v2015
  %v2671 = vtanh.pop %v2018
  %v2672 = vtanh.pop %v2023
  %v2673 = vtanh.pop %v2026
  %v2674 = vtanh.pop %v2031
  %v2675 = vtanh.pop %v2034
  %v2676 = vtanh.pop %v2039
  %v2677 = vtanh.pop %v2042
  %v2678 = vtanh.pop %v2047
  %v2679 = vtanh.pop %v2050
  %v2680 = vtanh.pop %v2055
  %v2681 = vtanh.pop %v2058
  %v2682 = vtanh.pop %v2063
  %v2683 = vtanh.pop %v2066
  %v2684 = vtanh.pop %v2071
  %v2685 = vtanh.pop %v2074
  %v2686 = vtanh.pop %v2079
  %v2687 = vtanh.pop %v2082
  %v2688 = vtanh.pop %v2087
  %v2689 = vtanh.pop %v2090
  %v2690 = vtanh.pop %v2095
  %v2691 = vtanh.pop %v2098
  %v2692 = vtanh.pop %v2103
  %v2693 = vtanh.pop %v2106
  %v2694 = vtanh.pop %v2111
  %v2695 = vtanh.pop %v2114
  %v2696 = vtanh.pop %v2119
  %v2697 = vtanh.pop %v2122
  %v2698 = vtanh.pop %v2127
  %v2699 = vtanh.pop %v2130
  %v2700 = vtanh.pop %v2135
  %v2701 = vtanh.pop %v2138
  %v2702 = vtanh.pop %v2143
  %v2703 = vtanh.pop %v2146
  %v2704 = vtanh.pop %v2151
  %v2705 = vtanh.pop %v2154
  %v2706 = vtanh.pop %v2159
  %v2707 = vtanh.pop %v2162
  %v2708 = vtanh.pop %v2167
  %v2709 = vtanh.pop %v2170
  %v2710 = vtanh.pop %v2175
  %v2711 = vtanh.pop %v2178
  %v2712 = vtanh.pop %v2183
  %v2713 = vtanh.pop %v2186
  %v2714 = vtanh.pop %v2191
  %v2715 = vtanh.pop %v2194
  %v2716 = vtanh.pop %v2199
  %v2717 = vtanh.pop %v2202
  %v2718 = vtanh.pop %v2207
  %v2719 = vtanh.pop %v2210
  %v2720 = vtanh.pop %v2215
  %v2721 = vtanh.pop %v2218
  %v2722 = vtanh.pop %v2223
  %v2723 = vtanh.pop %v2226
  %v2724 = vtanh.pop %v2231
  %v2725 = vtanh.pop %v2234
  %v2726 = vtanh.pop %v2239
  %v2727 = vtanh.pop %v2242
  %v2728 = vtanh.pop %v2247
  %v2729 = vtanh.pop %v2250
  %v2730 = vtanh.pop %v2255
  %v2731 = vtanh.pop %v2258
  %v2732 = vtanh.pop %v2263
  %v2733 = vtanh.pop %v2266
  %v2734 = vtanh.pop %v2271
  %v2735 = vtanh.pop %v2274
  %v2736 = vtanh.pop %v2279
  %v2737 = vtanh.pop %v2282
  %v2738 = vtanh.pop %v2287
  %v2739 = vtanh.pop %v2290
  %v2740 = vtanh.pop %v2295
  %v2741 = vtanh.pop %v2298
  %v2742 = vtanh.pop %v2303
  %v2743 = vtanh.pop %v2306
  %v2744 = vtanh.pop %v2311
  %v2745 = vtanh.pop %v2314
  %v2746 = vtanh.pop %v2319
  %v2747 = vtanh.pop %v2322
  %v2748 = vtanh.pop %v2327
  %v2749 = vtanh.pop %v2330
  %v2750 = vtanh.pop %v2335
  %v2751 = vtanh.pop %v2338
  %v2752 = vtanh.pop %v2343
  %v2753 = vtanh.pop %v2346
  %v2754 = vtanh.pop %v2351
  %v2755 = vtanh.pop %v2354
  %v2756 = vtanh.pop %v2359
  %v2757 = vtanh.pop %v2362
  %v2758 = vtanh.pop %v2367
  %v2759 = vtanh.pop %v2370
  %v2760 = vtanh.pop %v2375
  %v2761 = vtanh.pop %v2378
  %v2762 = vtanh.pop %v2383
  %v2763 = vtanh.pop %v2386
  %v2764 = vtanh.pop %v2391
  %v2765 = vtanh.pop %v2394
  %v2766 = vtanh.pop %v2399
  %v2767 = vtanh.pop %v2402
  %v2768 = vtanh.pop %v2407
  %v2769 = vtanh.pop %v2410
  %v2770 = vtanh.pop %v2415
  %v2771 = vtanh.pop %v2418
  %v2772 = vtanh.pop %v2423
  %v2773 = vtanh.pop %v2426
  %v2774 = vtanh.pop %v2431
  %v2775 = vtanh.pop %v2434
  %v2776 = vtanh.pop %v2439
  %v2777 = vtanh.pop %v2442
  %v2778 = vtanh.pop %v2447
  %v2779 = vtanh.pop %v2450
  %v2780 = vtanh.pop %v2455
  %v2781 = vtanh.pop %v2458
  %v2782 = vtanh.pop %v2463
  %v2783 = vtanh.pop %v2466
  %v2784 = vtanh.pop %v2471
  %v2785 = vtanh.pop %v2474
  %v2786 = vtanh.pop %v2479
  %v2787 = vtanh.pop %v2482
  %v2788 = vtanh.pop %v2487
  %v2789 = vtanh.pop %v2490
  %v2790 = vtanh.pop %v2495
  %v2791 = vtanh.pop %v2498
  %v2792 = vtanh.pop %v2503
  %v2793 = vtanh.pop %v2506
  %v2794 = vtanh.pop %v2511
  %v2795 = vtanh.pop %v2514
  %v2796 = vtanh.pop %v2519
  %2797 = vst [vmem:[%s2] sm:$0xff] %v2524
  %2798 = vst [vmem:[%s2 + $0x8] sm:$0xff] %v2525
  %2799 = vst [vmem:[%s2 + $0x10] sm:$0xff] %v2526
  %2800 = vst [vmem:[%s2 + $0x18] sm:$0xff] %v2527
  %2801 = vst [vmem:[%s2 + $0x20] sm:$0xff] %v2528
  %2802 = vst [vmem:[%s2 + $0x28] sm:$0xff] %v2529
  %2803 = vst [vmem:[%s2 + $0x30] sm:$0xff] %v2530
  %2804 = vst [vmem:[%s2 + $0x38] sm:$0xff] %v2531
  %2805 = vst [vmem:[%s2 + $0x40] sm:$0xff] %v2532
  %2806 = vst [vmem:[%s2 + $0x48] sm:$0xff] %v2533
  %2807 = vst [vmem:[%s2 + $0x50] sm:$0xff] %v2534
  %2808 = vst [vmem:[%s2 + $0x58] sm:$0xff] %v2535
  %2809 = vst [vmem:[%s2 + $0x60] sm:$0xff] %v2536
  %2810 = vst [vmem:[%s2 + $0x68] sm:$0xff] %v2537
  %2811 = vst [vmem:[%s2 + $0x70] sm:$0xff] %v2538
  %2812 = vst [vmem:[%s2 + $0x78] sm:$0xff] %v2539
  %2813 = vst [vmem:[%s2 + $0x80] sm:$0xff] %v2540
  %2814 = vst [vmem:[%s2 + $0x88] sm:$0xff] %v2541
  %2815 = vst [vmem:[%s2 + $0x90] sm:$0xff] %v2542
  %2816 = vst [vmem:[%s2 + $0x98] sm:$0xff] %v2543
  %2817 = vst [vmem:[%s2 + $0xa0] sm:$0xff] %v2544
  %2818 = vst [vmem:[%s2 + $0xa8] sm:$0xff] %v2545
  %2819 = vst [vmem:[%s2 + $0xb0] sm:$0xff] %v2546
  %2820 = vst [vmem:[%s2 + $0xb8] sm:$0xff] %v2547
  %2821 = vst [vmem:[%s2 + $0xc0] sm:$0xff] %v2548
  %2822 = vst [vmem:[%s2 + $0xc8] sm:$0xff] %v2549
  %2823 = vst [vmem:[%s2 + $0xd0] sm:$0xff] %v2550
  %2824 = vst [vmem:[%s2 + $0xd8] sm:$0xff] %v2551
  %2825 = vst [vmem:[%s2 + $0xe0] sm:$0xff] %v2552
  %2826 = vst [vmem:[%s2 + $0xe8] sm:$0xff] %v2553
  %2827 = vst [vmem:[%s2 + $0xf0] sm:$0xff] %v2554
  %2828 = vst [vmem:[%s2 + $0xf8] sm:$0xff] %v2555
  %2829 = vst [vmem:[%s2 + $0x100] sm:$0xff] %v2556
  %2830 = vst [vmem:[%s2 + $0x108] sm:$0xff] %v2557
  %2831 = vst [vmem:[%s2 + $0x110] sm:$0xff] %v2558
  %2832 = vst [vmem:[%s2 + $0x118] sm:$0xff] %v2559
  %2833 = vst [vmem:[%s2 + $0x120] sm:$0xff] %v2560
  %2834 = vst [vmem:[%s2 + $0x128] sm:$0xff] %v2561
  %2835 = vst [vmem:[%s2 + $0x130] sm:$0xff] %v2562
  %2836 = vst [vmem:[%s2 + $0x138] sm:$0xff] %v2563
  %2837 = vst [vmem:[%s2 + $0x140] sm:$0xff] %v2564
  %2838 = vst [vmem:[%s2 + $0x148] sm:$0xff] %v2565
  %2839 = vst [vmem:[%s2 + $0x150] sm:$0xff] %v2566
  %2840 = vst [vmem:[%s2 + $0x158] sm:$0xff] %v2567
  %2841 = vst [vmem:[%s2 + $0x160] sm:$0xff] %v2568
  %2842 = vst [vmem:[%s2 + $0x168] sm:$0xff] %v2569
  %2843 = vst [vmem:[%s2 + $0x170] sm:$0xff] %v2570
  %2844 = vst [vmem:[%s2 + $0x178] sm:$0xff] %v2571
  %2845 = vst [vmem:[%s2 + $0x180] sm:$0xff] %v2572
  %2846 = vst [vmem:[%s2 + $0x188] sm:$0xff] %v2573
  %2847 = vst [vmem:[%s2 + $0x190] sm:$0xff] %v2574
  %2848 = vst [vmem:[%s2 + $0x198] sm:$0xff] %v2575
  %2849 = vst [vmem:[%s2 + $0x1a0] sm:$0xff] %v2576
  %2850 = vst [vmem:[%s2 + $0x1a8] sm:$0xff] %v2577
  %2851 = vst [vmem:[%s2 + $0x1b0] sm:$0xff] %v2578
  %2852 = vst [vmem:[%s2 + $0x1b8] sm:$0xff] %v2579
  %2853 = vst [vmem:[%s2 + $0x1c0] sm:$0xff] %v2580
  %2854 = vst [vmem:[%s2 + $0x1c8] sm:$0xff] %v2581
  %2855 = vst [vmem:[%s2 + $0x1d0] sm:$0xff] %v2582
  %2856 = vst [vmem:[%s2 + $0x1d8] sm:$0xff] %v2583
  %2857 = vst [vmem:[%s2 + $0x1e0] sm:$0xff] %v2584
  %2858 = vst [vmem:[%s2 + $0x1e8] sm:$0xff] %v2585
  %2859 = vst [vmem:[%s2 + $0x1f0] sm:$0xff] %v2586
  %2860 = vst [vmem:[%s2 + $0x1f8] sm:$0xff] %v2587
  %2861 = vst [vmem:[%s2 + $0x200] sm:$0xff] %v2588
  %2862 = vst [vmem:[%s2 + $0x208] sm:$0xff] %v2589
  %2863 = vst [vmem:[%s2 + $0x210] sm:$0xff] %v2590
  %2864 = vst [vmem:[%s2 + $0x218] sm:$0xff] %v2591
  %2865 = vst [vmem:[%s2 + $0x220] sm:$0xff] %v2592
  %2866 = vst [vmem:[%s2 + $0x228] sm:$0xff] %v2593
  %2867 = vst [vmem:[%s2 + $0x230] sm:$0xff] %v2594
  %2868 = vst [vmem:[%s2 + $0x238] sm:$0xff] %v2595
  %2869 = vst [vmem:[%s2 + $0x240] sm:$0xff] %v2596
  %2870 = vst [vmem:[%s2 + $0x248] sm:$0xff] %v2597
  %2871 = vst [vmem:[%s2 + $0x250] sm:$0xff] %v2598
  %2872 = vst [vmem:[%s2 + $0x258] sm:$0xff] %v2599
  %2873 = vst [vmem:[%s2 + $0x260] sm:$0xff] %v2600
  %2874 = vst [vmem:[%s2 + $0x268] sm:$0xff] %v2601
  %2875 = vst [vmem:[%s2 + $0x270] sm:$0xff] %v2602
  %2876 = vst [vmem:[%s2 + $0x278] sm:$0xff] %v2603
  %2877 = vst [vmem:[%s2 + $0x280] sm:$0xff] %v2604
  %2878 = vst [vmem:[%s2 + $0x288] sm:$0xff] %v2605
  %2879 = vst [vmem:[%s2 + $0x290] sm:$0xff] %v2606
  %2880 = vst [vmem:[%s2 + $0x298] sm:$0xff] %v2607
  %2881 = vst [vmem:[%s2 + $0x2a0] sm:$0xff] %v2608
  %2882 = vst [vmem:[%s2 + $0x2a8] sm:$0xff] %v2609
  %2883 = vst [vmem:[%s2 + $0x2b0] sm:$0xff] %v2610
  %2884 = vst [vmem:[%s2 + $0x2b8] sm:$0xff] %v2611
  %2885 = vst [vmem:[%s2 + $0x2c0] sm:$0xff] %v2612
  %2886 = vst [vmem:[%s2 + $0x2c8] sm:$0xff] %v2613
  %2887 = vst [vmem:[%s2 + $0x2d0] sm:$0xff] %v2614
  %2888 = vst [vmem:[%s2 + $0x2d8] sm:$0xff] %v2615
  %2889 = vst [vmem:[%s2 + $0x2e0] sm:$0xff] %v2616
  %2890 = vst [vmem:[%s2 + $0x2e8] sm:$0xff] %v2617
  %2891 = vst [vmem:[%s2 + $0x2f0] sm:$0xff] %v2618
  %2892 = vst [vmem:[%s2 + $0x2f8] sm:$0xff] %v2619
  %2893 = vst [vmem:[%s2 + $0x300] sm:$0xff] %v2620
  %2894 = vst [vmem:[%s2 + $0x308] sm:$0xff] %v2621
  %2895 = vst [vmem:[%s2 + $0x310] sm:$0xff] %v2622
  %2896 = vst [vmem:[%s2 + $0x318] sm:$0xff] %v2623
  %2897 = vst [vmem:[%s2 + $0x320] sm:$0xff] %v2624
  %2898 = vst [vmem:[%s2 + $0x328] sm:$0xff] %v2625
  %2899 = vst [vmem:[%s2 + $0x330] sm:$0xff] %v2626
  %2900 = vst [vmem:[%s2 + $0x338] sm:$0xff] %v2627
  %2901 = vst [vmem:[%s2 + $0x340] sm:$0xff] %v2628
  %2902 = vst [vmem:[%s2 + $0x348] sm:$0xff] %v2629
  %2903 = vst [vmem:[%s2 + $0x350] sm:$0xff] %v2630
  %2904 = vst [vmem:[%s2 + $0x358] sm:$0xff] %v2631
  %2905 = vst [vmem:[%s2 + $0x360] sm:$0xff] %v2632
  %2906 = vst [vmem:[%s2 + $0x368] sm:$0xff] %v2633
  %2907 = vst [vmem:[%s2 + $0x370] sm:$0xff] %v2634
  %2908 = vst [vmem:[%s2 + $0x378] sm:$0xff] %v2635
  %2909 = vst [vmem:[%s2 + $0x380] sm:$0xff] %v2636
  %2910 = vst [vmem:[%s2 + $0x388] sm:$0xff] %v2637
  %2911 = vst [vmem:[%s2 + $0x390] sm:$0xff] %v2638
  %2912 = vst [vmem:[%s2 + $0x398] sm:$0xff] %v2639
  %2913 = vst [vmem:[%s2 + $0x3a0] sm:$0xff] %v2640
  %2914 = vst [vmem:[%s2 + $0x3a8] sm:$0xff] %v2641
  %2915 = vst [vmem:[%s2 + $0x3b0] sm:$0xff] %v2642
  %2916 = vst [vmem:[%s2 + $0x3b8] sm:$0xff] %v2643
  %2917 = vst [vmem:[%s2 + $0x3c0] sm:$0xff] %v2644
  %2918 = vst [vmem:[%s2 + $0x3c8] sm:$0xff] %v2645
  %2919 = vst [vmem:[%s2 + $0x3d0] sm:$0xff] %v2646
  %2920 = vst [vmem:[%s2 + $0x3d8] sm:$0xff] %v2647
  %2921 = vst [vmem:[%s2 + $0x3e0] sm:$0xff] %v2648
  %2922 = vst [vmem:[%s2 + $0x3e8] sm:$0xff] %v2649
  %2923 = vst [vmem:[%s2 + $0x3f0] sm:$0xff] %v2650
  %2924 = vst [vmem:[%s2 + $0x3f8] sm:$0xff] %v2651
  %2925 = vst [vmem:[%s2 + $0x400] sm:$0xff] %v2652
  %2926 = vst [vmem:[%s2 + $0x408] sm:$0xff] %v2653
  %2927 = vst [vmem:[%s2 + $0x410] sm:$0xff] %v2654
  %2928 = vst [vmem:[%s2 + $0x418] sm:$0xff] %v2655
  %2929 = vst [vmem:[%s2 + $0x420] sm:$0xff] %v2656
  %2930 = vst [vmem:[%s2 + $0x428] sm:$0xff] %v2657
  %2931 = vst [vmem:[%s2 + $0x430] sm:$0xff] %v2658
  %2932 = vst [vmem:[%s2 + $0x438] sm:$0xff] %v2659
  %2933 = vst [vmem:[%s2 + $0x440] sm:$0xff] %v2660
  %2934 = vst [vmem:[%s2 + $0x448] sm:$0xff] %v2661
  %2935 = vst [vmem:[%s2 + $0x450] sm:$0xff] %v2662
  %2936 = vst [vmem:[%s2 + $0x458] sm:$0xff] %v2663
  %2937 = vst [vmem:[%s2 + $0x460] sm:$0xff] %v2664
  %2938 = vst [vmem:[%s2 + $0x468] sm:$0xff] %v2665
  %2939 = vst [vmem:[%s2 + $0x470] sm:$0xff] %v2666
  %2940 = vst [vmem:[%s2 + $0x478] sm:$0xff] %v2667
  %2941 = vst [vmem:[%s2 + $0x480] sm:$0xff] %v2668
  %2942 = vst [vmem:[%s2 + $0x488] sm:$0xff] %v2669
  %2943 = vst [vmem:[%s2 + $0x490] sm:$0xff] %v2670
  %2944 = vst [vmem:[%s2 + $0x498] sm:$0xff] %v2671
  %2945 = vst [vmem:[%s2 + $0x4a0] sm:$0xff] %v2672
  %2946 = vst [vmem:[%s2 + $0x4a8] sm:$0xff] %v2673
  %2947 = vst [vmem:[%s2 + $0x4b0] sm:$0xff] %v2674
  %2948 = vst [vmem:[%s2 + $0x4b8] sm:$0xff] %v2675
  %2949 = vst [vmem:[%s2 + $0x4c0] sm:$0xff] %v2676
  %2950 = vst [vmem:[%s2 + $0x4c8] sm:$0xff] %v2677
  %2951 = vst [vmem:[%s2 + $0x4d0] sm:$0xff] %v2678
  %2952 = vst [vmem:[%s2 + $0x4d8] sm:$0xff] %v2679
  %2953 = vst [vmem:[%s2 + $0x4e0] sm:$0xff] %v2680
  %2954 = vst [vmem:[%s2 + $0x4e8] sm:$0xff] %v2681
  %2955 = vst [vmem:[%s2 + $0x4f0] sm:$0xff] %v2682
  %2956 = vst [vmem:[%s2 + $0x4f8] sm:$0xff] %v2683
  %2957 = vst [vmem:[%s2 + $0x500] sm:$0xff] %v2684
  %2958 = vst [vmem:[%s2 + $0x508] sm:$0xff] %v2685
  %2959 = vst [vmem:[%s2 + $0x510] sm:$0xff] %v2686
  %2960 = vst [vmem:[%s2 + $0x518] sm:$0xff] %v2687
  %2961 = vst [vmem:[%s2 + $0x520] sm:$0xff] %v2688
  %2962 = vst [vmem:[%s2 + $0x528] sm:$0xff] %v2689
  %2963 = vst [vmem:[%s2 + $0x530] sm:$0xff] %v2690
  %2964 = vst [vmem:[%s2 + $0x538] sm:$0xff] %v2691
  %2965 = vst [vmem:[%s2 + $0x540] sm:$0xff] %v2692
  %2966 = vst [vmem:[%s2 + $0x548] sm:$0xff] %v2693
  %2967 = vst [vmem:[%s2 + $0x550] sm:$0xff] %v2694
  %2968 = vst [vmem:[%s2 + $0x558] sm:$0xff] %v2695
  %2969 = vst [vmem:[%s2 + $0x560] sm:$0xff] %v2696
  %2970 = vst [vmem:[%s2 + $0x568] sm:$0xff] %v2697
  %2971 = vst [vmem:[%s2 + $0x570] sm:$0xff] %v2698
  %2972 = vst [vmem:[%s2 + $0x578] sm:$0xff] %v2699
  %2973 = vst [vmem:[%s2 + $0x580] sm:$0xff] %v2700
  %2974 = vst [vmem:[%s2 + $0x588] sm:$0xff] %v2701
  %2975 = vst [vmem:[%s2 + $0x590] sm:$0xff] %v2702
  %2976 = vst [vmem:[%s2 + $0x598] sm:$0xff] %v2703
  %2977 = vst [vmem:[%s2 + $0x5a0] sm:$0xff] %v2704
  %2978 = vst [vmem:[%s2 + $0x5a8] sm:$0xff] %v2705
  %2979 = vst [vmem:[%s2 + $0x5b0] sm:$0xff] %v2706
  %2980 = vst [vmem:[%s2 + $0x5b8] sm:$0xff] %v2707
  %2981 = vst [vmem:[%s2 + $0x5c0] sm:$0xff] %v2708
  %2982 = vst [vmem:[%s2 + $0x5c8] sm:$0xff] %v2709
  %2983 = vst [vmem:[%s2 + $0x5d0] sm:$0xff] %v2710
  %2984 = vst [vmem:[%s2 + $0x5d8] sm:$0xff] %v2711
  %2985 = vst [vmem:[%s2 + $0x5e0] sm:$0xff] %v2712
  %2986 = vst [vmem:[%s2 + $0x5e8] sm:$0xff] %v2713
  %2987 = vst [vmem:[%s2 + $0x5f0] sm:$0xff] %v2714
  %2988 = vst [vmem:[%s2 + $0x5f8] sm:$0xff] %v2715
  %2989 = vst [vmem:[%s2 + $0x600] sm:$0xff] %v2716
  %2990 = vst [vmem:[%s2 + $0x608] sm:$0xff] %v2717
  %2991 = vst [vmem:[%s2 + $0x610] sm:$0xff] %v2718
  %2992 = vst [vmem:[%s2 + $0x618] sm:$0xff] %v2719
  %2993 = vst [vmem:[%s2 + $0x620] sm:$0xff] %v2720
  %2994 = vst [vmem:[%s2 + $0x628] sm:$0xff] %v2721
  %2995 = vst [vmem:[%s2 + $0x630] sm:$0xff] %v2722
  %2996 = vst [vmem:[%s2 + $0x638] sm:$0xff] %v2723
  %2997 = vst [vmem:[%s2 + $0x640] sm:$0xff] %v2724
  %2998 = vst [vmem:[%s2 + $0x648] sm:$0xff] %v2725
  %2999 = vst [vmem:[%s2 + $0x650] sm:$0xff] %v2726
  %3000 = vst [vmem:[%s2 + $0x658] sm:$0xff] %v2727
  %3001 = vst [vmem:[%s2 + $0x660] sm:$0xff] %v2728
  %3002 = vst [vmem:[%s2 + $0x668] sm:$0xff] %v2729
  %3003 = vst [vmem:[%s2 + $0x670] sm:$0xff] %v2730
  %3004 = vst [vmem:[%s2 + $0x678] sm:$0xff] %v2731
  %3005 = vst [vmem:[%s2 + $0x680] sm:$0xff] %v2732
  %3006 = vst [vmem:[%s2 + $0x688] sm:$0xff] %v2733
  %3007 = vst [vmem:[%s2 + $0x690] sm:$0xff] %v2734
  %3008 = vst [vmem:[%s2 + $0x698] sm:$0xff] %v2735
  %3009 = vst [vmem:[%s2 + $0x6a0] sm:$0xff] %v2736
  %3010 = vst [vmem:[%s2 + $0x6a8] sm:$0xff] %v2737
  %3011 = vst [vmem:[%s2 + $0x6b0] sm:$0xff] %v2738
  %3012 = vst [vmem:[%s2 + $0x6b8] sm:$0xff] %v2739
  %3013 = vst [vmem:[%s2 + $0x6c0] sm:$0xff] %v2740
  %3014 = vst [vmem:[%s2 + $0x6c8] sm:$0xff] %v2741
  %3015 = vst [vmem:[%s2 + $0x6d0] sm:$0xff] %v2742
  %3016 = vst [vmem:[%s2 + $0x6d8] sm:$0xff] %v2743
  %3017 = vst [vmem:[%s2 + $0x6e0] sm:$0xff] %v2744
  %3018 = vst [vmem:[%s2 + $0x6e8] sm:$0xff] %v2745
  %3019 = vst [vmem:[%s2 + $0x6f0] sm:$0xff] %v2746
  %3020 = vst [vmem:[%s2 + $0x6f8] sm:$0xff] %v2747
  %3021 = vst [vmem:[%s2 + $0x700] sm:$0xff] %v2748
  %3022 = vst [vmem:[%s2 + $0x708] sm:$0xff] %v2749
  %3023 = vst [vmem:[%s2 + $0x710] sm:$0xff] %v2750
  %3024 = vst [vmem:[%s2 + $0x718] sm:$0xff] %v2751
  %3025 = vst [vmem:[%s2 + $0x720] sm:$0xff] %v2752
  %3026 = vst [vmem:[%s2 + $0x728] sm:$0xff] %v2753
  %3027 = vst [vmem:[%s2 + $0x730] sm:$0xff] %v2754
  %3028 = vst [vmem:[%s2 + $0x738] sm:$0xff] %v2755
  %3029 = vst [vmem:[%s2 + $0x740] sm:$0xff] %v2756
  %3030 = vst [vmem:[%s2 + $0x748] sm:$0xff] %v2757
  %3031 = vst [vmem:[%s2 + $0x750] sm:$0xff] %v2758
  %3032 = vst [vmem:[%s2 + $0x758] sm:$0xff] %v2759
  %3033 = vst [vmem:[%s2 + $0x760] sm:$0xff] %v2760
  %3034 = vst [vmem:[%s2 + $0x768] sm:$0xff] %v2761
  %3035 = vst [vmem:[%s2 + $0x770] sm:$0xff] %v2762
  %3036 = vst [vmem:[%s2 + $0x778] sm:$0xff] %v2763
  %3037 = vst [vmem:[%s2 + $0x780] sm:$0xff] %v2764
  %3038 = vst [vmem:[%s2 + $0x788] sm:$0xff] %v2765
  %3039 = vst [vmem:[%s2 + $0x790] sm:$0xff] %v2766
  %3040 = vst [vmem:[%s2 + $0x798] sm:$0xff] %v2767
  %3041 = vst [vmem:[%s2 + $0x7a0] sm:$0xff] %v2768
  %3042 = vst [vmem:[%s2 + $0x7a8] sm:$0xff] %v2769
  %3043 = vst [vmem:[%s2 + $0x7b0] sm:$0xff] %v2770
  %3044 = vst [vmem:[%s2 + $0x7b8] sm:$0xff] %v2771
  %3045 = vst [vmem:[%s2 + $0x7c0] sm:$0xff] %v2772
  %3046 = vst [vmem:[%s2 + $0x7c8] sm:$0xff] %v2773
  %3047 = vst [vmem:[%s2 + $0x7d0] sm:$0xff] %v2774
  %3048 = vst [vmem:[%s2 + $0x7d8] sm:$0xff] %v2775
  %3049 = vst [vmem:[%s2 + $0x7e0] sm:$0xff] %v2776
  %3050 = vst [vmem:[%s2 + $0x7e8] sm:$0xff] %v2777
  %3051 = vst [vmem:[%s2 + $0x7f0] sm:$0xff] %v2778
  %3052 = vst [vmem:[%s2 + $0x7f8] sm:$0xff] %v2779
  %3053 = vst [vmem:[%s2 + $0x800] sm:$0xff] %v2780
  %3054 = vst [vmem:[%s2 + $0x808] sm:$0xff] %v2781
  %3055 = vst [vmem:[%s2 + $0x810] sm:$0xff] %v2782
  %3056 = vst [vmem:[%s2 + $0x818] sm:$0xff] %v2783
  %3057 = vst [vmem:[%s2 + $0x820] sm:$0xff] %v2784
  %3058 = vst [vmem:[%s2 + $0x828] sm:$0xff] %v2785
  %3059 = vst [vmem:[%s2 + $0x830] sm:$0xff] %v2786
  %3060 = vst [vmem:[%s2 + $0x838] sm:$0xff] %v2787
  %3061 = vst [vmem:[%s2 + $0x840] sm:$0xff] %v2788
  %3062 = vst [vmem:[%s2 + $0x848] sm:$0xff] %v2789
  %3063 = vst [vmem:[%s2 + $0x850] sm:$0xff] %v2790
  %3064 = vst [vmem:[%s2 + $0x858] sm:$0xff] %v2791
  %3065 = vst [vmem:[%s2 + $0x860] sm:$0xff] %v2792
  %3066 = vst [vmem:[%s2 + $0x868] sm:$0xff] %v2793
  %3067 = vst [vmem:[%s2 + $0x870] sm:$0xff] %v2794
  %3068 = vst [vmem:[%s2 + $0x878] sm:$0xff] %v2795
  %3069 = vst [vmem:[%s2 + $0x880] sm:$0x3] %v2796
  // Predicated region
  $region10: #{generator_forward.17} parent=0 // pred_check
    _
  $region11: #{generator_forward.17} parent=0 // pred_check_branch
    %3071 = sbr.rel (0) target = $region13
  $region12: #{generator_forward.17} parent=0 // pred_region
    _
  $region13: #{generator_forward.17} parent=0 // pred_fallthru
    _
  // Predicated region
  $region14: #{generator_forward.17} parent=0 // pred_check
    _
  $region15: #{generator_forward.17} parent=0 // pred_check_branch
    %3073 = sbr.rel (0) target = $region17
  $region16: #{generator_forward.17} parent=0 // pred_region
    _
  $region17: #{generator_forward.17} parent=0 // pred_fallthru
    _

</llo_original>
